<compile_context>
chip_gen: v7x
topology: tpu7x:2x2x1
jax: 0.10.0
libtpu: 0.0.40
codegen_flags: <defaults>
</compile_context>

<pallas_src>
import functools

import jax
import jax.numpy as jnp
from jax.experimental import pallas as pl
from jax.experimental.pallas import tpu as pltpu

LN_EPS = 1e-5  # PyTorch nn.LayerNorm default


def _layernorm(x, g, b):
    # x: (M, E); g, b: (1, E).  Biased variance, like torch.nn.LayerNorm.
    mu = jnp.mean(x, axis=-1, keepdims=True)
    var = jnp.mean((x - mu) ** 2, axis=-1, keepdims=True)
    return (x - mu) * jax.lax.rsqrt(var + LN_EPS) * g + b


def _physical_vmem_bytes():
    """Per-generation VMEM capacity; conservative 64 MiB fallback."""
    try:
        info = pltpu.get_tpu_info()
        v = getattr(info, "vmem_capacity_bytes", None)
        if v:
            return int(v)
    except Exception:
        pass
    return 64 * 2 ** 20


def _llama_kernel(batch, seq_len, head_num, compute_dtype,
                  x_ref,
                  ln1_g_ref, ln1_b_ref,
                  wqkv_ref, bqkv_ref,
                  wo_ref, bo_ref,
                  wg_ref, bg_ref, wu_ref, bu_ref, wd_ref, bd_ref,
                  ln2_g_ref, ln2_b_ref,
                  wout_ref, bout_ref,
                  o_ref,
                  x_carry):
    l = pl.program_id(0)
    num_layers = pl.num_programs(0)

    B, S, H = batch, seq_len, head_num
    E = x_ref.shape[-1]
    M = B * S
    hd = E // H

    def mm(a_f32, w, bias):
        # Weights/biases already live in compute_dtype (from HBM); accumulate f32.
        return (jnp.dot(a_f32.astype(compute_dtype), w,
                        preferred_element_type=jnp.float32)
                + bias.astype(jnp.float32))

    # ---- load activation into the carry at the first layer ----
    @pl.when(l == 0)
    def _():
        x_carry[...] = x_ref[...].reshape(M, E).astype(jnp.float32)

    x = x_carry[...]                                        # (M, E) f32

    # ---- input_layernorm ----
    h = _layernorm(x, ln1_g_ref[0], ln1_b_ref[0])

    # ---- fused QKV projection: one (M, E) @ (E, 3E) matmul over the batch ----
    qkv = mm(h, wqkv_ref[0], bqkv_ref[0])                   # (M, 3E) f32
    q = qkv[:, 0 * E:1 * E]
    k = qkv[:, 1 * E:2 * E]
    v = qkv[:, 2 * E:3 * E]

    # ---- softmax-free attention, reassociated as Q @ (K^T V) ----
    # Per-batch static loop (B is small/static); heads are batched into a
    # single 3-D contraction, and the (S, S) score temporary never exists.
    attn_parts = []
    for b in range(B):
        rows = slice(b * S, (b + 1) * S)
        qb = q[rows].reshape(S, H, hd).transpose(1, 0, 2).astype(compute_dtype)
        kb = k[rows].reshape(S, H, hd).transpose(1, 0, 2).astype(compute_dtype)
        vb = v[rows].reshape(S, H, hd).transpose(1, 0, 2).astype(compute_dtype)
        kv = jnp.einsum('hkd,hke->hde', kb, vb,
                        preferred_element_type=jnp.float32)          # (H, hd, hd)
        ab = jnp.einsum('hqd,hde->hqe', qb, kv.astype(compute_dtype),
                        preferred_element_type=jnp.float32)          # (H, S, hd)
        attn_parts.append(ab.transpose(1, 0, 2).reshape(S, E))
    attn = attn_parts[0] if B == 1 else jnp.concatenate(attn_parts, axis=0)

    h = mm(attn, wo_ref[0], bo_ref[0])                      # o_proj

    # ---- mlp: gate_proj(x) + down_proj(up_proj(x)); cast h once, reuse ----
    h_c = h.astype(compute_dtype)
    y0 = (jnp.dot(h_c, wg_ref[0], preferred_element_type=jnp.float32)
          + bg_ref[0].astype(jnp.float32))
    y1 = (jnp.dot(h_c, wu_ref[0], preferred_element_type=jnp.float32)
          + bu_ref[0].astype(jnp.float32))
    y1 = mm(y1, wd_ref[0], bd_ref[0])
    h = y0 + y1

    # ---- post_attention_layernorm; update the carry ----
    x_new = _layernorm(h, ln2_g_ref[0], ln2_b_ref[0])
    x_carry[...] = x_new

    # ---- out_linear (lane-padded to 128) only at the last layer ----
    @pl.when(l == num_layers - 1)
    def _():
        out = mm(x_new, wout_ref[...], bout_ref[...])       # (M, OUT_PAD) f32
        o_ref[...] = out.reshape(o_ref.shape).astype(o_ref.dtype)


def fake_llama_forward(x, params, head_num, *, compute_dtype=jnp.float32):
    B, S, E = x.shape
    assert E % head_num == 0
    L = params["wq"].shape[0]
    out_dim = params["wout"].shape[-1]
    OUT_PAD = ((out_dim + 127) // 128) * 128
    M = B * S
    hd = E // head_num
    dsize = jnp.dtype(compute_dtype).itemsize

    # Fused QKV weights/biases, stored in compute_dtype (halves DMA when bf16).
    wqkv = jnp.concatenate([params["wq"], params["wk"], params["wv"]],
                           axis=-1).astype(compute_dtype)
    bqkv = jnp.concatenate([params["bq"], params["bk"], params["bv"]],
                           axis=-1).astype(compute_dtype)
    wo = params["wo"].astype(compute_dtype)
    bo = params["bo"].astype(compute_dtype)
    wg = params["wg"].astype(compute_dtype)
    bg = params["bg"].astype(compute_dtype)
    wu = params["wu"].astype(compute_dtype)
    bu = params["bu"].astype(compute_dtype)
    wd = params["wd"].astype(compute_dtype)
    bd = params["bd"].astype(compute_dtype)

    # Lane-dense out_linear: pad E->5 to E->128 so the final store is a dense vst.
    wout_p = jnp.zeros((E, OUT_PAD), jnp.float32).at[:, :out_dim].set(
        params["wout"]).astype(compute_dtype)
    bout_p = jnp.zeros((1, OUT_PAD), jnp.float32).at[:, :out_dim].set(
        params["bout"]).astype(compute_dtype)

    # Per-layer stacked weights; keep ordering in sync with the kernel signature.
    # LayerNorm params stay f32 (tiny; LN is computed in f32).
    layer_weights = [
        params["ln1_g"], params["ln1_b"],
        wqkv, bqkv,
        wo, bo,
        wg, bg, wu, bu, wd, bd,
        params["ln2_g"], params["ln2_b"],
    ]

    def layer_spec(a):
        nd = a.ndim
        return pl.BlockSpec((1,) + a.shape[1:],
                            lambda l, nd=nd: (l,) + (0,) * (nd - 1))

    def const_spec(a):
        nd = a.ndim
        return pl.BlockSpec(a.shape, lambda l, nd=nd: (0,) * nd)

    in_specs = [const_spec(x)]                       # resident across all layers
    in_specs += [layer_spec(w) for w in layer_weights]
    in_specs += [const_spec(wout_p), const_spec(bout_p)]
    out_specs = pl.BlockSpec((B, S, OUT_PAD), lambda l: (0, 0, 0))

    # ---- advisory cost estimate (weights streamed once, no B factor) ----
    ln_bytes = 4 * 4 * E                             # two LayerNorms (f32)
    w_bytes = dsize * (7 * E * E + 7 * E) + ln_bytes # per-layer weight slab
    flops = int(L * (14 * M * E * E + 4 * M * E * hd) + 2 * M * E * OUT_PAD)
    transcendentals = int(2 * L * M)                 # one rsqrt per LN row
    bytes_accessed = int(4 * M * E + 4 * M * OUT_PAD
                         + L * w_bytes
                         + dsize * (E + 1) * OUT_PAD)
    cost = pl.CostEstimate(flops=flops, transcendentals=transcendentals,
                           bytes_accessed=bytes_accessed)

    # ---- explicit VMEM budget, capped per-generation (not a fixed 64 MiB) ----
    vmem_est = (2 * w_bytes                          # double-buffered layer weights
                + 2 * 4 * M * E                      # resident x block
                + 2 * 4 * M * OUT_PAD                # resident output block
                + 2 * dsize * (E + 1) * OUT_PAD      # padded out_linear weights
                + 4 * M * E                          # activation carry scratch
                + 4 * M * (3 * E + 8 * E))           # qkv / h / attn / y temporaries
    vmem_limit = int(min(int(0.9 * _physical_vmem_bytes()),
                         max(32 * 2 ** 20, 2 * vmem_est)))

    kernel = functools.partial(_llama_kernel, B, S, head_num, compute_dtype)

    out_padded = pl.pallas_call(
        kernel,
        out_shape=jax.ShapeDtypeStruct((B, S, OUT_PAD), jnp.float32),
        grid=(L,),
        in_specs=in_specs,
        out_specs=out_specs,
        scratch_shapes=[pltpu.VMEM((M, E), jnp.float32)],
        compiler_params=pltpu.CompilerParams(
            dimension_semantics=("arbitrary",),
            vmem_limit_bytes=vmem_limit),
        cost_estimate=cost,
    )(x, *layer_weights, wout_p, bout_p)

    return out_padded[..., :out_dim]


def init_params(key, layer_num, emb_dim, out_dim=5):
    """Deterministic synthetic parameters (pre-transposed to (in, out) layout)."""
    ks = iter(jax.random.split(key, 64))
    nrm = lambda shape, s=0.1: s * jax.random.normal(next(ks), shape, jnp.float32)
    L, E = layer_num, emb_dim
    return {
        "ln1_g": 1.0 + nrm((L, 1, E)), "ln1_b": nrm((L, 1, E)),
        "wq": nrm((L, E, E)), "bq": nrm((L, 1, E)),
        "wk": nrm((L, E, E)), "bk": nrm((L, 1, E)),
        "wv": nrm((L, E, E)), "bv": nrm((L, 1, E)),
        "wo": nrm((L, E, E)), "bo": nrm((L, 1, E)),
        "wg": nrm((L, E, E)), "bg": nrm((L, 1, E)),
        "wu": nrm((L, E, E)), "bu": nrm((L, 1, E)),
        "wd": nrm((L, E, E)), "bd": nrm((L, 1, E)),
        "ln2_g": 1.0 + nrm((L, 1, E)), "ln2_b": nrm((L, 1, E)),
        "wout": nrm((E, out_dim)), "bout": nrm((1, out_dim)),
    }


def ref_forward(x, params, head_num):
    """Pure-JAX reference mirroring the PyTorch module exactly."""
    def ln(x, g, b):
        mu = x.mean(-1, keepdims=True)
        var = ((x - mu) ** 2).mean(-1, keepdims=True)
        return (x - mu) / jnp.sqrt(var + LN_EPS) * g + b

    B, S, E = x.shape
    H = head_num
    hd = E // H
    L = params["wq"].shape[0]
    for l in range(L):
        h = ln(x, params["ln1_g"][l, 0], params["ln1_b"][l, 0])
        q = h @ params["wq"][l] + params["bq"][l, 0]
        k = h @ params["wk"][l] + params["bk"][l, 0]
        v = h @ params["wv"][l] + params["bv"][l, 0]
        qh = q.reshape(B, S, H, hd).transpose(0, 2, 1, 3)
        kh = k.reshape(B, S, H, hd).transpose(0, 2, 3, 1)
        vh = v.reshape(B, S, H, hd).transpose(0, 2, 1, 3)
        attn = (qh @ kh) @ vh                      # (B, H, S, hd)
        attn = attn.transpose(0, 2, 1, 3).reshape(B, S, E)
        h = attn @ params["wo"][l] + params["bo"][l, 0]
        y0 = h @ params["wg"][l] + params["bg"][l, 0]
        y1 = (h @ params["wu"][l] + params["bu"][l, 0]) @ params["wd"][l] \
             + params["bd"][l, 0]
        h = y0 + y1
        x = ln(h, params["ln2_g"][l, 0], params["ln2_b"][l, 0])
    return x @ params["wout"] + params["bout"][0]


if __name__ == "__main__":
    layer_num, seq_len, head_num, emb_dim = 2, 8, 4, 32
    batch = 2

    key = jax.random.PRNGKey(0)
    kx, kp = jax.random.split(key)
    x = jax.random.normal(kx, (batch, seq_len, emb_dim), jnp.float32)
    params = init_params(kp, layer_num, emb_dim)

    # f32 compute path: numerically matches the reference (attention is
    # reassociated, so "close" rather than bit-identical).
    out = fake_llama_forward(x, params, head_num)
    out = jax.block_until_ready(out)

    ref = ref_forward(x, params, head_num)
    assert out.shape == (batch, seq_len, 5)
    assert jnp.allclose(out, ref, rtol=1e-4, atol=1e-4), "mismatch vs reference"

    # bf16 weight/compute path (the intended performance configuration on
    # v5e/v6e/v7x); checked for shape only since numerics intentionally differ.
    out_bf16 = fake_llama_forward(x, params, head_num,
                                  compute_dtype=jnp.bfloat16)
    out_bf16 = jax.block_until_ready(out_bf16)
    assert out_bf16.shape == (batch, seq_len, 5)

    print("KERNEL_OK")
</pallas_src>

<mosaic_0001>
module attributes {stable_mosaic.version = 11 : i64} {
  func.func @_llama_kernel(%arg0: i32, %arg1: memref<2x8x32xf32, #tpu.memory_space<vmem>>, %arg2: memref<1x1x32xf32, #tpu.memory_space<vmem>>, %arg3: memref<1x1x32xf32, #tpu.memory_space<vmem>>, %arg4: memref<1x32x96xf32, #tpu.memory_space<vmem>>, %arg5: memref<1x1x96xf32, #tpu.memory_space<vmem>>, %arg6: memref<1x32x32xf32, #tpu.memory_space<vmem>>, %arg7: memref<1x1x32xf32, #tpu.memory_space<vmem>>, %arg8: memref<1x32x32xf32, #tpu.memory_space<vmem>>, %arg9: memref<1x1x32xf32, #tpu.memory_space<vmem>>, %arg10: memref<1x32x32xf32, #tpu.memory_space<vmem>>, %arg11: memref<1x1x32xf32, #tpu.memory_space<vmem>>, %arg12: memref<1x32x32xf32, #tpu.memory_space<vmem>>, %arg13: memref<1x1x32xf32, #tpu.memory_space<vmem>>, %arg14: memref<1x1x32xf32, #tpu.memory_space<vmem>>, %arg15: memref<1x1x32xf32, #tpu.memory_space<vmem>>, %arg16: memref<32x128xf32, #tpu.memory_space<vmem>>, %arg17: memref<1x128xf32, #tpu.memory_space<vmem>>, %arg18: memref<2x8x128xf32, #tpu.memory_space<vmem>>, %arg19: memref<16x32xf32, #tpu.memory_space<vmem>>) attributes {dimension_semantics = [#tpu.dimension_semantics<arbitrary>], iteration_bounds = array<i64: 2>, scalar_prefetch = 0 : i64, scratch_operands = 1 : i64, tpu.core_type = #tpu.core_type<tc>, window_params = [{pipeline_mode = #tpu.pipeline_mode<synchronous>, transform_indices = @transform_0, window_bounds = array<i64: 2, 8, 32>}, {transform_indices = @transform_1, window_bounds = array<i64: 1, 1, 32>}, {transform_indices = @transform_2, window_bounds = array<i64: 1, 1, 32>}, {transform_indices = @transform_3, window_bounds = array<i64: 1, 32, 96>}, {transform_indices = @transform_4, window_bounds = array<i64: 1, 1, 96>}, {transform_indices = @transform_5, window_bounds = array<i64: 1, 32, 32>}, {transform_indices = @transform_6, window_bounds = array<i64: 1, 1, 32>}, {transform_indices = @transform_7, window_bounds = array<i64: 1, 32, 32>}, {transform_indices = @transform_8, window_bounds = array<i64: 1, 1, 32>}, {transform_indices = @transform_9, window_bounds = array<i64: 1, 32, 32>}, {transform_indices = @transform_10, window_bounds = array<i64: 1, 1, 32>}, {transform_indices = @transform_11, window_bounds = array<i64: 1, 32, 32>}, {transform_indices = @transform_12, window_bounds = array<i64: 1, 1, 32>}, {transform_indices = @transform_13, window_bounds = array<i64: 1, 1, 32>}, {transform_indices = @transform_14, window_bounds = array<i64: 1, 1, 32>}, {pipeline_mode = #tpu.pipeline_mode<synchronous>, transform_indices = @transform_15, window_bounds = array<i64: 32, 128>}, {pipeline_mode = #tpu.pipeline_mode<synchronous>, transform_indices = @transform_16, window_bounds = array<i64: 1, 128>}, {pipeline_mode = #tpu.pipeline_mode<synchronous>, transform_indices = @transform_17, window_bounds = array<i64: 2, 8, 128>}]} {
    %c0_i32 = arith.constant 0 : i32
    %0 = arith.cmpi eq, %arg0, %c0_i32 : i32
    %1 = arith.extui %0 : i1 to i32
    %c0_i32_0 = arith.constant 0 : i32
    %2 = arith.cmpi ne, %1, %c0_i32_0 : i32
    scf.if %2 {
      %c0_65 = arith.constant 0 : index
      %c0_66 = arith.constant 0 : index
      %c0_67 = arith.constant 0 : index
      %126 = vector.load %arg1[%c0_65, %c0_66, %c0_67] : memref<2x8x32xf32, #tpu.memory_space<vmem>>, vector<2x8x32xf32>
      %127 = vector.shape_cast %126 : vector<2x8x32xf32> to vector<16x32xf32>
      %c0_68 = arith.constant 0 : index
      %c0_69 = arith.constant 0 : index
      %128 = vector.load %arg19[%c0_68, %c0_69] : memref<16x32xf32, #tpu.memory_space<vmem>>, vector<16x32xf32>
      tpu.vector_store %arg19[%c0_68, %c0_69], %127 {strides = array<i32>} : memref<16x32xf32, #tpu.memory_space<vmem>>, vector<16x32xf32>,
    } else {
    }
    %c0 = arith.constant 0 : index
    %c0_1 = arith.constant 0 : index
    %3 = vector.load %arg19[%c0, %c0_1] : memref<16x32xf32, #tpu.memory_space<vmem>>, vector<16x32xf32>
    %c0_2 = arith.constant 0 : index
    %c0_3 = arith.constant 0 : index
    %c0_4 = arith.constant 0 : index
    %4 = vector.load %arg2[%c0_2, %c0_3, %c0_4] : memref<1x1x32xf32, #tpu.memory_space<vmem>>, vector<1x1x32xf32>
    %5 = vector.shape_cast %4 : vector<1x1x32xf32> to vector<1x32xf32>
    %c0_5 = arith.constant 0 : index
    %c0_6 = arith.constant 0 : index
    %c0_7 = arith.constant 0 : index
    %6 = vector.load %arg3[%c0_5, %c0_6, %c0_7] : memref<1x1x32xf32, #tpu.memory_space<vmem>>, vector<1x1x32xf32>
    %7 = vector.shape_cast %6 : vector<1x1x32xf32> to vector<1x32xf32>
    %cst = arith.constant dense<0.000000e+00> : vector<16xf32>
    %8 = vector.multi_reduction <add>, %3, %cst [1] : vector<16x32xf32> to vector<16xf32>
    %9 = vector.shape_cast %8 : vector<16xf32> to vector<16x1xf32>
    %cst_8 = arith.constant 3.200000e+01 : f32
    %10 = vector.broadcast %cst_8 : f32 to vector<16x1xf32>
    %11 = arith.divf %9, %10 : vector<16x1xf32>
    %12 = vector.broadcast %11 : vector<16x1xf32> to vector<16x32xf32>
    %13 = arith.subf %3, %12 : vector<16x32xf32>
    %14 = arith.mulf %13, %13 : vector<16x32xf32>
    %cst_9 = arith.constant dense<0.000000e+00> : vector<16xf32>
    %15 = vector.multi_reduction <add>, %14, %cst_9 [1] : vector<16x32xf32> to vector<16xf32>
    %16 = vector.shape_cast %15 : vector<16xf32> to vector<16x1xf32>
    %cst_10 = arith.constant 3.200000e+01 : f32
    %17 = vector.broadcast %cst_10 : f32 to vector<16x1xf32>
    %18 = arith.divf %16, %17 : vector<16x1xf32>
    %19 = vector.broadcast %11 : vector<16x1xf32> to vector<16x32xf32>
    %20 = arith.subf %3, %19 : vector<16x32xf32>
    %cst_11 = arith.constant 9.99999974E-6 : f32
    %21 = vector.broadcast %cst_11 : f32 to vector<16x1xf32>
    %22 = arith.addf %18, %21 : vector<16x1xf32>
    %23 = math.rsqrt %22 : vector<16x1xf32>
    %24 = vector.broadcast %23 : vector<16x1xf32> to vector<16x32xf32>
    %25 = arith.mulf %20, %24 : vector<16x32xf32>
    %26 = vector.broadcast %5 : vector<1x32xf32> to vector<16x32xf32>
    %27 = arith.mulf %25, %26 : vector<16x32xf32>
    %28 = vector.broadcast %7 : vector<1x32xf32> to vector<16x32xf32>
    %29 = arith.addf %27, %28 : vector<16x32xf32>
    %c0_12 = arith.constant 0 : index
    %c0_13 = arith.constant 0 : index
    %c0_14 = arith.constant 0 : index
    %30 = vector.load %arg4[%c0_12, %c0_13, %c0_14] : memref<1x32x96xf32, #tpu.memory_space<vmem>>, vector<1x32x96xf32>
    %31 = vector.shape_cast %30 : vector<1x32x96xf32> to vector<32x96xf32>
    %c0_15 = arith.constant 0 : index
    %c0_16 = arith.constant 0 : index
    %c0_17 = arith.constant 0 : index
    %32 = vector.load %arg5[%c0_15, %c0_16, %c0_17] : memref<1x1x96xf32, #tpu.memory_space<vmem>>, vector<1x1x96xf32>
    %33 = vector.shape_cast %32 : vector<1x1x96xf32> to vector<1x96xf32>
    %cst_18 = arith.constant dense<0.000000e+00> : vector<16x96xf32>
    %34 = tpu.matmul %29, %31, %cst_18 {dimension_numbers = #tpu.dot_dimension_numbers<[1], [0], [0], [1], [0, 0, 1, 1], [], []>} : vector<16x32xf32>, vector<32x96xf32>, vector<16x96xf32> -> vector<16x96xf32>
    %35 = vector.broadcast %33 : vector<1x96xf32> to vector<16x96xf32>
    %36 = arith.addf %34, %35 : vector<16x96xf32>
    %37 = vector.extract_strided_slice %36 {offsets = [0, 0], sizes = [16, 32], strides = [1, 1]} : vector<16x96xf32> to vector<16x32xf32>
    %38 = vector.extract_strided_slice %36 {offsets = [0, 32], sizes = [16, 32], strides = [1, 1]} : vector<16x96xf32> to vector<16x32xf32>
    %39 = vector.extract_strided_slice %36 {offsets = [0, 64], sizes = [16, 32], strides = [1, 1]} : vector<16x96xf32> to vector<16x32xf32>
    %40 = vector.extract_strided_slice %37 {offsets = [0, 0], sizes = [8, 32], strides = [1, 1]} : vector<16x32xf32> to vector<8x32xf32>
    %41 = vector.shape_cast %40 : vector<8x32xf32> to vector<8x4x8xf32>
    %42 = tpu.transpose %41, [1, 0, 2] : vector<8x4x8xf32> -> vector<4x8x8xf32>
    %43 = vector.extract_strided_slice %38 {offsets = [0, 0], sizes = [8, 32], strides = [1, 1]} : vector<16x32xf32> to vector<8x32xf32>
    %44 = vector.shape_cast %43 : vector<8x32xf32> to vector<8x4x8xf32>
    %45 = tpu.transpose %44, [1, 0, 2] : vector<8x4x8xf32> -> vector<4x8x8xf32>
    %46 = vector.extract_strided_slice %39 {offsets = [0, 0], sizes = [8, 32], strides = [1, 1]} : vector<16x32xf32> to vector<8x32xf32>
    %47 = vector.shape_cast %46 : vector<8x32xf32> to vector<8x4x8xf32>
    %48 = tpu.transpose %47, [1, 0, 2] : vector<8x4x8xf32> -> vector<4x8x8xf32>
    "tpu.trace_start"() <{level = 10 : i32, message = "hkd,hke->hde"}> : () -> ()
    %cst_19 = arith.constant dense<0.000000e+00> : vector<4x8x8xf32>
    %49 = tpu.matmul %45, %48, %cst_19 {dimension_numbers = #tpu.dot_dimension_numbers<[1], [1], [2], [2], [0, 0, 0, 2, 1, 2], [0], [0]>} : vector<4x8x8xf32>, vector<4x8x8xf32>, vector<4x8x8xf32> -> vector<4x8x8xf32>
    "tpu.trace_stop"() : () -> ()
    "tpu.trace_start"() <{level = 10 : i32, message = "hqd,hde->hqe"}> : () -> ()
    %cst_20 = arith.constant dense<0.000000e+00> : vector<4x8x8xf32>
    %50 = tpu.matmul %42, %49, %cst_20 {dimension_numbers = #tpu.dot_dimension_numbers<[2], [1], [1], [2], [0, 0, 0, 1, 1, 2], [0], [0]>} : vector<4x8x8xf32>, vector<4x8x8xf32>, vector<4x8x8xf32> -> vector<4x8x8xf32>
    "tpu.trace_stop"() : () -> ()
    %51 = tpu.transpose %50, [1, 0, 2] : vector<4x8x8xf32> -> vector<8x4x8xf32>
    %52 = vector.shape_cast %51 : vector<8x4x8xf32> to vector<8x32xf32>
    %53 = vector.extract_strided_slice %37 {offsets = [8, 0], sizes = [8, 32], strides = [1, 1]} : vector<16x32xf32> to vector<8x32xf32>
    %54 = vector.shape_cast %53 : vector<8x32xf32> to vector<8x4x8xf32>
    %55 = tpu.transpose %54, [1, 0, 2] : vector<8x4x8xf32> -> vector<4x8x8xf32>
    %56 = vector.extract_strided_slice %38 {offsets = [8, 0], sizes = [8, 32], strides = [1, 1]} : vector<16x32xf32> to vector<8x32xf32>
    %57 = vector.shape_cast %56 : vector<8x32xf32> to vector<8x4x8xf32>
    %58 = tpu.transpose %57, [1, 0, 2] : vector<8x4x8xf32> -> vector<4x8x8xf32>
    %59 = vector.extract_strided_slice %39 {offsets = [8, 0], sizes = [8, 32], strides = [1, 1]} : vector<16x32xf32> to vector<8x32xf32>
    %60 = vector.shape_cast %59 : vector<8x32xf32> to vector<8x4x8xf32>
    %61 = tpu.transpose %60, [1, 0, 2] : vector<8x4x8xf32> -> vector<4x8x8xf32>
    "tpu.trace_start"() <{level = 10 : i32, message = "hkd,hke->hde"}> : () -> ()
    %cst_21 = arith.constant dense<0.000000e+00> : vector<4x8x8xf32>
    %62 = tpu.matmul %58, %61, %cst_21 {dimension_numbers = #tpu.dot_dimension_numbers<[1], [1], [2], [2], [0, 0, 0, 2, 1, 2], [0], [0]>} : vector<4x8x8xf32>, vector<4x8x8xf32>, vector<4x8x8xf32> -> vector<4x8x8xf32>
    "tpu.trace_stop"() : () -> ()
    "tpu.trace_start"() <{level = 10 : i32, message = "hqd,hde->hqe"}> : () -> ()
    %cst_22 = arith.constant dense<0.000000e+00> : vector<4x8x8xf32>
    %63 = tpu.matmul %55, %62, %cst_22 {dimension_numbers = #tpu.dot_dimension_numbers<[2], [1], [1], [2], [0, 0, 0, 1, 1, 2], [0], [0]>} : vector<4x8x8xf32>, vector<4x8x8xf32>, vector<4x8x8xf32> -> vector<4x8x8xf32>
    "tpu.trace_stop"() : () -> ()
    %64 = tpu.transpose %63, [1, 0, 2] : vector<4x8x8xf32> -> vector<8x4x8xf32>
    %65 = vector.shape_cast %64 : vector<8x4x8xf32> to vector<8x32xf32>
    %66 = tpu.concatenate %52, %65 in 0 : vector<8x32xf32>, vector<8x32xf32> -> vector<16x32xf32>
    %c0_23 = arith.constant 0 : index
    %c0_24 = arith.constant 0 : index
    %c0_25 = arith.constant 0 : index
    %67 = vector.load %arg6[%c0_23, %c0_24, %c0_25] : memref<1x32x32xf32, #tpu.memory_space<vmem>>, vector<1x32x32xf32>
    %68 = vector.shape_cast %67 : vector<1x32x32xf32> to vector<32x32xf32>
    %c0_26 = arith.constant 0 : index
    %c0_27 = arith.constant 0 : index
    %c0_28 = arith.constant 0 : index
    %69 = vector.load %arg7[%c0_26, %c0_27, %c0_28] : memref<1x1x32xf32, #tpu.memory_space<vmem>>, vector<1x1x32xf32>
    %70 = vector.shape_cast %69 : vector<1x1x32xf32> to vector<1x32xf32>
    %cst_29 = arith.constant dense<0.000000e+00> : vector<16x32xf32>
    %71 = tpu.matmul %66, %68, %cst_29 {dimension_numbers = #tpu.dot_dimension_numbers<[1], [0], [0], [1], [0, 0, 1, 1], [], []>} : vector<16x32xf32>, vector<32x32xf32>, vector<16x32xf32> -> vector<16x32xf32>
    %72 = vector.broadcast %70 : vector<1x32xf32> to vector<16x32xf32>
    %73 = arith.addf %71, %72 : vector<16x32xf32>
    %c0_30 = arith.constant 0 : index
    %c0_31 = arith.constant 0 : index
    %c0_32 = arith.constant 0 : index
    %74 = vector.load %arg8[%c0_30, %c0_31, %c0_32] : memref<1x32x32xf32, #tpu.memory_space<vmem>>, vector<1x32x32xf32>
    %75 = vector.shape_cast %74 : vector<1x32x32xf32> to vector<32x32xf32>
    %cst_33 = arith.constant dense<0.000000e+00> : vector<16x32xf32>
    %76 = tpu.matmul %73, %75, %cst_33 {dimension_numbers = #tpu.dot_dimension_numbers<[1], [0], [0], [1], [0, 0, 1, 1], [], []>} : vector<16x32xf32>, vector<32x32xf32>, vector<16x32xf32> -> vector<16x32xf32>
    %c0_34 = arith.constant 0 : index
    %c0_35 = arith.constant 0 : index
    %c0_36 = arith.constant 0 : index
    %77 = vector.load %arg9[%c0_34, %c0_35, %c0_36] : memref<1x1x32xf32, #tpu.memory_space<vmem>>, vector<1x1x32xf32>
    %78 = vector.shape_cast %77 : vector<1x1x32xf32> to vector<1x32xf32>
    %79 = vector.broadcast %78 : vector<1x32xf32> to vector<16x32xf32>
    %80 = arith.addf %76, %79 : vector<16x32xf32>
    %c0_37 = arith.constant 0 : index
    %c0_38 = arith.constant 0 : index
    %c0_39 = arith.constant 0 : index
    %81 = vector.load %arg10[%c0_37, %c0_38, %c0_39] : memref<1x32x32xf32, #tpu.memory_space<vmem>>, vector<1x32x32xf32>
    %82 = vector.shape_cast %81 : vector<1x32x32xf32> to vector<32x32xf32>
    %cst_40 = arith.constant dense<0.000000e+00> : vector<16x32xf32>
    %83 = tpu.matmul %73, %82, %cst_40 {dimension_numbers = #tpu.dot_dimension_numbers<[1], [0], [0], [1], [0, 0, 1, 1], [], []>} : vector<16x32xf32>, vector<32x32xf32>, vector<16x32xf32> -> vector<16x32xf32>
    %c0_41 = arith.constant 0 : index
    %c0_42 = arith.constant 0 : index
    %c0_43 = arith.constant 0 : index
    %84 = vector.load %arg11[%c0_41, %c0_42, %c0_43] : memref<1x1x32xf32, #tpu.memory_space<vmem>>, vector<1x1x32xf32>
    %85 = vector.shape_cast %84 : vector<1x1x32xf32> to vector<1x32xf32>
    %86 = vector.broadcast %85 : vector<1x32xf32> to vector<16x32xf32>
    %87 = arith.addf %83, %86 : vector<16x32xf32>
    %c0_44 = arith.constant 0 : index
    %c0_45 = arith.constant 0 : index
    %c0_46 = arith.constant 0 : index
    %88 = vector.load %arg12[%c0_44, %c0_45, %c0_46] : memref<1x32x32xf32, #tpu.memory_space<vmem>>, vector<1x32x32xf32>
    %89 = vector.shape_cast %88 : vector<1x32x32xf32> to vector<32x32xf32>
    %c0_47 = arith.constant 0 : index
    %c0_48 = arith.constant 0 : index
    %c0_49 = arith.constant 0 : index
    %90 = vector.load %arg13[%c0_47, %c0_48, %c0_49] : memref<1x1x32xf32, #tpu.memory_space<vmem>>, vector<1x1x32xf32>
    %91 = vector.shape_cast %90 : vector<1x1x32xf32> to vector<1x32xf32>
    %cst_50 = arith.constant dense<0.000000e+00> : vector<16x32xf32>
    %92 = tpu.matmul %87, %89, %cst_50 {dimension_numbers = #tpu.dot_dimension_numbers<[1], [0], [0], [1], [0, 0, 1, 1], [], []>} : vector<16x32xf32>, vector<32x32xf32>, vector<16x32xf32> -> vector<16x32xf32>
    %93 = vector.broadcast %91 : vector<1x32xf32> to vector<16x32xf32>
    %94 = arith.addf %92, %93 : vector<16x32xf32>
    %95 = arith.addf %80, %94 : vector<16x32xf32>
    %c0_51 = arith.constant 0 : index
    %c0_52 = arith.constant 0 : index
    %c0_53 = arith.constant 0 : index
    %96 = vector.load %arg14[%c0_51, %c0_52, %c0_53] : memref<1x1x32xf32, #tpu.memory_space<vmem>>, vector<1x1x32xf32>
    %97 = vector.shape_cast %96 : vector<1x1x32xf32> to vector<1x32xf32>
    %c0_54 = arith.constant 0 : index
    %c0_55 = arith.constant 0 : index
    %c0_56 = arith.constant 0 : index
    %98 = vector.load %arg15[%c0_54, %c0_55, %c0_56] : memref<1x1x32xf32, #tpu.memory_space<vmem>>, vector<1x1x32xf32>
    %99 = vector.shape_cast %98 : vector<1x1x32xf32> to vector<1x32xf32>
    %cst_57 = arith.constant dense<0.000000e+00> : vector<16xf32>
    %100 = vector.multi_reduction <add>, %95, %cst_57 [1] : vector<16x32xf32> to vector<16xf32>
    %101 = vector.shape_cast %100 : vector<16xf32> to vector<16x1xf32>
    %cst_58 = arith.constant 3.200000e+01 : f32
    %102 = vector.broadcast %cst_58 : f32 to vector<16x1xf32>
    %103 = arith.divf %101, %102 : vector<16x1xf32>
    %104 = vector.broadcast %103 : vector<16x1xf32> to vector<16x32xf32>
    %105 = arith.subf %95, %104 : vector<16x32xf32>
    %106 = arith.mulf %105, %105 : vector<16x32xf32>
    %cst_59 = arith.constant dense<0.000000e+00> : vector<16xf32>
    %107 = vector.multi_reduction <add>, %106, %cst_59 [1] : vector<16x32xf32> to vector<16xf32>
    %108 = vector.shape_cast %107 : vector<16xf32> to vector<16x1xf32>
    %cst_60 = arith.constant 3.200000e+01 : f32
    %109 = vector.broadcast %cst_60 : f32 to vector<16x1xf32>
    %110 = arith.divf %108, %109 : vector<16x1xf32>
    %111 = vector.broadcast %103 : vector<16x1xf32> to vector<16x32xf32>
    %112 = arith.subf %95, %111 : vector<16x32xf32>
    %cst_61 = arith.constant 9.99999974E-6 : f32
    %113 = vector.broadcast %cst_61 : f32 to vector<16x1xf32>
    %114 = arith.addf %110, %113 : vector<16x1xf32>
    %115 = math.rsqrt %114 : vector<16x1xf32>
    %116 = vector.broadcast %115 : vector<16x1xf32> to vector<16x32xf32>
    %117 = arith.mulf %112, %116 : vector<16x32xf32>
    %118 = vector.broadcast %97 : vector<1x32xf32> to vector<16x32xf32>
    %119 = arith.mulf %117, %118 : vector<16x32xf32>
    %120 = vector.broadcast %99 : vector<1x32xf32> to vector<16x32xf32>
    %121 = arith.addf %119, %120 : vector<16x32xf32>
    %c0_62 = arith.constant 0 : index
    %c0_63 = arith.constant 0 : index
    %122 = vector.load %arg19[%c0_62, %c0_63] : memref<16x32xf32, #tpu.memory_space<vmem>>, vector<16x32xf32>
    tpu.vector_store %arg19[%c0_62, %c0_63], %121 {strides = array<i32>} : memref<16x32xf32, #tpu.memory_space<vmem>>, vector<16x32xf32>,
    %c1_i32 = arith.constant 1 : i32
    %123 = arith.cmpi eq, %arg0, %c1_i32 : i32
    %124 = arith.extui %123 : i1 to i32
    %c0_i32_64 = arith.constant 0 : i32
    %125 = arith.cmpi ne, %124, %c0_i32_64 : i32
    scf.if %125 {
      %c0_65 = arith.constant 0 : index
      %c0_66 = arith.constant 0 : index
      %126 = vector.load %arg16[%c0_65, %c0_66] : memref<32x128xf32, #tpu.memory_space<vmem>>, vector<32x128xf32>
      %c0_67 = arith.constant 0 : index
      %c0_68 = arith.constant 0 : index
      %127 = vector.load %arg17[%c0_67, %c0_68] : memref<1x128xf32, #tpu.memory_space<vmem>>, vector<1x128xf32>
      %cst_69 = arith.constant dense<0.000000e+00> : vector<16x128xf32>
      %128 = tpu.matmul %121, %126, %cst_69 {dimension_numbers = #tpu.dot_dimension_numbers<[1], [0], [0], [1], [0, 0, 1, 1], [], []>} : vector<16x32xf32>, vector<32x128xf32>, vector<16x128xf32> -> vector<16x128xf32>
      %129 = vector.broadcast %127 : vector<1x128xf32> to vector<16x128xf32>
      %130 = arith.addf %128, %129 : vector<16x128xf32>
      %131 = vector.shape_cast %130 : vector<16x128xf32> to vector<2x8x128xf32>
      %c0_70 = arith.constant 0 : index
      %c0_71 = arith.constant 0 : index
      %c0_72 = arith.constant 0 : index
      %132 = vector.load %arg18[%c0_70, %c0_71, %c0_72] : memref<2x8x128xf32, #tpu.memory_space<vmem>>, vector<2x8x128xf32>
      tpu.vector_store %arg18[%c0_70, %c0_71, %c0_72], %131 {strides = array<i32>} : memref<2x8x128xf32, #tpu.memory_space<vmem>>, vector<2x8x128xf32>,
    } else {
    }
    return
  }
  func.func @transform_0(%arg0: i32) -> (i32, i32, i32) {
    %c0_i32 = arith.constant 0 : i32
    %c0_i32_0 = arith.constant 0 : i32
    %c0_i32_1 = arith.constant 0 : i32
    %c0_i32_2 = arith.constant 0 : i32
    return %c0_i32, %c0_i32_0, %c0_i32_1 : i32, i32, i32
  }
  func.func @transform_1(%arg0: i32) -> (i32, i32, i32) {
    %c0_i32 = arith.constant 0 : i32
    %c0_i32_0 = arith.constant 0 : i32
    %c0_i32_1 = arith.constant 0 : i32
    return %arg0, %c0_i32, %c0_i32_0 : i32, i32, i32
  }
  func.func @transform_2(%arg0: i32) -> (i32, i32, i32) {
    %c0_i32 = arith.constant 0 : i32
    %c0_i32_0 = arith.constant 0 : i32
    %c0_i32_1 = arith.constant 0 : i32
    return %arg0, %c0_i32, %c0_i32_0 : i32, i32, i32
  }
  func.func @transform_3(%arg0: i32) -> (i32, i32, i32) {
    %c0_i32 = arith.constant 0 : i32
    %c0_i32_0 = arith.constant 0 : i32
    %c0_i32_1 = arith.constant 0 : i32
    return %arg0, %c0_i32, %c0_i32_0 : i32, i32, i32
  }
  func.func @transform_4(%arg0: i32) -> (i32, i32, i32) {
    %c0_i32 = arith.constant 0 : i32
    %c0_i32_0 = arith.constant 0 : i32
    %c0_i32_1 = arith.constant 0 : i32
    return %arg0, %c0_i32, %c0_i32_0 : i32, i32, i32
  }
  func.func @transform_5(%arg0: i32) -> (i32, i32, i32) {
    %c0_i32 = arith.constant 0 : i32
    %c0_i32_0 = arith.constant 0 : i32
    %c0_i32_1 = arith.constant 0 : i32
    return %arg0, %c0_i32, %c0_i32_0 : i32, i32, i32
  }
  func.func @transform_6(%arg0: i32) -> (i32, i32, i32) {
    %c0_i32 = arith.constant 0 : i32
    %c0_i32_0 = arith.constant 0 : i32
    %c0_i32_1 = arith.constant 0 : i32
    return %arg0, %c0_i32, %c0_i32_0 : i32, i32, i32
  }
  func.func @transform_7(%arg0: i32) -> (i32, i32, i32) {
    %c0_i32 = arith.constant 0 : i32
    %c0_i32_0 = arith.constant 0 : i32
    %c0_i32_1 = arith.constant 0 : i32
    return %arg0, %c0_i32, %c0_i32_0 : i32, i32, i32
  }
  func.func @transform_8(%arg0: i32) -> (i32, i32, i32) {
    %c0_i32 = arith.constant 0 : i32
    %c0_i32_0 = arith.constant 0 : i32
    %c0_i32_1 = arith.constant 0 : i32
    return %arg0, %c0_i32, %c0_i32_0 : i32, i32, i32
  }
  func.func @transform_9(%arg0: i32) -> (i32, i32, i32) {
    %c0_i32 = arith.constant 0 : i32
    %c0_i32_0 = arith.constant 0 : i32
    %c0_i32_1 = arith.constant 0 : i32
    return %arg0, %c0_i32, %c0_i32_0 : i32, i32, i32
  }
  func.func @transform_10(%arg0: i32) -> (i32, i32, i32) {
    %c0_i32 = arith.constant 0 : i32
    %c0_i32_0 = arith.constant 0 : i32
    %c0_i32_1 = arith.constant 0 : i32
    return %arg0, %c0_i32, %c0_i32_0 : i32, i32, i32
  }
  func.func @transform_11(%arg0: i32) -> (i32, i32, i32) {
    %c0_i32 = arith.constant 0 : i32
    %c0_i32_0 = arith.constant 0 : i32
    %c0_i32_1 = arith.constant 0 : i32
    return %arg0, %c0_i32, %c0_i32_0 : i32, i32, i32
  }
  func.func @transform_12(%arg0: i32) -> (i32, i32, i32) {
    %c0_i32 = arith.constant 0 : i32
    %c0_i32_0 = arith.constant 0 : i32
    %c0_i32_1 = arith.constant 0 : i32
    return %arg0, %c0_i32, %c0_i32_0 : i32, i32, i32
  }
  func.func @transform_13(%arg0: i32) -> (i32, i32, i32) {
    %c0_i32 = arith.constant 0 : i32
    %c0_i32_0 = arith.constant 0 : i32
    %c0_i32_1 = arith.constant 0 : i32
    return %arg0, %c0_i32, %c0_i32_0 : i32, i32, i32
  }
  func.func @transform_14(%arg0: i32) -> (i32, i32, i32) {
    %c0_i32 = arith.constant 0 : i32
    %c0_i32_0 = arith.constant 0 : i32
    %c0_i32_1 = arith.constant 0 : i32
    return %arg0, %c0_i32, %c0_i32_0 : i32, i32, i32
  }
  func.func @transform_15(%arg0: i32) -> (i32, i32) {
    %c0_i32 = arith.constant 0 : i32
    %c0_i32_0 = arith.constant 0 : i32
    %c0_i32_1 = arith.constant 0 : i32
    return %c0_i32, %c0_i32_0 : i32, i32
  }
  func.func @transform_16(%arg0: i32) -> (i32, i32) {
    %c0_i32 = arith.constant 0 : i32
    %c0_i32_0 = arith.constant 0 : i32
    %c0_i32_1 = arith.constant 0 : i32
    return %c0_i32, %c0_i32_0 : i32, i32
  }
  func.func @transform_17(%arg0: i32) -> (i32, i32, i32) {
    %c0_i32 = arith.constant 0 : i32
    %c0_i32_0 = arith.constant 0 : i32
    %c0_i32_1 = arith.constant 0 : i32
    %c0_i32_2 = arith.constant 0 : i32
    return %c0_i32, %c0_i32_0, %c0_i32_1 : i32, i32, i32
  }
}

</mosaic_0001>

<llo_original>
// kernel: tpu_custom_call.1
$region0: #{tpu_custom_call.1}
  #allocation0 [shape = 'u32[]', space=smem, size = 0x4, offset = 0x4, fixed_abs, tag = 'smem constant byte address 0x4 - core index']
  #allocation1 [shape = 'u32[144,128]{1,0:T(1,128)}', space=vmem, size = 0x12000, scoped, tag = 'internal scratch']
  #allocation2 [shape = 'f32[16,32]{1,0:T(8,128)}', space=vmem, size = 0x2000, scoped, tag = 'scratch operand']
  %s0 = inlined_call_operand.hbm [shape: f32[2,8,32], index: 0, kind: input, shape index: {}]
  %s1 = inlined_call_operand.vmem [shape: f32[2,1,32], index: 1, kind: input, shape index: {}]
  %s2 = inlined_call_operand.vmem [shape: f32[2,1,32], index: 2, kind: input, shape index: {}]
  %s3 = inlined_call_operand.hbm [shape: f32[2,32,96], index: 3, kind: input, shape index: {}]
  %s4 = inlined_call_operand.vmem [shape: f32[2,1,96], index: 4, kind: input, shape index: {}]
  %s5 = inlined_call_operand.hbm [shape: f32[2,32,32], index: 5, kind: input, shape index: {}]
  %s6 = inlined_call_operand.vmem [shape: f32[2,1,32], index: 6, kind: input, shape index: {}]
  %s7 = inlined_call_operand.hbm [shape: f32[2,32,32], index: 7, kind: input, shape index: {}]
  %s8 = inlined_call_operand.vmem [shape: f32[2,1,32], index: 8, kind: input, shape index: {}]
  %s9 = inlined_call_operand.hbm [shape: f32[2,32,32], index: 9, kind: input, shape index: {}]
  %s10 = inlined_call_operand.vmem [shape: f32[2,1,32], index: 10, kind: input, shape index: {}]
  %s11 = inlined_call_operand.hbm [shape: f32[2,32,32], index: 11, kind: input, shape index: {}]
  %s12 = inlined_call_operand.vmem [shape: f32[2,1,32], index: 12, kind: input, shape index: {}]
  %s13 = inlined_call_operand.vmem [shape: f32[2,1,32], index: 13, kind: input, shape index: {}]
  %s14 = inlined_call_operand.vmem [shape: f32[2,1,32], index: 14, kind: input, shape index: {}]
  %s15 = inlined_call_operand.vmem [shape: f32[32,128], index: 15, kind: input, shape index: {}]
  %s16 = inlined_call_operand.vmem [shape: f32[1,128], index: 16, kind: input, shape index: {}]
  %s17 = inlined_call_operand.hbm [shape: f32[2,8,128], index: 17, kind: output, shape index: {}]
  %s18 = sld [smem:[#allocation0]]
  $region133: #{tpu_custom_call.1} parent=0
    _
  %s20 = ssub.s32 1, %s18
  %s21 = scalar_select 0, %s20, %s18
  $region1: #{tpu_custom_call.1} parent=0
    #allocation3 [shape = 'u8[8192]{0}', space=vmem, size = 0x2000, scoped, tag = 'input window, operand 0, single buffered']
    #allocation4 [shape = 's32[2]{0}', space=sflag, size = 0x8, scoped, tag = 'scoped memory for tpu_custom_call.1']
    #allocation5 [shape = 's32[2]{0}', space=sflag, size = 0x8, scoped, tag = 'scoped memory for tpu_custom_call.1']
    #allocation6 [shape = 'u8[32768]{0}', space=vmem, size = 0x8000, scoped, tag = 'input window, operand 3']
    #allocation7 [shape = 's32[2]{0}', space=sflag, size = 0x8, scoped, tag = 'scoped memory for tpu_custom_call.1']
    #allocation8 [shape = 'u8[32768]{0}', space=vmem, size = 0x8000, scoped, tag = 'input window, operand 5']
    #allocation9 [shape = 'u8[32768]{0}', space=vmem, size = 0x8000, scoped, tag = 'input window, operand 7']
    #allocation10 [shape = 's32[2]{0}', space=sflag, size = 0x8, scoped, tag = 'scoped memory for tpu_custom_call.1']
    #allocation11 [shape = 'u8[32768]{0}', space=vmem, size = 0x8000, scoped, tag = 'input window, operand 9']
    #allocation12 [shape = 'u8[32768]{0}', space=vmem, size = 0x8000, scoped, tag = 'input window, operand 11']
    #allocation13 [shape = 's32[2]{0}', space=sflag, size = 0x8, scoped, tag = 'scoped memory for tpu_custom_call.1']
    #allocation14 [shape = 'u8[8192]{0}', space=vmem, size = 0x2000, scoped, tag = 'output window, operand 0, single buffered']
    %22 = vsyncpa [#allocation4], 0
    %23 = vsyncpa [#allocation7], 0
    %s24 = scalar_lea.sflag [#allocation7], 1
    %25 = vsyncpa %s24, 0
    %26 = vsyncpa [#allocation10], 0
    %s27 = scalar_lea.sflag [#allocation10], 1
    %28 = vsyncpa %s27, 0
    %29 = vsyncpa [#allocation13], 0
    %s30 = scalar_lea.sflag [#allocation13], 1
    %31 = vsyncpa %s30, 0
    %32 = vsyncpa [#allocation5], 0
    loop: start=0, step=1, limit=4
    $region2: #{tpu_custom_call.1} parent=1 // loop_pre_header
      _
    $region3: #{tpu_custom_call.1} parent=1 // loop_header
      %s34 = sphi 0, %s38
      %p35 = scmp.ge.s32.totalorder %s34, 4
      %s42 = sphi 0, %s42
      %s44 = sphi 0, %s42
      %s45 = sphi 0, %s44
      %s59 = sphi 0, %s45
      %s65 = sphi 0, %s67
      %s68 = sphi 0, %s65
      %s69 = sphi 0, %s68
      %s85 = sphi 0, %s69
      %s91 = sphi 0, %s93
      %s94 = sphi 0, %s91
      %s95 = sphi 0, %s94
      %s111 = sphi 0, %s95
      %s117 = sphi 0, %s119
      %s120 = sphi 0, %s117
      %s121 = sphi 0, %s120
      %s137 = sphi 0, %s121
      %s143 = sphi 0, %s145
      %s146 = sphi 0, %s143
      %s147 = sphi 0, %s146
      %s163 = sphi 0, %s147
      %s169 = sphi 0, %s171
      %s172 = sphi 0, %s169
      %s173 = sphi 0, %s172
      %s189 = sphi 0, %s173
      %s195 = sphi 0, %s197
      %s198 = sphi 0, %s195
      %s199 = sphi 0, %s198
      %s215 = sphi 0, %s199
      %s221 = sphi 0, %s223
      %s224 = sphi 0, %s221
      %s225 = sphi 0, %s224
      %s241 = sphi 0, %s225
      %s247 = sphi 0, %s249
      %s250 = sphi 0, %s247
      %s251 = sphi 0, %s250
      %s267 = sphi 0, %s251
      %s273 = sphi 0, %s275
      %s276 = sphi 0, %s273
      %s277 = sphi 0, %s276
      %s293 = sphi 0, %s277
      %s299 = sphi 0, %s301
      %s302 = sphi 0, %s299
      %s303 = sphi 0, %s302
      %s319 = sphi 0, %s303
      %s325 = sphi 0, %s327
      %s328 = sphi 0, %s325
      %s329 = sphi 0, %s328
      %s345 = sphi 0, %s329
      %s351 = sphi 0, %s353
      %s354 = sphi 0, %s351
      %s355 = sphi 0, %s354
      %s371 = sphi 0, %s355
      %s377 = sphi 0, %s379
      %s380 = sphi 0, %s377
      %s381 = sphi 0, %s380
      %s397 = sphi 0, %s381
      %s403 = sphi 0, %s405
      %s406 = sphi 0, %s403
      %s407 = sphi 0, %s406
      %s423 = sphi 0, %s407
      %s427 = sphi 0, %s427
      %s429 = sphi 0, %s427
      %s430 = sphi 0, %s429
      %s444 = sphi 0, %s430
      %s448 = sphi 0, %s448
      %s450 = sphi 0, %s448
      %s451 = sphi 0, %s450
      %s465 = sphi 0, %s451
      %s469 = sphi 0, %s469
      %s471 = sphi 0, %s469
      %s472 = sphi 0, %s471
      %s486 = sphi 0, %s472
    $region4: #{tpu_custom_call.1} parent=1 // loop_header_branch
      %37 = sbr.rel (%p35) target = $region8
    $region5: #{tpu_custom_call.1} parent=1 // loop_body
      %s39 = ssub.s32 %s34, 1
      %s40 = ssub.s32 %s34, 2
      %s41 = sadd.s32 %s34, 1
      %s43 = sadd.s32 %s42, 1
      %p46 = scmp.eq.s32.totalorder %s34, 1
      %p47 = scmp.ne.s32.totalorder %s42, %s44
      %p48 = scmp.eq.s32.totalorder %s34, 0
      %p49 = por %p47, %p48
      %p50 = scmp.ne.s32.totalorder %s42, %s44
      %p51 = scmp.eq.s32.totalorder %s39, 1
      %p52 = por %p50, %p51
      %p53 = scmp.ne.s32.totalorder %s44, %s45
      %p54 = scmp.eq.s32.totalorder %s39, 0
      %p55 = por %p53, %p54
      %p56 = scmp.ne.s32.totalorder %s44, %s45
      %p57 = scmp.eq.s32.totalorder %s40, 1
      %p58 = por %p56, %p57
      %p60 = scmp.ne.s32.totalorder %s45, %s59
      %p61 = scmp.eq.s32.totalorder %s40, 0
      %p62 = por %p60, %p61
      %s63 = ssub.s32 %s34, %s41
      %p64 = scmp.eq.s32.totalorder %s63, 0
      %s66 = sadd.s32 %s65, 1
      %s67 = scalar_select %p64, %s65, %s66
      %p70 = pneg %p64
      %p71 = scmp.eq.s32.totalorder %s34, 1
      %p72 = por %p70, %p71
      %p73 = scmp.ne.s32.totalorder %s65, %s68
      %p74 = scmp.eq.s32.totalorder %s34, 0
      %p75 = por %p73, %p74
      %p76 = scmp.ne.s32.totalorder %s65, %s68
      %p77 = scmp.eq.s32.totalorder %s39, 1
      %p78 = por %p76, %p77
      %p79 = scmp.ne.s32.totalorder %s68, %s69
      %p80 = scmp.eq.s32.totalorder %s39, 0
      %p81 = por %p79, %p80
      %p82 = scmp.ne.s32.totalorder %s68, %s69
      %p83 = scmp.eq.s32.totalorder %s40, 1
      %p84 = por %p82, %p83
      %p86 = scmp.ne.s32.totalorder %s69, %s85
      %p87 = scmp.eq.s32.totalorder %s40, 0
      %p88 = por %p86, %p87
      %s89 = ssub.s32 %s34, %s41
      %p90 = scmp.eq.s32.totalorder %s89, 0
      %s92 = sadd.s32 %s91, 1
      %s93 = scalar_select %p90, %s91, %s92
      %p96 = pneg %p90
      %p97 = scmp.eq.s32.totalorder %s34, 1
      %p98 = por %p96, %p97
      %p99 = scmp.ne.s32.totalorder %s91, %s94
      %p100 = scmp.eq.s32.totalorder %s34, 0
      %p101 = por %p99, %p100
      %p102 = scmp.ne.s32.totalorder %s91, %s94
      %p103 = scmp.eq.s32.totalorder %s39, 1
      %p104 = por %p102, %p103
      %p105 = scmp.ne.s32.totalorder %s94, %s95
      %p106 = scmp.eq.s32.totalorder %s39, 0
      %p107 = por %p105, %p106
      %p108 = scmp.ne.s32.totalorder %s94, %s95
      %p109 = scmp.eq.s32.totalorder %s40, 1
      %p110 = por %p108, %p109
      %p112 = scmp.ne.s32.totalorder %s95, %s111
      %p113 = scmp.eq.s32.totalorder %s40, 0
      %p114 = por %p112, %p113
      %s115 = ssub.s32 %s34, %s41
      %p116 = scmp.eq.s32.totalorder %s115, 0
      %s118 = sadd.s32 %s117, 1
      %s119 = scalar_select %p116, %s117, %s118
      %p122 = pneg %p116
      %p123 = scmp.eq.s32.totalorder %s34, 1
      %p124 = por %p122, %p123
      %p125 = scmp.ne.s32.totalorder %s117, %s120
      %p126 = scmp.eq.s32.totalorder %s34, 0
      %p127 = por %p125, %p126
      %p128 = scmp.ne.s32.totalorder %s117, %s120
      %p129 = scmp.eq.s32.totalorder %s39, 1
      %p130 = por %p128, %p129
      %p131 = scmp.ne.s32.totalorder %s120, %s121
      %p132 = scmp.eq.s32.totalorder %s39, 0
      %p133 = por %p131, %p132
      %p134 = scmp.ne.s32.totalorder %s120, %s121
      %p135 = scmp.eq.s32.totalorder %s40, 1
      %p136 = por %p134, %p135
      %p138 = scmp.ne.s32.totalorder %s121, %s137
      %p139 = scmp.eq.s32.totalorder %s40, 0
      %p140 = por %p138, %p139
      %s141 = ssub.s32 %s34, %s41
      %p142 = scmp.eq.s32.totalorder %s141, 0
      %s144 = sadd.s32 %s143, 1
      %s145 = scalar_select %p142, %s143, %s144
      %p148 = pneg %p142
      %p149 = scmp.eq.s32.totalorder %s34, 1
      %p150 = por %p148, %p149
      %p151 = scmp.ne.s32.totalorder %s143, %s146
      %p152 = scmp.eq.s32.totalorder %s34, 0
      %p153 = por %p151, %p152
      %p154 = scmp.ne.s32.totalorder %s143, %s146
      %p155 = scmp.eq.s32.totalorder %s39, 1
      %p156 = por %p154, %p155
      %p157 = scmp.ne.s32.totalorder %s146, %s147
      %p158 = scmp.eq.s32.totalorder %s39, 0
      %p159 = por %p157, %p158
      %p160 = scmp.ne.s32.totalorder %s146, %s147
      %p161 = scmp.eq.s32.totalorder %s40, 1
      %p162 = por %p160, %p161
      %p164 = scmp.ne.s32.totalorder %s147, %s163
      %p165 = scmp.eq.s32.totalorder %s40, 0
      %p166 = por %p164, %p165
      %s167 = ssub.s32 %s34, %s41
      %p168 = scmp.eq.s32.totalorder %s167, 0
      %s170 = sadd.s32 %s169, 1
      %s171 = scalar_select %p168, %s169, %s170
      %p174 = pneg %p168
      %p175 = scmp.eq.s32.totalorder %s34, 1
      %p176 = por %p174, %p175
      %p177 = scmp.ne.s32.totalorder %s169, %s172
      %p178 = scmp.eq.s32.totalorder %s34, 0
      %p179 = por %p177, %p178
      %p180 = scmp.ne.s32.totalorder %s169, %s172
      %p181 = scmp.eq.s32.totalorder %s39, 1
      %p182 = por %p180, %p181
      %p183 = scmp.ne.s32.totalorder %s172, %s173
      %p184 = scmp.eq.s32.totalorder %s39, 0
      %p185 = por %p183, %p184
      %p186 = scmp.ne.s32.totalorder %s172, %s173
      %p187 = scmp.eq.s32.totalorder %s40, 1
      %p188 = por %p186, %p187
      %p190 = scmp.ne.s32.totalorder %s173, %s189
      %p191 = scmp.eq.s32.totalorder %s40, 0
      %p192 = por %p190, %p191
      %s193 = ssub.s32 %s34, %s41
      %p194 = scmp.eq.s32.totalorder %s193, 0
      %s196 = sadd.s32 %s195, 1
      %s197 = scalar_select %p194, %s195, %s196
      %p200 = pneg %p194
      %p201 = scmp.eq.s32.totalorder %s34, 1
      %p202 = por %p200, %p201
      %p203 = scmp.ne.s32.totalorder %s195, %s198
      %p204 = scmp.eq.s32.totalorder %s34, 0
      %p205 = por %p203, %p204
      %p206 = scmp.ne.s32.totalorder %s195, %s198
      %p207 = scmp.eq.s32.totalorder %s39, 1
      %p208 = por %p206, %p207
      %p209 = scmp.ne.s32.totalorder %s198, %s199
      %p210 = scmp.eq.s32.totalorder %s39, 0
      %p211 = por %p209, %p210
      %p212 = scmp.ne.s32.totalorder %s198, %s199
      %p213 = scmp.eq.s32.totalorder %s40, 1
      %p214 = por %p212, %p213
      %p216 = scmp.ne.s32.totalorder %s199, %s215
      %p217 = scmp.eq.s32.totalorder %s40, 0
      %p218 = por %p216, %p217
      %s219 = ssub.s32 %s34, %s41
      %p220 = scmp.eq.s32.totalorder %s219, 0
      %s222 = sadd.s32 %s221, 1
      %s223 = scalar_select %p220, %s221, %s222
      %p226 = pneg %p220
      %p227 = scmp.eq.s32.totalorder %s34, 1
      %p228 = por %p226, %p227
      %p229 = scmp.ne.s32.totalorder %s221, %s224
      %p230 = scmp.eq.s32.totalorder %s34, 0
      %p231 = por %p229, %p230
      %p232 = scmp.ne.s32.totalorder %s221, %s224
      %p233 = scmp.eq.s32.totalorder %s39, 1
      %p234 = por %p232, %p233
      %p235 = scmp.ne.s32.totalorder %s224, %s225
      %p236 = scmp.eq.s32.totalorder %s39, 0
      %p237 = por %p235, %p236
      %p238 = scmp.ne.s32.totalorder %s224, %s225
      %p239 = scmp.eq.s32.totalorder %s40, 1
      %p240 = por %p238, %p239
      %p242 = scmp.ne.s32.totalorder %s225, %s241
      %p243 = scmp.eq.s32.totalorder %s40, 0
      %p244 = por %p242, %p243
      %s245 = ssub.s32 %s34, %s41
      %p246 = scmp.eq.s32.totalorder %s245, 0
      %s248 = sadd.s32 %s247, 1
      %s249 = scalar_select %p246, %s247, %s248
      %p252 = pneg %p246
      %p253 = scmp.eq.s32.totalorder %s34, 1
      %p254 = por %p252, %p253
      %p255 = scmp.ne.s32.totalorder %s247, %s250
      %p256 = scmp.eq.s32.totalorder %s34, 0
      %p257 = por %p255, %p256
      %p258 = scmp.ne.s32.totalorder %s247, %s250
      %p259 = scmp.eq.s32.totalorder %s39, 1
      %p260 = por %p258, %p259
      %p261 = scmp.ne.s32.totalorder %s250, %s251
      %p262 = scmp.eq.s32.totalorder %s39, 0
      %p263 = por %p261, %p262
      %p264 = scmp.ne.s32.totalorder %s250, %s251
      %p265 = scmp.eq.s32.totalorder %s40, 1
      %p266 = por %p264, %p265
      %p268 = scmp.ne.s32.totalorder %s251, %s267
      %p269 = scmp.eq.s32.totalorder %s40, 0
      %p270 = por %p268, %p269
      %s271 = ssub.s32 %s34, %s41
      %p272 = scmp.eq.s32.totalorder %s271, 0
      %s274 = sadd.s32 %s273, 1
      %s275 = scalar_select %p272, %s273, %s274
      %p278 = pneg %p272
      %p279 = scmp.eq.s32.totalorder %s34, 1
      %p280 = por %p278, %p279
      %p281 = scmp.ne.s32.totalorder %s273, %s276
      %p282 = scmp.eq.s32.totalorder %s34, 0
      %p283 = por %p281, %p282
      %p284 = scmp.ne.s32.totalorder %s273, %s276
      %p285 = scmp.eq.s32.totalorder %s39, 1
      %p286 = por %p284, %p285
      %p287 = scmp.ne.s32.totalorder %s276, %s277
      %p288 = scmp.eq.s32.totalorder %s39, 0
      %p289 = por %p287, %p288
      %p290 = scmp.ne.s32.totalorder %s276, %s277
      %p291 = scmp.eq.s32.totalorder %s40, 1
      %p292 = por %p290, %p291
      %p294 = scmp.ne.s32.totalorder %s277, %s293
      %p295 = scmp.eq.s32.totalorder %s40, 0
      %p296 = por %p294, %p295
      %s297 = ssub.s32 %s34, %s41
      %p298 = scmp.eq.s32.totalorder %s297, 0
      %s300 = sadd.s32 %s299, 1
      %s301 = scalar_select %p298, %s299, %s300
      %p304 = pneg %p298
      %p305 = scmp.eq.s32.totalorder %s34, 1
      %p306 = por %p304, %p305
      %p307 = scmp.ne.s32.totalorder %s299, %s302
      %p308 = scmp.eq.s32.totalorder %s34, 0
      %p309 = por %p307, %p308
      %p310 = scmp.ne.s32.totalorder %s299, %s302
      %p311 = scmp.eq.s32.totalorder %s39, 1
      %p312 = por %p310, %p311
      %p313 = scmp.ne.s32.totalorder %s302, %s303
      %p314 = scmp.eq.s32.totalorder %s39, 0
      %p315 = por %p313, %p314
      %p316 = scmp.ne.s32.totalorder %s302, %s303
      %p317 = scmp.eq.s32.totalorder %s40, 1
      %p318 = por %p316, %p317
      %p320 = scmp.ne.s32.totalorder %s303, %s319
      %p321 = scmp.eq.s32.totalorder %s40, 0
      %p322 = por %p320, %p321
      %s323 = ssub.s32 %s34, %s41
      %p324 = scmp.eq.s32.totalorder %s323, 0
      %s326 = sadd.s32 %s325, 1
      %s327 = scalar_select %p324, %s325, %s326
      %p330 = pneg %p324
      %p331 = scmp.eq.s32.totalorder %s34, 1
      %p332 = por %p330, %p331
      %p333 = scmp.ne.s32.totalorder %s325, %s328
      %p334 = scmp.eq.s32.totalorder %s34, 0
      %p335 = por %p333, %p334
      %p336 = scmp.ne.s32.totalorder %s325, %s328
      %p337 = scmp.eq.s32.totalorder %s39, 1
      %p338 = por %p336, %p337
      %p339 = scmp.ne.s32.totalorder %s328, %s329
      %p340 = scmp.eq.s32.totalorder %s39, 0
      %p341 = por %p339, %p340
      %p342 = scmp.ne.s32.totalorder %s328, %s329
      %p343 = scmp.eq.s32.totalorder %s40, 1
      %p344 = por %p342, %p343
      %p346 = scmp.ne.s32.totalorder %s329, %s345
      %p347 = scmp.eq.s32.totalorder %s40, 0
      %p348 = por %p346, %p347
      %s349 = ssub.s32 %s34, %s41
      %p350 = scmp.eq.s32.totalorder %s349, 0
      %s352 = sadd.s32 %s351, 1
      %s353 = scalar_select %p350, %s351, %s352
      %p356 = pneg %p350
      %p357 = scmp.eq.s32.totalorder %s34, 1
      %p358 = por %p356, %p357
      %p359 = scmp.ne.s32.totalorder %s351, %s354
      %p360 = scmp.eq.s32.totalorder %s34, 0
      %p361 = por %p359, %p360
      %p362 = scmp.ne.s32.totalorder %s351, %s354
      %p363 = scmp.eq.s32.totalorder %s39, 1
      %p364 = por %p362, %p363
      %p365 = scmp.ne.s32.totalorder %s354, %s355
      %p366 = scmp.eq.s32.totalorder %s39, 0
      %p367 = por %p365, %p366
      %p368 = scmp.ne.s32.totalorder %s354, %s355
      %p369 = scmp.eq.s32.totalorder %s40, 1
      %p370 = por %p368, %p369
      %p372 = scmp.ne.s32.totalorder %s355, %s371
      %p373 = scmp.eq.s32.totalorder %s40, 0
      %p374 = por %p372, %p373
      %s375 = ssub.s32 %s34, %s41
      %p376 = scmp.eq.s32.totalorder %s375, 0
      %s378 = sadd.s32 %s377, 1
      %s379 = scalar_select %p376, %s377, %s378
      %p382 = pneg %p376
      %p383 = scmp.eq.s32.totalorder %s34, 1
      %p384 = por %p382, %p383
      %p385 = scmp.ne.s32.totalorder %s377, %s380
      %p386 = scmp.eq.s32.totalorder %s34, 0
      %p387 = por %p385, %p386
      %p388 = scmp.ne.s32.totalorder %s377, %s380
      %p389 = scmp.eq.s32.totalorder %s39, 1
      %p390 = por %p388, %p389
      %p391 = scmp.ne.s32.totalorder %s380, %s381
      %p392 = scmp.eq.s32.totalorder %s39, 0
      %p393 = por %p391, %p392
      %p394 = scmp.ne.s32.totalorder %s380, %s381
      %p395 = scmp.eq.s32.totalorder %s40, 1
      %p396 = por %p394, %p395
      %p398 = scmp.ne.s32.totalorder %s381, %s397
      %p399 = scmp.eq.s32.totalorder %s40, 0
      %p400 = por %p398, %p399
      %s401 = ssub.s32 %s34, %s41
      %p402 = scmp.eq.s32.totalorder %s401, 0
      %s404 = sadd.s32 %s403, 1
      %s405 = scalar_select %p402, %s403, %s404
      %p408 = pneg %p402
      %p409 = scmp.eq.s32.totalorder %s34, 1
      %p410 = por %p408, %p409
      %p411 = scmp.ne.s32.totalorder %s403, %s406
      %p412 = scmp.eq.s32.totalorder %s34, 0
      %p413 = por %p411, %p412
      %p414 = scmp.ne.s32.totalorder %s403, %s406
      %p415 = scmp.eq.s32.totalorder %s39, 1
      %p416 = por %p414, %p415
      %p417 = scmp.ne.s32.totalorder %s406, %s407
      %p418 = scmp.eq.s32.totalorder %s39, 0
      %p419 = por %p417, %p418
      %p420 = scmp.ne.s32.totalorder %s406, %s407
      %p421 = scmp.eq.s32.totalorder %s40, 1
      %p422 = por %p420, %p421
      %p424 = scmp.ne.s32.totalorder %s407, %s423
      %p425 = scmp.eq.s32.totalorder %s40, 0
      %p426 = por %p424, %p425
      %s428 = sadd.s32 %s427, 1
      %p431 = scmp.eq.s32.totalorder %s34, 1
      %p432 = scmp.ne.s32.totalorder %s427, %s429
      %p433 = scmp.eq.s32.totalorder %s34, 0
      %p434 = por %p432, %p433
      %p435 = scmp.ne.s32.totalorder %s427, %s429
      %p436 = scmp.eq.s32.totalorder %s39, 1
      %p437 = por %p435, %p436
      %p438 = scmp.ne.s32.totalorder %s429, %s430
      %p439 = scmp.eq.s32.totalorder %s39, 0
      %p440 = por %p438, %p439
      %p441 = scmp.ne.s32.totalorder %s429, %s430
      %p442 = scmp.eq.s32.totalorder %s40, 1
      %p443 = por %p441, %p442
      %p445 = scmp.ne.s32.totalorder %s430, %s444
      %p446 = scmp.eq.s32.totalorder %s40, 0
      %p447 = por %p445, %p446
      %s449 = sadd.s32 %s448, 1
      %p452 = scmp.eq.s32.totalorder %s34, 1
      %p453 = scmp.ne.s32.totalorder %s448, %s450
      %p454 = scmp.eq.s32.totalorder %s34, 0
      %p455 = por %p453, %p454
      %p456 = scmp.ne.s32.totalorder %s448, %s450
      %p457 = scmp.eq.s32.totalorder %s39, 1
      %p458 = por %p456, %p457
      %p459 = scmp.ne.s32.totalorder %s450, %s451
      %p460 = scmp.eq.s32.totalorder %s39, 0
      %p461 = por %p459, %p460
      %p462 = scmp.ne.s32.totalorder %s450, %s451
      %p463 = scmp.eq.s32.totalorder %s40, 1
      %p464 = por %p462, %p463
      %p466 = scmp.ne.s32.totalorder %s451, %s465
      %p467 = scmp.eq.s32.totalorder %s40, 0
      %p468 = por %p466, %p467
      %s470 = sadd.s32 %s469, 1
      %p473 = scmp.eq.s32.totalorder %s34, 1
      %p474 = scmp.ne.s32.totalorder %s469, %s471
      %p475 = scmp.eq.s32.totalorder %s34, 0
      %p476 = por %p474, %p475
      %p477 = scmp.ne.s32.totalorder %s469, %s471
      %p478 = scmp.eq.s32.totalorder %s39, 1
      %p479 = por %p477, %p478
      %p480 = scmp.ne.s32.totalorder %s471, %s472
      %p481 = scmp.eq.s32.totalorder %s39, 0
      %p482 = por %p480, %p481
      %p483 = scmp.ne.s32.totalorder %s471, %s472
      %p484 = scmp.eq.s32.totalorder %s40, 1
      %p485 = por %p483, %p484
      %p487 = scmp.ne.s32.totalorder %s472, %s486
      %p488 = scmp.eq.s32.totalorder %s40, 0
      %p489 = por %p487, %p488
      %p490 = scmp.le.s32.totalorder 1, %s34
      %p491 = scmp.lt.s32.totalorder %s34, 3
      %p492 = pnand %p490, %p491
      %p493 = pneg %p492
      // Predicated region
      $region9: #{tpu_custom_call.1} parent=5 // pred_check
        _
      $region10: #{tpu_custom_call.1} parent=5 // pred_check_branch
        %495 = sbr.rel (%p492) target = $region12
      $region11: #{tpu_custom_call.1} parent=5 // pred_region
        %s496 = ssub.s32 %s34, 1
        // Predicated region
        $region13: #{tpu_custom_call.1} parent=11 // pred_check
          %p497 = pneg %p55
        $region14: #{tpu_custom_call.1} parent=11 // pred_check_branch
          %499 = sbr.rel (%p497) target = $region16
        $region15: #{tpu_custom_call.1} parent=11 // pred_region
          %s501 = ssub.s32 256, 256
          %502 = vsyncadd [#allocation4], %s501
          %s503 = sshll.u32 [#allocation3], 4
          %s504 = int_to_ptr.vmem [resolvable:$true] %s503
          %509 = dma.hbm_to_vmem [thread:$0]  %s0, 256, %s504, [#allocation4], 128, 128, 8
        $region16: #{tpu_custom_call.1} parent=11 // pred_fallthru
          _
        // Predicated region
        $region17: #{tpu_custom_call.1} parent=11 // pred_check
          %p510 = pneg %p440
        $region18: #{tpu_custom_call.1} parent=11 // pred_check_branch
          %512 = sbr.rel (%p510) target = $region20
        $region19: #{tpu_custom_call.1} parent=11 // pred_region
          _
        $region20: #{tpu_custom_call.1} parent=11 // pred_fallthru
          _
        // Predicated region
        $region21: #{tpu_custom_call.1} parent=11 // pred_check
          %p513 = pneg %p461
        $region22: #{tpu_custom_call.1} parent=11 // pred_check_branch
          %515 = sbr.rel (%p513) target = $region24
        $region23: #{tpu_custom_call.1} parent=11 // pred_region
          _
        $region24: #{tpu_custom_call.1} parent=11 // pred_fallthru
          _
      $region12: #{tpu_custom_call.1} parent=5 // pred_fallthru
        _
      %p516 = scmp.lt.s32.totalorder %s34, 2
      // Predicated region
      $region25: #{tpu_custom_call.1} parent=5 // pred_check
        %p517 = pneg %p516
      $region26: #{tpu_custom_call.1} parent=5 // pred_check_branch
        %519 = sbr.rel (%p517) target = $region28
      $region27: #{tpu_custom_call.1} parent=5 // pred_region
        // Predicated region
        $region29: #{tpu_custom_call.1} parent=27 // pred_check
          %p520 = pneg %p75
        $region30: #{tpu_custom_call.1} parent=27 // pred_check_branch
          %522 = sbr.rel (%p520) target = $region32
        $region31: #{tpu_custom_call.1} parent=27 // pred_region
          %p523 = scmp.lt.s32.totalorder %s34, 1
          %s524 = scalar_select %p523, %s34, 1
          %s525 = scalar_lea.vmem %s1, %s524
        $region32: #{tpu_custom_call.1} parent=27 // pred_fallthru
          _
        // Predicated region
        $region33: #{tpu_custom_call.1} parent=27 // pred_check
          %p526 = pneg %p101
        $region34: #{tpu_custom_call.1} parent=27 // pred_check_branch
          %528 = sbr.rel (%p526) target = $region36
        $region35: #{tpu_custom_call.1} parent=27 // pred_region
          %p529 = scmp.lt.s32.totalorder %s34, 1
          %s530 = scalar_select %p529, %s34, 1
          %s531 = scalar_lea.vmem %s2, %s530
        $region36: #{tpu_custom_call.1} parent=27 // pred_fallthru
          _
        // Predicated region
        $region37: #{tpu_custom_call.1} parent=27 // pred_check
          %p532 = pneg %p127
        $region38: #{tpu_custom_call.1} parent=27 // pred_check_branch
          %534 = sbr.rel (%p532) target = $region40
        $region39: #{tpu_custom_call.1} parent=27 // pred_region
          %s535 = sand.u32 %s34, 1
          %s536 = scalar_lea.sflag [#allocation7], %s535
          %s537 = sand.u32 %s117, 1
          %s538 = smul.addr %s537, 32
          %s539 = scalar_lea.vmem [#allocation6], %s538
          %s541 = ssub.s32 512, 512
          %542 = vsyncadd %s536, %s541
          %s543 = smul.addr %s34, 4
          %s544 = smul.addr %s543, 128
          %s545 = scalar_lea.hbm %s3, %s544
          %s546 = sshll.u32 %s539, 4
          %s547 = int_to_ptr.vmem [resolvable:$true] %s546
          %552 = dma.hbm_to_vmem [thread:$0]  %s545, 512, %s547, %s536, 128, 128, 8
        $region40: #{tpu_custom_call.1} parent=27 // pred_fallthru
          _
        // Predicated region
        $region41: #{tpu_custom_call.1} parent=27 // pred_check
          %p553 = pneg %p153
        $region42: #{tpu_custom_call.1} parent=27 // pred_check_branch
          %555 = sbr.rel (%p553) target = $region44
        $region43: #{tpu_custom_call.1} parent=27 // pred_region
          %p556 = scmp.lt.s32.totalorder %s34, 1
          %s557 = scalar_select %p556, %s34, 1
          %s558 = scalar_lea.vmem %s4, %s557
        $region44: #{tpu_custom_call.1} parent=27 // pred_fallthru
          _
        // Predicated region
        $region45: #{tpu_custom_call.1} parent=27 // pred_check
          %p559 = pneg %p179
        $region46: #{tpu_custom_call.1} parent=27 // pred_check_branch
          %561 = sbr.rel (%p559) target = $region48
        $region47: #{tpu_custom_call.1} parent=27 // pred_region
          %s562 = sand.u32 %s34, 1
          %s563 = scalar_lea.sflag [#allocation7], %s562
          %s564 = sand.u32 %s169, 1
          %s565 = smul.addr %s564, 32
          %s566 = scalar_lea.vmem [#allocation8], %s565
          %s568 = ssub.s32 512, 512
          %569 = vsyncadd %s563, %s568
          %s570 = smul.addr %s34, 4
          %s571 = smul.addr %s570, 128
          %s572 = scalar_lea.hbm %s5, %s571
          %s573 = sshll.u32 %s566, 4
          %s574 = int_to_ptr.vmem [resolvable:$true] %s573
          %579 = dma.hbm_to_vmem [thread:$0]  %s572, 512, %s574, %s563, 128, 128, 8
        $region48: #{tpu_custom_call.1} parent=27 // pred_fallthru
          _
        // Predicated region
        $region49: #{tpu_custom_call.1} parent=27 // pred_check
          %p580 = pneg %p205
        $region50: #{tpu_custom_call.1} parent=27 // pred_check_branch
          %582 = sbr.rel (%p580) target = $region52
        $region51: #{tpu_custom_call.1} parent=27 // pred_region
          %p583 = scmp.lt.s32.totalorder %s34, 1
          %s584 = scalar_select %p583, %s34, 1
          %s585 = scalar_lea.vmem %s6, %s584
        $region52: #{tpu_custom_call.1} parent=27 // pred_fallthru
          _
        // Predicated region
        $region53: #{tpu_custom_call.1} parent=27 // pred_check
          %p586 = pneg %p231
        $region54: #{tpu_custom_call.1} parent=27 // pred_check_branch
          %588 = sbr.rel (%p586) target = $region56
        $region55: #{tpu_custom_call.1} parent=27 // pred_region
          %s589 = sand.u32 %s34, 1
          %s590 = scalar_lea.sflag [#allocation10], %s589
          %s591 = sand.u32 %s221, 1
          %s592 = smul.addr %s591, 32
          %s593 = scalar_lea.vmem [#allocation9], %s592
          %s595 = ssub.s32 512, 512
          %596 = vsyncadd %s590, %s595
          %s597 = smul.addr %s34, 4
          %s598 = smul.addr %s597, 128
          %s599 = scalar_lea.hbm %s7, %s598
          %s600 = sshll.u32 %s593, 4
          %s601 = int_to_ptr.vmem [resolvable:$true] %s600
          %606 = dma.hbm_to_vmem [thread:$0]  %s599, 512, %s601, %s590, 128, 128, 8
        $region56: #{tpu_custom_call.1} parent=27 // pred_fallthru
          _
        // Predicated region
        $region57: #{tpu_custom_call.1} parent=27 // pred_check
          %p607 = pneg %p257
        $region58: #{tpu_custom_call.1} parent=27 // pred_check_branch
          %609 = sbr.rel (%p607) target = $region60
        $region59: #{tpu_custom_call.1} parent=27 // pred_region
          %p610 = scmp.lt.s32.totalorder %s34, 1
          %s611 = scalar_select %p610, %s34, 1
          %s612 = scalar_lea.vmem %s8, %s611
        $region60: #{tpu_custom_call.1} parent=27 // pred_fallthru
          _
        // Predicated region
        $region61: #{tpu_custom_call.1} parent=27 // pred_check
          %p613 = pneg %p283
        $region62: #{tpu_custom_call.1} parent=27 // pred_check_branch
          %615 = sbr.rel (%p613) target = $region64
        $region63: #{tpu_custom_call.1} parent=27 // pred_region
          %s616 = sand.u32 %s34, 1
          %s617 = scalar_lea.sflag [#allocation10], %s616
          %s618 = sand.u32 %s273, 1
          %s619 = smul.addr %s618, 32
          %s620 = scalar_lea.vmem [#allocation11], %s619
          %s622 = ssub.s32 512, 512
          %623 = vsyncadd %s617, %s622
          %s624 = smul.addr %s34, 4
          %s625 = smul.addr %s624, 128
          %s626 = scalar_lea.hbm %s9, %s625
          %s627 = sshll.u32 %s620, 4
          %s628 = int_to_ptr.vmem [resolvable:$true] %s627
          %633 = dma.hbm_to_vmem [thread:$0]  %s626, 512, %s628, %s617, 128, 128, 8
        $region64: #{tpu_custom_call.1} parent=27 // pred_fallthru
          _
        // Predicated region
        $region65: #{tpu_custom_call.1} parent=27 // pred_check
          %p634 = pneg %p309
        $region66: #{tpu_custom_call.1} parent=27 // pred_check_branch
          %636 = sbr.rel (%p634) target = $region68
        $region67: #{tpu_custom_call.1} parent=27 // pred_region
          %p637 = scmp.lt.s32.totalorder %s34, 1
          %s638 = scalar_select %p637, %s34, 1
          %s639 = scalar_lea.vmem %s10, %s638
        $region68: #{tpu_custom_call.1} parent=27 // pred_fallthru
          _
        // Predicated region
        $region69: #{tpu_custom_call.1} parent=27 // pred_check
          %p640 = pneg %p335
        $region70: #{tpu_custom_call.1} parent=27 // pred_check_branch
          %642 = sbr.rel (%p640) target = $region72
        $region71: #{tpu_custom_call.1} parent=27 // pred_region
          %s643 = sand.u32 %s325, 1
          %s644 = scalar_lea.sflag [#allocation13], %s643
          %s645 = sand.u32 %s325, 1
          %s646 = smul.addr %s645, 32
          %s647 = scalar_lea.vmem [#allocation12], %s646
          %s649 = ssub.s32 512, 512
          %650 = vsyncadd %s644, %s649
          %s651 = smul.addr %s34, 4
          %s652 = smul.addr %s651, 128
          %s653 = scalar_lea.hbm %s11, %s652
          %s654 = sshll.u32 %s647, 4
          %s655 = int_to_ptr.vmem [resolvable:$true] %s654
          %660 = dma.hbm_to_vmem [thread:$0]  %s653, 512, %s655, %s644, 128, 128, 8
        $region72: #{tpu_custom_call.1} parent=27 // pred_fallthru
          _
        // Predicated region
        $region73: #{tpu_custom_call.1} parent=27 // pred_check
          %p661 = pneg %p361
        $region74: #{tpu_custom_call.1} parent=27 // pred_check_branch
          %663 = sbr.rel (%p661) target = $region76
        $region75: #{tpu_custom_call.1} parent=27 // pred_region
          %p664 = scmp.lt.s32.totalorder %s34, 1
          %s665 = scalar_select %p664, %s34, 1
          %s666 = scalar_lea.vmem %s12, %s665
        $region76: #{tpu_custom_call.1} parent=27 // pred_fallthru
          _
        // Predicated region
        $region77: #{tpu_custom_call.1} parent=27 // pred_check
          %p667 = pneg %p387
        $region78: #{tpu_custom_call.1} parent=27 // pred_check_branch
          %669 = sbr.rel (%p667) target = $region80
        $region79: #{tpu_custom_call.1} parent=27 // pred_region
          %p670 = scmp.lt.s32.totalorder %s34, 1
          %s671 = scalar_select %p670, %s34, 1
          %s672 = scalar_lea.vmem %s13, %s671
        $region80: #{tpu_custom_call.1} parent=27 // pred_fallthru
          _
        // Predicated region
        $region81: #{tpu_custom_call.1} parent=27 // pred_check
          %p673 = pneg %p413
        $region82: #{tpu_custom_call.1} parent=27 // pred_check_branch
          %675 = sbr.rel (%p673) target = $region84
        $region83: #{tpu_custom_call.1} parent=27 // pred_region
          %p676 = scmp.lt.s32.totalorder %s34, 1
          %s677 = scalar_select %p676, %s34, 1
          %s678 = scalar_lea.vmem %s14, %s677
        $region84: #{tpu_custom_call.1} parent=27 // pred_fallthru
          _
      $region28: #{tpu_custom_call.1} parent=5 // pred_fallthru
        _
      %p679 = scmp.le.s32.totalorder 1, %s34
      %p680 = scmp.lt.s32.totalorder %s34, 3
      %p681 = pnand %p679, %p680
      %p682 = pneg %p681
      // Predicated region
      $region85: #{tpu_custom_call.1} parent=5 // pred_check
        _
      $region86: #{tpu_custom_call.1} parent=5 // pred_check_branch
        %684 = sbr.rel (%p681) target = $region88
      $region87: #{tpu_custom_call.1} parent=5 // pred_region
        %s685 = ssub.s32 %s34, 1
        // Predicated region
        $region89: #{tpu_custom_call.1} parent=87 // pred_check
          %p686 = pneg %p55
        $region90: #{tpu_custom_call.1} parent=87 // pred_check_branch
          %688 = sbr.rel (%p686) target = $region92
        $region91: #{tpu_custom_call.1} parent=87 // pred_region
          %689 = dma.done [#allocation4], 256
        $region92: #{tpu_custom_call.1} parent=87 // pred_fallthru
          _
        %s690 = sand.u32 %s39, 1
        %s691 = scalar_lea.sflag [#allocation7], %s690
        %s692 = sand.u32 %s120, 1
        %s693 = smul.addr %s692, 32
        %s694 = scalar_lea.vmem [#allocation6], %s693
        // Predicated region
        $region93: #{tpu_custom_call.1} parent=87 // pred_check
          %p695 = pneg %p133
        $region94: #{tpu_custom_call.1} parent=87 // pred_check_branch
          %697 = sbr.rel (%p695) target = $region96
        $region95: #{tpu_custom_call.1} parent=87 // pred_region
          %698 = dma.done %s691, 512
        $region96: #{tpu_custom_call.1} parent=87 // pred_fallthru
          _
        %s699 = sand.u32 %s39, 1
        %s700 = scalar_lea.sflag [#allocation7], %s699
        %s701 = sand.u32 %s172, 1
        %s702 = smul.addr %s701, 32
        %s703 = scalar_lea.vmem [#allocation8], %s702
        // Predicated region
        $region97: #{tpu_custom_call.1} parent=87 // pred_check
          %p704 = pneg %p185
        $region98: #{tpu_custom_call.1} parent=87 // pred_check_branch
          %706 = sbr.rel (%p704) target = $region100
        $region99: #{tpu_custom_call.1} parent=87 // pred_region
          %707 = dma.done %s700, 512
        $region100: #{tpu_custom_call.1} parent=87 // pred_fallthru
          _
        %s708 = sand.u32 %s39, 1
        %s709 = scalar_lea.sflag [#allocation10], %s708
        %s710 = sand.u32 %s224, 1
        %s711 = smul.addr %s710, 32
        %s712 = scalar_lea.vmem [#allocation9], %s711
        // Predicated region
        $region101: #{tpu_custom_call.1} parent=87 // pred_check
          %p713 = pneg %p237
        $region102: #{tpu_custom_call.1} parent=87 // pred_check_branch
          %715 = sbr.rel (%p713) target = $region104
        $region103: #{tpu_custom_call.1} parent=87 // pred_region
          %716 = dma.done %s709, 512
        $region104: #{tpu_custom_call.1} parent=87 // pred_fallthru
          _
        %s717 = sand.u32 %s39, 1
        %s718 = scalar_lea.sflag [#allocation10], %s717
        %s719 = sand.u32 %s276, 1
        %s720 = smul.addr %s719, 32
        %s721 = scalar_lea.vmem [#allocation11], %s720
        // Predicated region
        $region105: #{tpu_custom_call.1} parent=87 // pred_check
          %p722 = pneg %p289
        $region106: #{tpu_custom_call.1} parent=87 // pred_check_branch
          %724 = sbr.rel (%p722) target = $region108
        $region107: #{tpu_custom_call.1} parent=87 // pred_region
          %725 = dma.done %s718, 512
        $region108: #{tpu_custom_call.1} parent=87 // pred_fallthru
          _
        %s726 = sand.u32 %s328, 1
        %s727 = scalar_lea.sflag [#allocation13], %s726
        %s728 = sand.u32 %s328, 1
        %s729 = smul.addr %s728, 32
        %s730 = scalar_lea.vmem [#allocation12], %s729
        // Predicated region
        $region109: #{tpu_custom_call.1} parent=87 // pred_check
          %p731 = pneg %p341
        $region110: #{tpu_custom_call.1} parent=87 // pred_check_branch
          %733 = sbr.rel (%p731) target = $region112
        $region111: #{tpu_custom_call.1} parent=87 // pred_region
          %734 = dma.done %s727, 512
        $region112: #{tpu_custom_call.1} parent=87 // pred_fallthru
          _
        %p735 = pneg %p55
        %p736 = pneg %p52
        %p737 = scmp.lt.s32.totalorder %s39, 1
        %s738 = scalar_select %p737, %s39, 1
        %s739 = scalar_lea.vmem %s1, %s738
        %p740 = pneg %p81
        %p741 = pneg %p78
        %p742 = scmp.lt.s32.totalorder %s39, 1
        %s743 = scalar_select %p742, %s39, 1
        %s744 = scalar_lea.vmem %s2, %s743
        %p745 = pneg %p107
        %p746 = pneg %p104
        %s747 = sand.u32 %s39, 1
        %s748 = scalar_lea.sflag [#allocation7], %s747
        %s749 = sand.u32 %s120, 1
        %s750 = smul.addr %s749, 32
        %s751 = scalar_lea.vmem [#allocation6], %s750
        %p752 = pneg %p133
        %p753 = pneg %p130
        %p754 = scmp.lt.s32.totalorder %s39, 1
        %s755 = scalar_select %p754, %s39, 1
        %s756 = scalar_lea.vmem %s4, %s755
        %p757 = pneg %p159
        %p758 = pneg %p156
        %s759 = sand.u32 %s39, 1
        %s760 = scalar_lea.sflag [#allocation7], %s759
        %s761 = sand.u32 %s172, 1
        %s762 = smul.addr %s761, 32
        %s763 = scalar_lea.vmem [#allocation8], %s762
        %p764 = pneg %p185
        %p765 = pneg %p182
        %p766 = scmp.lt.s32.totalorder %s39, 1
        %s767 = scalar_select %p766, %s39, 1
        %s768 = scalar_lea.vmem %s6, %s767
        %p769 = pneg %p211
        %p770 = pneg %p208
        %s771 = sand.u32 %s39, 1
        %s772 = scalar_lea.sflag [#allocation10], %s771
        %s773 = sand.u32 %s224, 1
        %s774 = smul.addr %s773, 32
        %s775 = scalar_lea.vmem [#allocation9], %s774
        %p776 = pneg %p237
        %p777 = pneg %p234
        %p778 = scmp.lt.s32.totalorder %s39, 1
        %s779 = scalar_select %p778, %s39, 1
        %s780 = scalar_lea.vmem %s8, %s779
        %p781 = pneg %p263
        %p782 = pneg %p260
        %s783 = sand.u32 %s39, 1
        %s784 = scalar_lea.sflag [#allocation10], %s783
        %s785 = sand.u32 %s276, 1
        %s786 = smul.addr %s785, 32
        %s787 = scalar_lea.vmem [#allocation11], %s786
        %p788 = pneg %p289
        %p789 = pneg %p286
        %p790 = scmp.lt.s32.totalorder %s39, 1
        %s791 = scalar_select %p790, %s39, 1
        %s792 = scalar_lea.vmem %s10, %s791
        %p793 = pneg %p315
        %p794 = pneg %p312
        %s795 = sand.u32 %s328, 1
        %s796 = scalar_lea.sflag [#allocation13], %s795
        %s797 = sand.u32 %s328, 1
        %s798 = smul.addr %s797, 32
        %s799 = scalar_lea.vmem [#allocation12], %s798
        %p800 = pneg %p341
        %p801 = pneg %p338
        %p802 = scmp.lt.s32.totalorder %s39, 1
        %s803 = scalar_select %p802, %s39, 1
        %s804 = scalar_lea.vmem %s12, %s803
        %p805 = pneg %p367
        %p806 = pneg %p364
        %p807 = scmp.lt.s32.totalorder %s39, 1
        %s808 = scalar_select %p807, %s39, 1
        %s809 = scalar_lea.vmem %s13, %s808
        %p810 = pneg %p393
        %p811 = pneg %p390
        %p812 = scmp.lt.s32.totalorder %s39, 1
        %s813 = scalar_select %p812, %s39, 1
        %s814 = scalar_lea.vmem %s14, %s813
        %p815 = pneg %p419
        %p816 = pneg %p416
        %p817 = pneg %p440
        %p818 = pneg %p437
        %p819 = pneg %p461
        %p820 = pneg %p458
        %p821 = pneg %p482
        %p822 = pneg %p479
        %p823 = scmp.lt.s32.totalorder %s39, 1
        %s824 = scalar_select %p823, %s39, 1
        %s825 = scalar_lea.vmem %s1, %s824
        %p826 = scmp.lt.s32.totalorder %s39, 1
        %s827 = scalar_select %p826, %s39, 1
        %s828 = scalar_lea.vmem %s2, %s827
        %p829 = scmp.lt.s32.totalorder %s39, 1
        %s830 = scalar_select %p829, %s39, 1
        %s831 = scalar_lea.vmem %s4, %s830
        %p832 = scmp.lt.s32.totalorder %s39, 1
        %s833 = scalar_select %p832, %s39, 1
        %s834 = scalar_lea.vmem %s6, %s833
        %p835 = scmp.lt.s32.totalorder %s39, 1
        %s836 = scalar_select %p835, %s39, 1
        %s837 = scalar_lea.vmem %s8, %s836
        %p838 = scmp.lt.s32.totalorder %s39, 1
        %s839 = scalar_select %p838, %s39, 1
        %s840 = scalar_lea.vmem %s10, %s839
        %p841 = scmp.lt.s32.totalorder %s39, 1
        %s842 = scalar_select %p841, %s39, 1
        %s843 = scalar_lea.vmem %s12, %s842
        %p844 = scmp.lt.s32.totalorder %s39, 1
        %s845 = scalar_select %p844, %s39, 1
        %s846 = scalar_lea.vmem %s13, %s845
        %p847 = scmp.lt.s32.totalorder %s39, 1
        %s848 = scalar_select %p847, %s39, 1
        %s849 = scalar_lea.vmem %s14, %s848
        %p850 = scmp.eq.s32.totalorder %s39, 0
        // Predicated region
        $region113: #{tpu_custom_call.1} parent=87 // pred_check
          %p851 = pneg %p850
        $region114: #{tpu_custom_call.1} parent=87 // pred_check_branch
          %853 = sbr.rel (%p851) target = $region116
        $region115: #{tpu_custom_call.1} parent=87 // pred_region
          %v854 = vld [vmem:[#allocation3] sm:$0xff]
          %v855 = vld [vmem:[#allocation3 + $0x8] sm:$0xff]
          %vm856 = vcmask 261120
          %857 = vst.msk [vmem:[#allocation2] sm:$0xff] %vm856, %v854
          %858 = vst.msk [vmem:[#allocation2 + $0x8] sm:$0xff] %vm856, %v855
        $region116: #{tpu_custom_call.1} parent=87 // pred_fallthru
          _
        %v859 = vld [vmem:[#allocation2] sm:$0xff]
        %v860 = vld [vmem:[#allocation2 + $0x8] sm:$0xff]
        %v861 = vld [vmem:[%s825] sm:$0x1]
        %v862 = vld [vmem:[%s828] sm:$0x1]
        %vm863 = vcmask 261120
        %v864 = vsel %vm863, %v859, 0.0
        %865 = vadd.xlane.f32.xlu0 %v864
        %v866 = vpop.xlane.xlu0 %865
        %v867 = vsel %vm863, %v860, 0.0
        %868 = vadd.xlane.f32.xlu0 %v867
        %v869 = vpop.xlane.xlu0 %868
        %v870 = vrcp.pop 32.0
        %v871 = vmul.f32 %v866, %v870
        %v872 = vmul.f32 %v869, %v870
        %v873 = vsub.f32 %v859, %v871
        %v874 = vsub.f32 %v860, %v872
        %v875 = vmul.f32 %v873, %v873
        %v876 = vmul.f32 %v874, %v874
        %v877 = vsel %vm863, %v875, 0.0
        %878 = vadd.xlane.f32.xlu0 %v877
        %v879 = vpop.xlane.xlu0 %878
        %v880 = vsel %vm863, %v876, 0.0
        %881 = vadd.xlane.f32.xlu0 %v880
        %v882 = vpop.xlane.xlu0 %881
        %v883 = vmul.f32 %v879, %v870
        %v884 = vmul.f32 %v882, %v870
        %v885 = vadd.f32 %v883, 1e-05
        %v886 = vadd.f32 %v884, 1e-05
        %v887 = vrsqrt.pop %v885
        %v888 = vrsqrt.pop %v886
        %v889 = vmul.f32 %v873, %v887
        %v890 = vmul.f32 %v874, %v888
        %v892 = vlaneseq
        %v893 = vshrl.u32 %v892, 7
        %v894 = vsub.s32 0, %v893
        %v895 = vrot.slane %v861, %v894
        %v897 = vmul.f32 %v889, %v895
        %v898 = vmul.f32 %v890, %v895
        %v900 = vlaneseq
        %v901 = vshrl.u32 %v900, 7
        %v902 = vsub.s32 0, %v901
        %v903 = vrot.slane %v862, %v902
        %v905 = vadd.f32 %v897, %v903
        %v906 = vadd.f32 %v898, %v903
        %v907 = vld [vmem:[%s694] sm:$0xff]
        %v908 = vld [vmem:[%s694 + $0x8] sm:$0xff]
        %v909 = vld [vmem:[%s694 + $0x10] sm:$0xff]
        %v910 = vld [vmem:[%s694 + $0x18] sm:$0xff]
        %v911 = vld [vmem:[%s831] sm:$0x1]
        %v913 = vlaneseq
        %v914 = vshrl.u32 %v913, 7
        %v915 = vsub.s32 0, %v914
        %v916 = vrot.slane %v911, %v915
        %v919 = vsel %vm863, %v905, 0
        %v922 = vsel %vm863, %v906, 0
        %924 = vmatprep.subr.mxu0 0.0
        %925 = vmatpush1.msra.mxu0 %v907
        %926 = vmatprep.subr.mxu0 0.0
        %927 = vmatpush1.msra.mxu0 %v908
        %928 = vmatprep.subr.mxu0 0.0
        %929 = vmatpush1.msra.mxu0 %v909
        %930 = vmatprep.subr.mxu0 0.0
        %931 = vmatpush1.msra.mxu0 %v910
        %932 = vmatprep.subr.mxu0 0.0
        %933 = vmatpush1.msra.mxu0 0.0
        %934 = vmatprep.subr.mxu0 0.0
        %935 = vmatpush1.msra.mxu0 0.0
        %936 = vmatprep.subr.mxu0 0.0
        %937 = vmatpush1.msra.mxu0 0.0
        %938 = vmatprep.subr.mxu0 0.0
        %939 = vmatpush1.msra.mxu0 0.0
        %940 = vmatprep.subr.mxu0 0.0
        %941 = vmatpush1.msra.mxu0 0.0
        %942 = vmatprep.subr.mxu0 0.0
        %943 = vmatpush1.msra.mxu0 0.0
        %944 = vmatprep.subr.mxu0 0.0
        %945 = vmatpush1.msra.mxu0 0.0
        %946 = vmatprep.subr.mxu0 0.0
        %947 = vmatpush1.msra.mxu0 0.0
        %948 = vmatprep.subr.mxu0 0.0
        %949 = vmatpush1.msra.mxu0 0.0
        %950 = vmatprep.subr.mxu0 0.0
        %951 = vmatpush1.msra.mxu0 0.0
        %952 = vmatprep.subr.mxu0 0.0
        %953 = vmatpush1.msra.mxu0 0.0
        %954 = vmatprep.subr.mxu0 0.0
        %955 = vmatpush1.msra.mxu0 0.0
        %956 = vmatprep.subr.mxu0 0.0
        %957 = vmatpush1.msra.mxu0 0.0
        %958 = vmatprep.subr.mxu0 0.0
        %959 = vmatpush1.msra.mxu0 0.0
        %960 = vmatprep.subr.mxu0 0.0
        %961 = vmatpush1.msra.mxu0 0.0
        %962 = vmatprep.subr.mxu0 0.0
        %963 = vmatpush1.msra.mxu0 0.0
        %964 = vmatprep.subr.mxu0 0.0
        %965 = vmatpush1.msra.mxu0 0.0
        %966 = vmatprep.subr.mxu0 0.0
        %967 = vmatpush1.msra.mxu0 0.0
        %968 = vmatprep.subr.mxu0 0.0
        %969 = vmatpush1.msra.mxu0 0.0
        %970 = vmatprep.subr.mxu0 0.0
        %971 = vmatpush1.msra.mxu0 0.0
        %972 = vmatprep.subr.mxu0 0.0
        %973 = vmatpush1.msra.mxu0 0.0
        %974 = vmatprep.subr.mxu0 0.0
        %975 = vmatpush1.msra.mxu0 0.0
        %976 = vmatprep.subr.mxu0 0.0
        %977 = vmatpush1.msra.mxu0 0.0
        %978 = vmatprep.subr.mxu0 0.0
        %979 = vmatpush1.msra.mxu0 0.0
        %980 = vmatprep.subr.mxu0 0.0
        %981 = vmatpush1.msra.mxu0 0.0
        %982 = vmatprep.subr.mxu0 0.0
        %983 = vmatpush1.msra.mxu0 0.0
        %984 = vmatprep.subr.mxu0 0.0
        %985 = vmatpush1.msra.mxu0 0.0
        %986 = vmatprep.subr.mxu0 0.0
        %987 = vmatpush1.msra.mxu0 0.0
        %988 = vmatprep.mubr.f32.mxu0 0.0
        %989 = vmatmul.mubr.f32.gmra.mrb[0].mxu0 %v919
        %v990 = vpop.f32.mrb[0].mxu0
        %v991 = vadd.f32 %v916, %v990
        %v992 = vpop.f32.mrb[0].mxu0
        %993 = vmatprep.mubr.f32.mxu0 0.0
        %994 = vmatmul.mubr.f32.gmra.mrb[0].mxu0 %v922
        %v995 = vpop.f32.mrb[0].mxu0
        %v996 = vadd.f32 %v916, %v995
        %v997 = vpop.f32.mrb[0].mxu0
        %998 = vdwg.mxu0
        %1000 = vrot.lane.b32.xlu0 %v991, 120
        %v1001 = vpop.permute.xlu0 %1000
        %1003 = vrot.lane.b32.xlu0 %v991, 112
        %v1004 = vpop.permute.xlu0 %1003
        %1006 = vrot.lane.b32.xlu0 %v991, 104
        %v1007 = vpop.permute.xlu0 %1006
        %v1009 = vcombine.low %v991, %v1004
        %v1010 = vcombine.high %v991, %v1004
        %v1012 = vunpack.c.l.s4 1983009808
        %v1013 = vunpack.c.0.s8 %v1012
        %v1014 = vlaneseq
        %v1015 = vshrl.u32 %v1014, 7
        %v1016 = vsub.s32 %v1013, %v1015
        %v1017 = vrot.slane %v1009, %v1016
        %v1019 = vunpack.c.l.s4 1983009808
        %v1020 = vunpack.c.0.s8 %v1019
        %v1021 = vlaneseq
        %v1022 = vshrl.u32 %v1021, 7
        %v1023 = vsub.s32 %v1020, %v1022
        %v1024 = vrot.slane %v1010, %v1023
        %v1025 = vcombine.low %v1001, %v1007
        %v1026 = vcombine.high %v1001, %v1007
        %v1028 = vunpack.c.l.s4 1983009808
        %v1029 = vunpack.c.0.s8 %v1028
        %v1030 = vlaneseq
        %v1031 = vshrl.u32 %v1030, 7
        %v1032 = vsub.s32 %v1029, %v1031
        %v1033 = vrot.slane %v1025, %v1032
        %v1035 = vunpack.c.l.s4 1983009808
        %v1036 = vunpack.c.0.s8 %v1035
        %v1037 = vlaneseq
        %v1038 = vshrl.u32 %v1037, 7
        %v1039 = vsub.s32 %v1036, %v1038
        %v1040 = vrot.slane %v1026, %v1039
        %v1041 = vcombine.low %v1017, %v1033
        %v1042 = vcombine.high %v1017, %v1033
        %v1044 = vunpack.c.l.s4 1934713408
        %v1045 = vunpack.c.0.s8 %v1044
        %v1046 = vlaneseq
        %v1047 = vshrl.u32 %v1046, 7
        %v1048 = vsub.s32 %v1045, %v1047
        %v1049 = vrot.slane %v1041, %v1048
        %v1051 = vunpack.c.l.s4 1934713408
        %v1052 = vunpack.c.0.s8 %v1051
        %v1053 = vlaneseq
        %v1054 = vshrl.u32 %v1053, 7
        %v1055 = vsub.s32 %v1052, %v1054
        %v1056 = vrot.slane %v1042, %v1055
        %v1057 = vcombine.low %v1024, %v1040
        %v1058 = vcombine.high %v1024, %v1040
        %v1060 = vunpack.c.l.s4 1934713408
        %v1061 = vunpack.c.0.s8 %v1060
        %v1062 = vlaneseq
        %v1063 = vshrl.u32 %v1062, 7
        %v1064 = vsub.s32 %v1061, %v1063
        %v1065 = vrot.slane %v1057, %v1064
        %v1067 = vunpack.c.l.s4 1934713408
        %v1068 = vunpack.c.0.s8 %v1067
        %v1069 = vlaneseq
        %v1070 = vshrl.u32 %v1069, 7
        %v1071 = vsub.s32 %v1068, %v1070
        %v1072 = vrot.slane %v1058, %v1071
        %v1073 = vcombine.high %v1049, 0.0
        %v1074 = vcombine.high %v1056, 0.0
        %v1075 = vcombine.high %v1065, 0.0
        %v1076 = vcombine.high %v1072, 0.0
        %v1077 = vcombine.low %v1049, %v1056
        %v1079 = vunpack.c.l.s4 1983009808
        %v1080 = vunpack.c.0.s8 %v1079
        %v1081 = vlaneseq
        %v1082 = vshrl.u32 %v1081, 7
        %v1083 = vsub.s32 %v1080, %v1082
        %v1084 = vrot.slane %v1077, %v1083
        %v1085 = vcombine.low %v1073, %v1074
        %v1087 = vunpack.c.l.s4 1983009808
        %v1088 = vunpack.c.0.s8 %v1087
        %v1089 = vlaneseq
        %v1090 = vshrl.u32 %v1089, 7
        %v1091 = vsub.s32 %v1088, %v1090
        %v1092 = vrot.slane %v1085, %v1091
        %v1093 = vcombine.low %v1065, %v1072
        %v1095 = vunpack.c.l.s4 1983009808
        %v1096 = vunpack.c.0.s8 %v1095
        %v1097 = vlaneseq
        %v1098 = vshrl.u32 %v1097, 7
        %v1099 = vsub.s32 %v1096, %v1098
        %v1100 = vrot.slane %v1093, %v1099
        %v1101 = vcombine.low %v1075, %v1076
        %v1103 = vunpack.c.l.s4 1983009808
        %v1104 = vunpack.c.0.s8 %v1103
        %v1105 = vlaneseq
        %v1106 = vshrl.u32 %v1105, 7
        %v1107 = vsub.s32 %v1104, %v1106
        %v1108 = vrot.slane %v1101, %v1107
        %v1109 = vcombine.low %v1084, %v1092
        %v1110 = vcombine.high %v1084, %v1092
        %v1112 = vunpack.c.l.s4 1934713408
        %v1113 = vunpack.c.0.s8 %v1112
        %v1114 = vlaneseq
        %v1115 = vshrl.u32 %v1114, 7
        %v1116 = vsub.s32 %v1113, %v1115
        %v1117 = vrot.slane %v1109, %v1116
        %v1119 = vunpack.c.l.s4 1934713408
        %v1120 = vunpack.c.0.s8 %v1119
        %v1121 = vlaneseq
        %v1122 = vshrl.u32 %v1121, 7
        %v1123 = vsub.s32 %v1120, %v1122
        %v1124 = vrot.slane %v1110, %v1123
        %v1125 = vcombine.low %v1100, %v1108
        %v1126 = vcombine.high %v1100, %v1108
        %v1128 = vunpack.c.l.s4 1934713408
        %v1129 = vunpack.c.0.s8 %v1128
        %v1130 = vlaneseq
        %v1131 = vshrl.u32 %v1130, 7
        %v1132 = vsub.s32 %v1129, %v1131
        %v1133 = vrot.slane %v1125, %v1132
        %v1135 = vunpack.c.l.s4 1934713408
        %v1136 = vunpack.c.0.s8 %v1135
        %v1137 = vlaneseq
        %v1138 = vshrl.u32 %v1137, 7
        %v1139 = vsub.s32 %v1136, %v1138
        %v1140 = vrot.slane %v1126, %v1139
        %v1141 = vcombine.low %v1117, %v1133
        %v1142 = vcombine.high %v1117, %v1133
        %v1143 = vcombine.low %v1124, %v1140
        %v1144 = vcombine.high %v1124, %v1140
        %1145 = vrot.lane.b32.xlu0 %v991, 96
        %v1146 = vpop.permute.xlu0 %1145
        %1147 = vrot.lane.b32.xlu0 %v1001, 96
        %v1148 = vpop.permute.xlu0 %1147
        %1149 = vrot.lane.b32.xlu0 %v1004, 96
        %v1150 = vpop.permute.xlu0 %1149
        %1151 = vrot.lane.b32.xlu0 %v1007, 96
        %v1152 = vpop.permute.xlu0 %1151
        %v1157 = vcombine.low %v1146, %v1150
        %v1158 = vcombine.high %v1146, %v1150
        %v1160 = vunpack.c.l.s4 1983009808
        %v1161 = vunpack.c.0.s8 %v1160
        %v1162 = vlaneseq
        %v1163 = vshrl.u32 %v1162, 7
        %v1164 = vsub.s32 %v1161, %v1163
        %v1165 = vrot.slane %v1157, %v1164
        %v1167 = vunpack.c.l.s4 1983009808
        %v1168 = vunpack.c.0.s8 %v1167
        %v1169 = vlaneseq
        %v1170 = vshrl.u32 %v1169, 7
        %v1171 = vsub.s32 %v1168, %v1170
        %v1172 = vrot.slane %v1158, %v1171
        %v1173 = vcombine.low %v1148, %v1152
        %v1174 = vcombine.high %v1148, %v1152
        %v1176 = vunpack.c.l.s4 1983009808
        %v1177 = vunpack.c.0.s8 %v1176
        %v1178 = vlaneseq
        %v1179 = vshrl.u32 %v1178, 7
        %v1180 = vsub.s32 %v1177, %v1179
        %v1181 = vrot.slane %v1173, %v1180
        %v1183 = vunpack.c.l.s4 1983009808
        %v1184 = vunpack.c.0.s8 %v1183
        %v1185 = vlaneseq
        %v1186 = vshrl.u32 %v1185, 7
        %v1187 = vsub.s32 %v1184, %v1186
        %v1188 = vrot.slane %v1174, %v1187
        %v1189 = vcombine.low %v1165, %v1181
        %v1190 = vcombine.high %v1165, %v1181
        %v1192 = vunpack.c.l.s4 1934713408
        %v1193 = vunpack.c.0.s8 %v1192
        %v1194 = vlaneseq
        %v1195 = vshrl.u32 %v1194, 7
        %v1196 = vsub.s32 %v1193, %v1195
        %v1197 = vrot.slane %v1189, %v1196
        %v1199 = vunpack.c.l.s4 1934713408
        %v1200 = vunpack.c.0.s8 %v1199
        %v1201 = vlaneseq
        %v1202 = vshrl.u32 %v1201, 7
        %v1203 = vsub.s32 %v1200, %v1202
        %v1204 = vrot.slane %v1190, %v1203
        %v1205 = vcombine.low %v1172, %v1188
        %v1206 = vcombine.high %v1172, %v1188
        %v1208 = vunpack.c.l.s4 1934713408
        %v1209 = vunpack.c.0.s8 %v1208
        %v1210 = vlaneseq
        %v1211 = vshrl.u32 %v1210, 7
        %v1212 = vsub.s32 %v1209, %v1211
        %v1213 = vrot.slane %v1205, %v1212
        %v1215 = vunpack.c.l.s4 1934713408
        %v1216 = vunpack.c.0.s8 %v1215
        %v1217 = vlaneseq
        %v1218 = vshrl.u32 %v1217, 7
        %v1219 = vsub.s32 %v1216, %v1218
        %v1220 = vrot.slane %v1206, %v1219
        %v1221 = vcombine.high %v1197, 0.0
        %v1222 = vcombine.high %v1204, 0.0
        %v1223 = vcombine.high %v1213, 0.0
        %v1224 = vcombine.high %v1220, 0.0
        %v1225 = vcombine.low %v1197, %v1204
        %v1227 = vunpack.c.l.s4 1983009808
        %v1228 = vunpack.c.0.s8 %v1227
        %v1229 = vlaneseq
        %v1230 = vshrl.u32 %v1229, 7
        %v1231 = vsub.s32 %v1228, %v1230
        %v1232 = vrot.slane %v1225, %v1231
        %v1233 = vcombine.low %v1221, %v1222
        %v1235 = vunpack.c.l.s4 1983009808
        %v1236 = vunpack.c.0.s8 %v1235
        %v1237 = vlaneseq
        %v1238 = vshrl.u32 %v1237, 7
        %v1239 = vsub.s32 %v1236, %v1238
        %v1240 = vrot.slane %v1233, %v1239
        %v1241 = vcombine.low %v1213, %v1220
        %v1243 = vunpack.c.l.s4 1983009808
        %v1244 = vunpack.c.0.s8 %v1243
        %v1245 = vlaneseq
        %v1246 = vshrl.u32 %v1245, 7
        %v1247 = vsub.s32 %v1244, %v1246
        %v1248 = vrot.slane %v1241, %v1247
        %v1249 = vcombine.low %v1223, %v1224
        %v1251 = vunpack.c.l.s4 1983009808
        %v1252 = vunpack.c.0.s8 %v1251
        %v1253 = vlaneseq
        %v1254 = vshrl.u32 %v1253, 7
        %v1255 = vsub.s32 %v1252, %v1254
        %v1256 = vrot.slane %v1249, %v1255
        %v1257 = vcombine.low %v1232, %v1240
        %v1258 = vcombine.high %v1232, %v1240
        %v1260 = vunpack.c.l.s4 1934713408
        %v1261 = vunpack.c.0.s8 %v1260
        %v1262 = vlaneseq
        %v1263 = vshrl.u32 %v1262, 7
        %v1264 = vsub.s32 %v1261, %v1263
        %v1265 = vrot.slane %v1257, %v1264
        %v1267 = vunpack.c.l.s4 1934713408
        %v1268 = vunpack.c.0.s8 %v1267
        %v1269 = vlaneseq
        %v1270 = vshrl.u32 %v1269, 7
        %v1271 = vsub.s32 %v1268, %v1270
        %v1272 = vrot.slane %v1258, %v1271
        %v1273 = vcombine.low %v1248, %v1256
        %v1274 = vcombine.high %v1248, %v1256
        %v1276 = vunpack.c.l.s4 1934713408
        %v1277 = vunpack.c.0.s8 %v1276
        %v1278 = vlaneseq
        %v1279 = vshrl.u32 %v1278, 7
        %v1280 = vsub.s32 %v1277, %v1279
        %v1281 = vrot.slane %v1273, %v1280
        %v1283 = vunpack.c.l.s4 1934713408
        %v1284 = vunpack.c.0.s8 %v1283
        %v1285 = vlaneseq
        %v1286 = vshrl.u32 %v1285, 7
        %v1287 = vsub.s32 %v1284, %v1286
        %v1288 = vrot.slane %v1274, %v1287
        %v1289 = vcombine.low %v1265, %v1281
        %v1290 = vcombine.high %v1265, %v1281
        %v1291 = vcombine.low %v1272, %v1288
        %v1292 = vcombine.high %v1272, %v1288
        %1293 = vrot.lane.b32.xlu0 %v991, 64
        %v1294 = vpop.permute.xlu0 %1293
        %1295 = vrot.lane.b32.xlu0 %v1001, 64
        %v1296 = vpop.permute.xlu0 %1295
        %1297 = vrot.lane.b32.xlu0 %v1004, 64
        %v1298 = vpop.permute.xlu0 %1297
        %1299 = vrot.lane.b32.xlu0 %v1007, 64
        %v1300 = vpop.permute.xlu0 %1299
        %v1305 = vcombine.low %v1294, %v1298
        %v1306 = vcombine.high %v1294, %v1298
        %v1308 = vunpack.c.l.s4 1983009808
        %v1309 = vunpack.c.0.s8 %v1308
        %v1310 = vlaneseq
        %v1311 = vshrl.u32 %v1310, 7
        %v1312 = vsub.s32 %v1309, %v1311
        %v1313 = vrot.slane %v1305, %v1312
        %v1315 = vunpack.c.l.s4 1983009808
        %v1316 = vunpack.c.0.s8 %v1315
        %v1317 = vlaneseq
        %v1318 = vshrl.u32 %v1317, 7
        %v1319 = vsub.s32 %v1316, %v1318
        %v1320 = vrot.slane %v1306, %v1319
        %v1321 = vcombine.low %v1296, %v1300
        %v1322 = vcombine.high %v1296, %v1300
        %v1324 = vunpack.c.l.s4 1983009808
        %v1325 = vunpack.c.0.s8 %v1324
        %v1326 = vlaneseq
        %v1327 = vshrl.u32 %v1326, 7
        %v1328 = vsub.s32 %v1325, %v1327
        %v1329 = vrot.slane %v1321, %v1328
        %v1331 = vunpack.c.l.s4 1983009808
        %v1332 = vunpack.c.0.s8 %v1331
        %v1333 = vlaneseq
        %v1334 = vshrl.u32 %v1333, 7
        %v1335 = vsub.s32 %v1332, %v1334
        %v1336 = vrot.slane %v1322, %v1335
        %v1337 = vcombine.low %v1313, %v1329
        %v1338 = vcombine.high %v1313, %v1329
        %v1340 = vunpack.c.l.s4 1934713408
        %v1341 = vunpack.c.0.s8 %v1340
        %v1342 = vlaneseq
        %v1343 = vshrl.u32 %v1342, 7
        %v1344 = vsub.s32 %v1341, %v1343
        %v1345 = vrot.slane %v1337, %v1344
        %v1347 = vunpack.c.l.s4 1934713408
        %v1348 = vunpack.c.0.s8 %v1347
        %v1349 = vlaneseq
        %v1350 = vshrl.u32 %v1349, 7
        %v1351 = vsub.s32 %v1348, %v1350
        %v1352 = vrot.slane %v1338, %v1351
        %v1353 = vcombine.low %v1320, %v1336
        %v1354 = vcombine.high %v1320, %v1336
        %v1356 = vunpack.c.l.s4 1934713408
        %v1357 = vunpack.c.0.s8 %v1356
        %v1358 = vlaneseq
        %v1359 = vshrl.u32 %v1358, 7
        %v1360 = vsub.s32 %v1357, %v1359
        %v1361 = vrot.slane %v1353, %v1360
        %v1363 = vunpack.c.l.s4 1934713408
        %v1364 = vunpack.c.0.s8 %v1363
        %v1365 = vlaneseq
        %v1366 = vshrl.u32 %v1365, 7
        %v1367 = vsub.s32 %v1364, %v1366
        %v1368 = vrot.slane %v1354, %v1367
        %v1369 = vcombine.high %v1345, 0.0
        %v1370 = vcombine.high %v1352, 0.0
        %v1371 = vcombine.high %v1361, 0.0
        %v1372 = vcombine.high %v1368, 0.0
        %v1373 = vcombine.low %v1345, %v1352
        %v1375 = vunpack.c.l.s4 1983009808
        %v1376 = vunpack.c.0.s8 %v1375
        %v1377 = vlaneseq
        %v1378 = vshrl.u32 %v1377, 7
        %v1379 = vsub.s32 %v1376, %v1378
        %v1380 = vrot.slane %v1373, %v1379
        %v1381 = vcombine.low %v1369, %v1370
        %v1383 = vunpack.c.l.s4 1983009808
        %v1384 = vunpack.c.0.s8 %v1383
        %v1385 = vlaneseq
        %v1386 = vshrl.u32 %v1385, 7
        %v1387 = vsub.s32 %v1384, %v1386
        %v1388 = vrot.slane %v1381, %v1387
        %v1389 = vcombine.low %v1361, %v1368
        %v1391 = vunpack.c.l.s4 1983009808
        %v1392 = vunpack.c.0.s8 %v1391
        %v1393 = vlaneseq
        %v1394 = vshrl.u32 %v1393, 7
        %v1395 = vsub.s32 %v1392, %v1394
        %v1396 = vrot.slane %v1389, %v1395
        %v1397 = vcombine.low %v1371, %v1372
        %v1399 = vunpack.c.l.s4 1983009808
        %v1400 = vunpack.c.0.s8 %v1399
        %v1401 = vlaneseq
        %v1402 = vshrl.u32 %v1401, 7
        %v1403 = vsub.s32 %v1400, %v1402
        %v1404 = vrot.slane %v1397, %v1403
        %v1405 = vcombine.low %v1380, %v1388
        %v1406 = vcombine.high %v1380, %v1388
        %v1408 = vunpack.c.l.s4 1934713408
        %v1409 = vunpack.c.0.s8 %v1408
        %v1410 = vlaneseq
        %v1411 = vshrl.u32 %v1410, 7
        %v1412 = vsub.s32 %v1409, %v1411
        %v1413 = vrot.slane %v1405, %v1412
        %v1415 = vunpack.c.l.s4 1934713408
        %v1416 = vunpack.c.0.s8 %v1415
        %v1417 = vlaneseq
        %v1418 = vshrl.u32 %v1417, 7
        %v1419 = vsub.s32 %v1416, %v1418
        %v1420 = vrot.slane %v1406, %v1419
        %v1421 = vcombine.low %v1396, %v1404
        %v1422 = vcombine.high %v1396, %v1404
        %v1424 = vunpack.c.l.s4 1934713408
        %v1425 = vunpack.c.0.s8 %v1424
        %v1426 = vlaneseq
        %v1427 = vshrl.u32 %v1426, 7
        %v1428 = vsub.s32 %v1425, %v1427
        %v1429 = vrot.slane %v1421, %v1428
        %v1431 = vunpack.c.l.s4 1934713408
        %v1432 = vunpack.c.0.s8 %v1431
        %v1433 = vlaneseq
        %v1434 = vshrl.u32 %v1433, 7
        %v1435 = vsub.s32 %v1432, %v1434
        %v1436 = vrot.slane %v1422, %v1435
        %v1437 = vcombine.low %v1413, %v1429
        %v1438 = vcombine.high %v1413, %v1429
        %v1439 = vcombine.low %v1420, %v1436
        %v1440 = vcombine.high %v1420, %v1436
        %1441 = vxpose.xlu0.b32.start [1/16] %v1289, 128
        %1442 = vxpose.xlu0.b32.cont [2/16] 0.0, 128
        %1443 = vxpose.xlu0.b32.cont [3/16] 0.0, 128
        %1444 = vxpose.xlu0.b32.cont [4/16] 0.0, 128
        %1445 = vxpose.xlu0.b32.cont [5/16] 0.0, 128
        %1446 = vxpose.xlu0.b32.cont [6/16] 0.0, 128
        %1447 = vxpose.xlu0.b32.cont [7/16] 0.0, 128
        %1448 = vxpose.xlu0.b32.cont [8/16] 0.0, 128
        %1449 = vxpose.xlu0.b32.cont [9/16] 0.0, 128
        %1450 = vxpose.xlu0.b32.cont [10/16] 0.0, 128
        %1451 = vxpose.xlu0.b32.cont [11/16] 0.0, 128
        %1452 = vxpose.xlu0.b32.cont [12/16] 0.0, 128
        %1453 = vxpose.xlu0.b32.cont [13/16] 0.0, 128
        %1454 = vxpose.xlu0.b32.cont [14/16] 0.0, 128
        %1455 = vxpose.xlu0.b32.cont [15/16] 0.0, 128
        %1456 = vxpose.xlu0.b32.end [16/16] 0.0, 128
        %v1457 = vpop.trf.xlu0
        %v1458 = vpop.trf.xlu0
        %v1459 = vpop.trf.xlu0
        %v1460 = vpop.trf.xlu0
        %v1461 = vpop.trf.xlu0
        %v1462 = vpop.trf.xlu0
        %v1463 = vpop.trf.xlu0
        %v1464 = vpop.trf.xlu0
        %v1465 = vpop.trf.xlu0
        %v1466 = vpop.trf.xlu0
        %v1467 = vpop.trf.xlu0
        %v1468 = vpop.trf.xlu0
        %v1469 = vpop.trf.xlu0
        %v1470 = vpop.trf.xlu0
        %v1471 = vpop.trf.xlu0
        %v1472 = vpop.trf.xlu0
        %vm1473 = vcmask 64512
        %v1475 = vsel %vm1473, %v1457, 0
        %1477 = vmatprep.subr.mxu0 0.0
        %1478 = vmatpush1.msra.mxu0 %v1437
        %1479 = vmatprep.subr.mxu0 0.0
        %1480 = vmatpush1.msra.mxu0 0.0
        %1481 = vmatprep.subr.mxu0 0.0
        %1482 = vmatpush1.msra.mxu0 0.0
        %1483 = vmatprep.subr.mxu0 0.0
        %1484 = vmatpush1.msra.mxu0 0.0
        %1485 = vmatprep.subr.mxu0 0.0
        %1486 = vmatpush1.msra.mxu0 0.0
        %1487 = vmatprep.subr.mxu0 0.0
        %1488 = vmatpush1.msra.mxu0 0.0
        %1489 = vmatprep.subr.mxu0 0.0
        %1490 = vmatpush1.msra.mxu0 0.0
        %1491 = vmatprep.subr.mxu0 0.0
        %1492 = vmatpush1.msra.mxu0 0.0
        %1493 = vmatprep.subr.mxu0 0.0
        %1494 = vmatpush1.msra.mxu0 0.0
        %1495 = vmatprep.subr.mxu0 0.0
        %1496 = vmatpush1.msra.mxu0 0.0
        %1497 = vmatprep.subr.mxu0 0.0
        %1498 = vmatpush1.msra.mxu0 0.0
        %1499 = vmatprep.subr.mxu0 0.0
        %1500 = vmatpush1.msra.mxu0 0.0
        %1501 = vmatprep.subr.mxu0 0.0
        %1502 = vmatpush1.msra.mxu0 0.0
        %1503 = vmatprep.subr.mxu0 0.0
        %1504 = vmatpush1.msra.mxu0 0.0
        %1505 = vmatprep.subr.mxu0 0.0
        %1506 = vmatpush1.msra.mxu0 0.0
        %1507 = vmatprep.subr.mxu0 0.0
        %1508 = vmatpush1.msra.mxu0 0.0
        %1509 = vmatprep.subr.mxu0 0.0
        %1510 = vmatpush1.msra.mxu0 0.0
        %1511 = vmatprep.subr.mxu0 0.0
        %1512 = vmatpush1.msra.mxu0 0.0
        %1513 = vmatprep.subr.mxu0 0.0
        %1514 = vmatpush1.msra.mxu0 0.0
        %1515 = vmatprep.subr.mxu0 0.0
        %1516 = vmatpush1.msra.mxu0 0.0
        %1517 = vmatprep.subr.mxu0 0.0
        %1518 = vmatpush1.msra.mxu0 0.0
        %1519 = vmatprep.subr.mxu0 0.0
        %1520 = vmatpush1.msra.mxu0 0.0
        %1521 = vmatprep.subr.mxu0 0.0
        %1522 = vmatpush1.msra.mxu0 0.0
        %1523 = vmatprep.subr.mxu0 0.0
        %1524 = vmatpush1.msra.mxu0 0.0
        %1525 = vmatprep.subr.mxu0 0.0
        %1526 = vmatpush1.msra.mxu0 0.0
        %1527 = vmatprep.subr.mxu0 0.0
        %1528 = vmatpush1.msra.mxu0 0.0
        %1529 = vmatprep.subr.mxu0 0.0
        %1530 = vmatpush1.msra.mxu0 0.0
        %1531 = vmatprep.subr.mxu0 0.0
        %1532 = vmatpush1.msra.mxu0 0.0
        %1533 = vmatprep.subr.mxu0 0.0
        %1534 = vmatpush1.msra.mxu0 0.0
        %1535 = vmatprep.subr.mxu0 0.0
        %1536 = vmatpush1.msra.mxu0 0.0
        %1537 = vmatprep.subr.mxu0 0.0
        %1538 = vmatpush1.msra.mxu0 0.0
        %1539 = vmatprep.subr.mxu0 0.0
        %1540 = vmatpush1.msra.mxu0 0.0
        %1541 = vmatprep.mubr.f32.mxu0 0.0
        %1542 = vmatmul.mubr.f32.gmra.mrb[0].mxu0 %v1475
        %v1543 = vpop.f32.mrb[0].mxu0
        %v1544 = vadd.f32 0.0, %v1543
        %v1545 = vpop.f32.mrb[0].mxu0
        %1546 = vdwg.mxu0
        %1547 = vxpose.xlu0.b32.start [1/16] %v1290, 128
        %1548 = vxpose.xlu0.b32.cont [2/16] 0.0, 128
        %1549 = vxpose.xlu0.b32.cont [3/16] 0.0, 128
        %1550 = vxpose.xlu0.b32.cont [4/16] 0.0, 128
        %1551 = vxpose.xlu0.b32.cont [5/16] 0.0, 128
        %1552 = vxpose.xlu0.b32.cont [6/16] 0.0, 128
        %1553 = vxpose.xlu0.b32.cont [7/16] 0.0, 128
        %1554 = vxpose.xlu0.b32.cont [8/16] 0.0, 128
        %1555 = vxpose.xlu0.b32.cont [9/16] 0.0, 128
        %1556 = vxpose.xlu0.b32.cont [10/16] 0.0, 128
        %1557 = vxpose.xlu0.b32.cont [11/16] 0.0, 128
        %1558 = vxpose.xlu0.b32.cont [12/16] 0.0, 128
        %1559 = vxpose.xlu0.b32.cont [13/16] 0.0, 128
        %1560 = vxpose.xlu0.b32.cont [14/16] 0.0, 128
        %1561 = vxpose.xlu0.b32.cont [15/16] 0.0, 128
        %1562 = vxpose.xlu0.b32.end [16/16] 0.0, 128
        %v1563 = vpop.trf.xlu0
        %v1564 = vpop.trf.xlu0
        %v1565 = vpop.trf.xlu0
        %v1566 = vpop.trf.xlu0
        %v1567 = vpop.trf.xlu0
        %v1568 = vpop.trf.xlu0
        %v1569 = vpop.trf.xlu0
        %v1570 = vpop.trf.xlu0
        %v1571 = vpop.trf.xlu0
        %v1572 = vpop.trf.xlu0
        %v1573 = vpop.trf.xlu0
        %v1574 = vpop.trf.xlu0
        %v1575 = vpop.trf.xlu0
        %v1576 = vpop.trf.xlu0
        %v1577 = vpop.trf.xlu0
        %v1578 = vpop.trf.xlu0
        %v1580 = vsel %vm1473, %v1563, 0
        %1582 = vmatprep.subr.mxu0 0.0
        %1583 = vmatpush1.msra.mxu0 %v1438
        %1584 = vmatprep.subr.mxu0 0.0
        %1585 = vmatpush1.msra.mxu0 0.0
        %1586 = vmatprep.subr.mxu0 0.0
        %1587 = vmatpush1.msra.mxu0 0.0
        %1588 = vmatprep.subr.mxu0 0.0
        %1589 = vmatpush1.msra.mxu0 0.0
        %1590 = vmatprep.subr.mxu0 0.0
        %1591 = vmatpush1.msra.mxu0 0.0
        %1592 = vmatprep.subr.mxu0 0.0
        %1593 = vmatpush1.msra.mxu0 0.0
        %1594 = vmatprep.subr.mxu0 0.0
        %1595 = vmatpush1.msra.mxu0 0.0
        %1596 = vmatprep.subr.mxu0 0.0
        %1597 = vmatpush1.msra.mxu0 0.0
        %1598 = vmatprep.subr.mxu0 0.0
        %1599 = vmatpush1.msra.mxu0 0.0
        %1600 = vmatprep.subr.mxu0 0.0
        %1601 = vmatpush1.msra.mxu0 0.0
        %1602 = vmatprep.subr.mxu0 0.0
        %1603 = vmatpush1.msra.mxu0 0.0
        %1604 = vmatprep.subr.mxu0 0.0
        %1605 = vmatpush1.msra.mxu0 0.0
        %1606 = vmatprep.subr.mxu0 0.0
        %1607 = vmatpush1.msra.mxu0 0.0
        %1608 = vmatprep.subr.mxu0 0.0
        %1609 = vmatpush1.msra.mxu0 0.0
        %1610 = vmatprep.subr.mxu0 0.0
        %1611 = vmatpush1.msra.mxu0 0.0
        %1612 = vmatprep.subr.mxu0 0.0
        %1613 = vmatpush1.msra.mxu0 0.0
        %1614 = vmatprep.subr.mxu0 0.0
        %1615 = vmatpush1.msra.mxu0 0.0
        %1616 = vmatprep.subr.mxu0 0.0
        %1617 = vmatpush1.msra.mxu0 0.0
        %1618 = vmatprep.subr.mxu0 0.0
        %1619 = vmatpush1.msra.mxu0 0.0
        %1620 = vmatprep.subr.mxu0 0.0
        %1621 = vmatpush1.msra.mxu0 0.0
        %1622 = vmatprep.subr.mxu0 0.0
        %1623 = vmatpush1.msra.mxu0 0.0
        %1624 = vmatprep.subr.mxu0 0.0
        %1625 = vmatpush1.msra.mxu0 0.0
        %1626 = vmatprep.subr.mxu0 0.0
        %1627 = vmatpush1.msra.mxu0 0.0
        %1628 = vmatprep.subr.mxu0 0.0
        %1629 = vmatpush1.msra.mxu0 0.0
        %1630 = vmatprep.subr.mxu0 0.0
        %1631 = vmatpush1.msra.mxu0 0.0
        %1632 = vmatprep.subr.mxu0 0.0
        %1633 = vmatpush1.msra.mxu0 0.0
        %1634 = vmatprep.subr.mxu0 0.0
        %1635 = vmatpush1.msra.mxu0 0.0
        %1636 = vmatprep.subr.mxu0 0.0
        %1637 = vmatpush1.msra.mxu0 0.0
        %1638 = vmatprep.subr.mxu0 0.0
        %1639 = vmatpush1.msra.mxu0 0.0
        %1640 = vmatprep.subr.mxu0 0.0
        %1641 = vmatpush1.msra.mxu0 0.0
        %1642 = vmatprep.subr.mxu0 0.0
        %1643 = vmatpush1.msra.mxu0 0.0
        %1644 = vmatprep.subr.mxu0 0.0
        %1645 = vmatpush1.msra.mxu0 0.0
        %1646 = vmatprep.mubr.f32.mxu0 0.0
        %1647 = vmatmul.mubr.f32.gmra.mrb[0].mxu0 %v1580
        %v1648 = vpop.f32.mrb[0].mxu0
        %v1649 = vadd.f32 0.0, %v1648
        %v1650 = vpop.f32.mrb[0].mxu0
        %1651 = vdwg.mxu0
        %1652 = vxpose.xlu0.b32.start [1/16] %v1291, 128
        %1653 = vxpose.xlu0.b32.cont [2/16] 0.0, 128
        %1654 = vxpose.xlu0.b32.cont [3/16] 0.0, 128
        %1655 = vxpose.xlu0.b32.cont [4/16] 0.0, 128
        %1656 = vxpose.xlu0.b32.cont [5/16] 0.0, 128
        %1657 = vxpose.xlu0.b32.cont [6/16] 0.0, 128
        %1658 = vxpose.xlu0.b32.cont [7/16] 0.0, 128
        %1659 = vxpose.xlu0.b32.cont [8/16] 0.0, 128
        %1660 = vxpose.xlu0.b32.cont [9/16] 0.0, 128
        %1661 = vxpose.xlu0.b32.cont [10/16] 0.0, 128
        %1662 = vxpose.xlu0.b32.cont [11/16] 0.0, 128
        %1663 = vxpose.xlu0.b32.cont [12/16] 0.0, 128
        %1664 = vxpose.xlu0.b32.cont [13/16] 0.0, 128
        %1665 = vxpose.xlu0.b32.cont [14/16] 0.0, 128
        %1666 = vxpose.xlu0.b32.cont [15/16] 0.0, 128
        %1667 = vxpose.xlu0.b32.end [16/16] 0.0, 128
        %v1668 = vpop.trf.xlu0
        %v1669 = vpop.trf.xlu0
        %v1670 = vpop.trf.xlu0
        %v1671 = vpop.trf.xlu0
        %v1672 = vpop.trf.xlu0
        %v1673 = vpop.trf.xlu0
        %v1674 = vpop.trf.xlu0
        %v1675 = vpop.trf.xlu0
        %v1676 = vpop.trf.xlu0
        %v1677 = vpop.trf.xlu0
        %v1678 = vpop.trf.xlu0
        %v1679 = vpop.trf.xlu0
        %v1680 = vpop.trf.xlu0
        %v1681 = vpop.trf.xlu0
        %v1682 = vpop.trf.xlu0
        %v1683 = vpop.trf.xlu0
        %v1685 = vsel %vm1473, %v1668, 0
        %1687 = vmatprep.subr.mxu0 0.0
        %1688 = vmatpush1.msra.mxu0 %v1439
        %1689 = vmatprep.subr.mxu0 0.0
        %1690 = vmatpush1.msra.mxu0 0.0
        %1691 = vmatprep.subr.mxu0 0.0
        %1692 = vmatpush1.msra.mxu0 0.0
        %1693 = vmatprep.subr.mxu0 0.0
        %1694 = vmatpush1.msra.mxu0 0.0
        %1695 = vmatprep.subr.mxu0 0.0
        %1696 = vmatpush1.msra.mxu0 0.0
        %1697 = vmatprep.subr.mxu0 0.0
        %1698 = vmatpush1.msra.mxu0 0.0
        %1699 = vmatprep.subr.mxu0 0.0
        %1700 = vmatpush1.msra.mxu0 0.0
        %1701 = vmatprep.subr.mxu0 0.0
        %1702 = vmatpush1.msra.mxu0 0.0
        %1703 = vmatprep.subr.mxu0 0.0
        %1704 = vmatpush1.msra.mxu0 0.0
        %1705 = vmatprep.subr.mxu0 0.0
        %1706 = vmatpush1.msra.mxu0 0.0
        %1707 = vmatprep.subr.mxu0 0.0
        %1708 = vmatpush1.msra.mxu0 0.0
        %1709 = vmatprep.subr.mxu0 0.0
        %1710 = vmatpush1.msra.mxu0 0.0
        %1711 = vmatprep.subr.mxu0 0.0
        %1712 = vmatpush1.msra.mxu0 0.0
        %1713 = vmatprep.subr.mxu0 0.0
        %1714 = vmatpush1.msra.mxu0 0.0
        %1715 = vmatprep.subr.mxu0 0.0
        %1716 = vmatpush1.msra.mxu0 0.0
        %1717 = vmatprep.subr.mxu0 0.0
        %1718 = vmatpush1.msra.mxu0 0.0
        %1719 = vmatprep.subr.mxu0 0.0
        %1720 = vmatpush1.msra.mxu0 0.0
        %1721 = vmatprep.subr.mxu0 0.0
        %1722 = vmatpush1.msra.mxu0 0.0
        %1723 = vmatprep.subr.mxu0 0.0
        %1724 = vmatpush1.msra.mxu0 0.0
        %1725 = vmatprep.subr.mxu0 0.0
        %1726 = vmatpush1.msra.mxu0 0.0
        %1727 = vmatprep.subr.mxu0 0.0
        %1728 = vmatpush1.msra.mxu0 0.0
        %1729 = vmatprep.subr.mxu0 0.0
        %1730 = vmatpush1.msra.mxu0 0.0
        %1731 = vmatprep.subr.mxu0 0.0
        %1732 = vmatpush1.msra.mxu0 0.0
        %1733 = vmatprep.subr.mxu0 0.0
        %1734 = vmatpush1.msra.mxu0 0.0
        %1735 = vmatprep.subr.mxu0 0.0
        %1736 = vmatpush1.msra.mxu0 0.0
        %1737 = vmatprep.subr.mxu0 0.0
        %1738 = vmatpush1.msra.mxu0 0.0
        %1739 = vmatprep.subr.mxu0 0.0
        %1740 = vmatpush1.msra.mxu0 0.0
        %1741 = vmatprep.subr.mxu0 0.0
        %1742 = vmatpush1.msra.mxu0 0.0
        %1743 = vmatprep.subr.mxu0 0.0
        %1744 = vmatpush1.msra.mxu0 0.0
        %1745 = vmatprep.subr.mxu0 0.0
        %1746 = vmatpush1.msra.mxu0 0.0
        %1747 = vmatprep.subr.mxu0 0.0
        %1748 = vmatpush1.msra.mxu0 0.0
        %1749 = vmatprep.subr.mxu0 0.0
        %1750 = vmatpush1.msra.mxu0 0.0
        %1751 = vmatprep.mubr.f32.mxu0 0.0
        %1752 = vmatmul.mubr.f32.gmra.mrb[0].mxu0 %v1685
        %v1753 = vpop.f32.mrb[0].mxu0
        %v1754 = vadd.f32 0.0, %v1753
        %v1755 = vpop.f32.mrb[0].mxu0
        %1756 = vdwg.mxu0
        %1757 = vxpose.xlu0.b32.start [1/16] %v1292, 128
        %1758 = vxpose.xlu0.b32.cont [2/16] 0.0, 128
        %1759 = vxpose.xlu0.b32.cont [3/16] 0.0, 128
        %1760 = vxpose.xlu0.b32.cont [4/16] 0.0, 128
        %1761 = vxpose.xlu0.b32.cont [5/16] 0.0, 128
        %1762 = vxpose.xlu0.b32.cont [6/16] 0.0, 128
        %1763 = vxpose.xlu0.b32.cont [7/16] 0.0, 128
        %1764 = vxpose.xlu0.b32.cont [8/16] 0.0, 128
        %1765 = vxpose.xlu0.b32.cont [9/16] 0.0, 128
        %1766 = vxpose.xlu0.b32.cont [10/16] 0.0, 128
        %1767 = vxpose.xlu0.b32.cont [11/16] 0.0, 128
        %1768 = vxpose.xlu0.b32.cont [12/16] 0.0, 128
        %1769 = vxpose.xlu0.b32.cont [13/16] 0.0, 128
        %1770 = vxpose.xlu0.b32.cont [14/16] 0.0, 128
        %1771 = vxpose.xlu0.b32.cont [15/16] 0.0, 128
        %1772 = vxpose.xlu0.b32.end [16/16] 0.0, 128
        %v1773 = vpop.trf.xlu0
        %v1774 = vpop.trf.xlu0
        %v1775 = vpop.trf.xlu0
        %v1776 = vpop.trf.xlu0
        %v1777 = vpop.trf.xlu0
        %v1778 = vpop.trf.xlu0
        %v1779 = vpop.trf.xlu0
        %v1780 = vpop.trf.xlu0
        %v1781 = vpop.trf.xlu0
        %v1782 = vpop.trf.xlu0
        %v1783 = vpop.trf.xlu0
        %v1784 = vpop.trf.xlu0
        %v1785 = vpop.trf.xlu0
        %v1786 = vpop.trf.xlu0
        %v1787 = vpop.trf.xlu0
        %v1788 = vpop.trf.xlu0
        %v1790 = vsel %vm1473, %v1773, 0
        %1792 = vmatprep.subr.mxu0 0.0
        %1793 = vmatpush1.msra.mxu0 %v1440
        %1794 = vmatprep.subr.mxu0 0.0
        %1795 = vmatpush1.msra.mxu0 0.0
        %1796 = vmatprep.subr.mxu0 0.0
        %1797 = vmatpush1.msra.mxu0 0.0
        %1798 = vmatprep.subr.mxu0 0.0
        %1799 = vmatpush1.msra.mxu0 0.0
        %1800 = vmatprep.subr.mxu0 0.0
        %1801 = vmatpush1.msra.mxu0 0.0
        %1802 = vmatprep.subr.mxu0 0.0
        %1803 = vmatpush1.msra.mxu0 0.0
        %1804 = vmatprep.subr.mxu0 0.0
        %1805 = vmatpush1.msra.mxu0 0.0
        %1806 = vmatprep.subr.mxu0 0.0
        %1807 = vmatpush1.msra.mxu0 0.0
        %1808 = vmatprep.subr.mxu0 0.0
        %1809 = vmatpush1.msra.mxu0 0.0
        %1810 = vmatprep.subr.mxu0 0.0
        %1811 = vmatpush1.msra.mxu0 0.0
        %1812 = vmatprep.subr.mxu0 0.0
        %1813 = vmatpush1.msra.mxu0 0.0
        %1814 = vmatprep.subr.mxu0 0.0
        %1815 = vmatpush1.msra.mxu0 0.0
        %1816 = vmatprep.subr.mxu0 0.0
        %1817 = vmatpush1.msra.mxu0 0.0
        %1818 = vmatprep.subr.mxu0 0.0
        %1819 = vmatpush1.msra.mxu0 0.0
        %1820 = vmatprep.subr.mxu0 0.0
        %1821 = vmatpush1.msra.mxu0 0.0
        %1822 = vmatprep.subr.mxu0 0.0
        %1823 = vmatpush1.msra.mxu0 0.0
        %1824 = vmatprep.subr.mxu0 0.0
        %1825 = vmatpush1.msra.mxu0 0.0
        %1826 = vmatprep.subr.mxu0 0.0
        %1827 = vmatpush1.msra.mxu0 0.0
        %1828 = vmatprep.subr.mxu0 0.0
        %1829 = vmatpush1.msra.mxu0 0.0
        %1830 = vmatprep.subr.mxu0 0.0
        %1831 = vmatpush1.msra.mxu0 0.0
        %1832 = vmatprep.subr.mxu0 0.0
        %1833 = vmatpush1.msra.mxu0 0.0
        %1834 = vmatprep.subr.mxu0 0.0
        %1835 = vmatpush1.msra.mxu0 0.0
        %1836 = vmatprep.subr.mxu0 0.0
        %1837 = vmatpush1.msra.mxu0 0.0
        %1838 = vmatprep.subr.mxu0 0.0
        %1839 = vmatpush1.msra.mxu0 0.0
        %1840 = vmatprep.subr.mxu0 0.0
        %1841 = vmatpush1.msra.mxu0 0.0
        %1842 = vmatprep.subr.mxu0 0.0
        %1843 = vmatpush1.msra.mxu0 0.0
        %1844 = vmatprep.subr.mxu0 0.0
        %1845 = vmatpush1.msra.mxu0 0.0
        %1846 = vmatprep.subr.mxu0 0.0
        %1847 = vmatpush1.msra.mxu0 0.0
        %1848 = vmatprep.subr.mxu0 0.0
        %1849 = vmatpush1.msra.mxu0 0.0
        %1850 = vmatprep.subr.mxu0 0.0
        %1851 = vmatpush1.msra.mxu0 0.0
        %1852 = vmatprep.subr.mxu0 0.0
        %1853 = vmatpush1.msra.mxu0 0.0
        %1854 = vmatprep.subr.mxu0 0.0
        %1855 = vmatpush1.msra.mxu0 0.0
        %1856 = vmatprep.mubr.f32.mxu0 0.0
        %1857 = vmatmul.mubr.f32.gmra.mrb[0].mxu0 %v1790
        %v1858 = vpop.f32.mrb[0].mxu0
        %v1859 = vadd.f32 0.0, %v1858
        %v1860 = vpop.f32.mrb[0].mxu0
        %1861 = vdwg.mxu0
        %v1863 = vsel %vm1473, %v1141, 0
        %1865 = vmatprep.subr.mxu0 0.0
        %1866 = vmatpush1.msra.mxu0 %v1544
        %1867 = vmatprep.subr.mxu0 0.0
        %1868 = vmatpush1.msra.mxu0 0.0
        %1869 = vmatprep.subr.mxu0 0.0
        %1870 = vmatpush1.msra.mxu0 0.0
        %1871 = vmatprep.subr.mxu0 0.0
        %1872 = vmatpush1.msra.mxu0 0.0
        %1873 = vmatprep.subr.mxu0 0.0
        %1874 = vmatpush1.msra.mxu0 0.0
        %1875 = vmatprep.subr.mxu0 0.0
        %1876 = vmatpush1.msra.mxu0 0.0
        %1877 = vmatprep.subr.mxu0 0.0
        %1878 = vmatpush1.msra.mxu0 0.0
        %1879 = vmatprep.subr.mxu0 0.0
        %1880 = vmatpush1.msra.mxu0 0.0
        %1881 = vmatprep.subr.mxu0 0.0
        %1882 = vmatpush1.msra.mxu0 0.0
        %1883 = vmatprep.subr.mxu0 0.0
        %1884 = vmatpush1.msra.mxu0 0.0
        %1885 = vmatprep.subr.mxu0 0.0
        %1886 = vmatpush1.msra.mxu0 0.0
        %1887 = vmatprep.subr.mxu0 0.0
        %1888 = vmatpush1.msra.mxu0 0.0
        %1889 = vmatprep.subr.mxu0 0.0
        %1890 = vmatpush1.msra.mxu0 0.0
        %1891 = vmatprep.subr.mxu0 0.0
        %1892 = vmatpush1.msra.mxu0 0.0
        %1893 = vmatprep.subr.mxu0 0.0
        %1894 = vmatpush1.msra.mxu0 0.0
        %1895 = vmatprep.subr.mxu0 0.0
        %1896 = vmatpush1.msra.mxu0 0.0
        %1897 = vmatprep.subr.mxu0 0.0
        %1898 = vmatpush1.msra.mxu0 0.0
        %1899 = vmatprep.subr.mxu0 0.0
        %1900 = vmatpush1.msra.mxu0 0.0
        %1901 = vmatprep.subr.mxu0 0.0
        %1902 = vmatpush1.msra.mxu0 0.0
        %1903 = vmatprep.subr.mxu0 0.0
        %1904 = vmatpush1.msra.mxu0 0.0
        %1905 = vmatprep.subr.mxu0 0.0
        %1906 = vmatpush1.msra.mxu0 0.0
        %1907 = vmatprep.subr.mxu0 0.0
        %1908 = vmatpush1.msra.mxu0 0.0
        %1909 = vmatprep.subr.mxu0 0.0
        %1910 = vmatpush1.msra.mxu0 0.0
        %1911 = vmatprep.subr.mxu0 0.0
        %1912 = vmatpush1.msra.mxu0 0.0
        %1913 = vmatprep.subr.mxu0 0.0
        %1914 = vmatpush1.msra.mxu0 0.0
        %1915 = vmatprep.subr.mxu0 0.0
        %1916 = vmatpush1.msra.mxu0 0.0
        %1917 = vmatprep.subr.mxu0 0.0
        %1918 = vmatpush1.msra.mxu0 0.0
        %1919 = vmatprep.subr.mxu0 0.0
        %1920 = vmatpush1.msra.mxu0 0.0
        %1921 = vmatprep.subr.mxu0 0.0
        %1922 = vmatpush1.msra.mxu0 0.0
        %1923 = vmatprep.subr.mxu0 0.0
        %1924 = vmatpush1.msra.mxu0 0.0
        %1925 = vmatprep.subr.mxu0 0.0
        %1926 = vmatpush1.msra.mxu0 0.0
        %1927 = vmatprep.subr.mxu0 0.0
        %1928 = vmatpush1.msra.mxu0 0.0
        %1929 = vmatprep.mubr.f32.mxu0 0.0
        %1930 = vmatmul.mubr.f32.gmra.mrb[0].mxu0 %v1863
        %v1931 = vpop.f32.mrb[0].mxu0
        %v1932 = vadd.f32 0.0, %v1931
        %v1933 = vpop.f32.mrb[0].mxu0
        %1934 = vdwg.mxu0
        %v1936 = vsel %vm1473, %v1142, 0
        %1938 = vmatprep.subr.mxu0 0.0
        %1939 = vmatpush1.msra.mxu0 %v1649
        %1940 = vmatprep.subr.mxu0 0.0
        %1941 = vmatpush1.msra.mxu0 0.0
        %1942 = vmatprep.subr.mxu0 0.0
        %1943 = vmatpush1.msra.mxu0 0.0
        %1944 = vmatprep.subr.mxu0 0.0
        %1945 = vmatpush1.msra.mxu0 0.0
        %1946 = vmatprep.subr.mxu0 0.0
        %1947 = vmatpush1.msra.mxu0 0.0
        %1948 = vmatprep.subr.mxu0 0.0
        %1949 = vmatpush1.msra.mxu0 0.0
        %1950 = vmatprep.subr.mxu0 0.0
        %1951 = vmatpush1.msra.mxu0 0.0
        %1952 = vmatprep.subr.mxu0 0.0
        %1953 = vmatpush1.msra.mxu0 0.0
        %1954 = vmatprep.subr.mxu0 0.0
        %1955 = vmatpush1.msra.mxu0 0.0
        %1956 = vmatprep.subr.mxu0 0.0
        %1957 = vmatpush1.msra.mxu0 0.0
        %1958 = vmatprep.subr.mxu0 0.0
        %1959 = vmatpush1.msra.mxu0 0.0
        %1960 = vmatprep.subr.mxu0 0.0
        %1961 = vmatpush1.msra.mxu0 0.0
        %1962 = vmatprep.subr.mxu0 0.0
        %1963 = vmatpush1.msra.mxu0 0.0
        %1964 = vmatprep.subr.mxu0 0.0
        %1965 = vmatpush1.msra.mxu0 0.0
        %1966 = vmatprep.subr.mxu0 0.0
        %1967 = vmatpush1.msra.mxu0 0.0
        %1968 = vmatprep.subr.mxu0 0.0
        %1969 = vmatpush1.msra.mxu0 0.0
        %1970 = vmatprep.subr.mxu0 0.0
        %1971 = vmatpush1.msra.mxu0 0.0
        %1972 = vmatprep.subr.mxu0 0.0
        %1973 = vmatpush1.msra.mxu0 0.0
        %1974 = vmatprep.subr.mxu0 0.0
        %1975 = vmatpush1.msra.mxu0 0.0
        %1976 = vmatprep.subr.mxu0 0.0
        %1977 = vmatpush1.msra.mxu0 0.0
        %1978 = vmatprep.subr.mxu0 0.0
        %1979 = vmatpush1.msra.mxu0 0.0
        %1980 = vmatprep.subr.mxu0 0.0
        %1981 = vmatpush1.msra.mxu0 0.0
        %1982 = vmatprep.subr.mxu0 0.0
        %1983 = vmatpush1.msra.mxu0 0.0
        %1984 = vmatprep.subr.mxu0 0.0
        %1985 = vmatpush1.msra.mxu0 0.0
        %1986 = vmatprep.subr.mxu0 0.0
        %1987 = vmatpush1.msra.mxu0 0.0
        %1988 = vmatprep.subr.mxu0 0.0
        %1989 = vmatpush1.msra.mxu0 0.0
        %1990 = vmatprep.subr.mxu0 0.0
        %1991 = vmatpush1.msra.mxu0 0.0
        %1992 = vmatprep.subr.mxu0 0.0
        %1993 = vmatpush1.msra.mxu0 0.0
        %1994 = vmatprep.subr.mxu0 0.0
        %1995 = vmatpush1.msra.mxu0 0.0
        %1996 = vmatprep.subr.mxu0 0.0
        %1997 = vmatpush1.msra.mxu0 0.0
        %1998 = vmatprep.subr.mxu0 0.0
        %1999 = vmatpush1.msra.mxu0 0.0
        %2000 = vmatprep.subr.mxu0 0.0
        %2001 = vmatpush1.msra.mxu0 0.0
        %2002 = vmatprep.mubr.f32.mxu0 0.0
        %2003 = vmatmul.mubr.f32.gmra.mrb[0].mxu0 %v1936
        %v2004 = vpop.f32.mrb[0].mxu0
        %v2005 = vadd.f32 0.0, %v2004
        %v2006 = vpop.f32.mrb[0].mxu0
        %2007 = vdwg.mxu0
        %v2009 = vsel %vm1473, %v1143, 0
        %2011 = vmatprep.subr.mxu0 0.0
        %2012 = vmatpush1.msra.mxu0 %v1754
        %2013 = vmatprep.subr.mxu0 0.0
        %2014 = vmatpush1.msra.mxu0 0.0
        %2015 = vmatprep.subr.mxu0 0.0
        %2016 = vmatpush1.msra.mxu0 0.0
        %2017 = vmatprep.subr.mxu0 0.0
        %2018 = vmatpush1.msra.mxu0 0.0
        %2019 = vmatprep.subr.mxu0 0.0
        %2020 = vmatpush1.msra.mxu0 0.0
        %2021 = vmatprep.subr.mxu0 0.0
        %2022 = vmatpush1.msra.mxu0 0.0
        %2023 = vmatprep.subr.mxu0 0.0
        %2024 = vmatpush1.msra.mxu0 0.0
        %2025 = vmatprep.subr.mxu0 0.0
        %2026 = vmatpush1.msra.mxu0 0.0
        %2027 = vmatprep.subr.mxu0 0.0
        %2028 = vmatpush1.msra.mxu0 0.0
        %2029 = vmatprep.subr.mxu0 0.0
        %2030 = vmatpush1.msra.mxu0 0.0
        %2031 = vmatprep.subr.mxu0 0.0
        %2032 = vmatpush1.msra.mxu0 0.0
        %2033 = vmatprep.subr.mxu0 0.0
        %2034 = vmatpush1.msra.mxu0 0.0
        %2035 = vmatprep.subr.mxu0 0.0
        %2036 = vmatpush1.msra.mxu0 0.0
        %2037 = vmatprep.subr.mxu0 0.0
        %2038 = vmatpush1.msra.mxu0 0.0
        %2039 = vmatprep.subr.mxu0 0.0
        %2040 = vmatpush1.msra.mxu0 0.0
        %2041 = vmatprep.subr.mxu0 0.0
        %2042 = vmatpush1.msra.mxu0 0.0
        %2043 = vmatprep.subr.mxu0 0.0
        %2044 = vmatpush1.msra.mxu0 0.0
        %2045 = vmatprep.subr.mxu0 0.0
        %2046 = vmatpush1.msra.mxu0 0.0
        %2047 = vmatprep.subr.mxu0 0.0
        %2048 = vmatpush1.msra.mxu0 0.0
        %2049 = vmatprep.subr.mxu0 0.0
        %2050 = vmatpush1.msra.mxu0 0.0
        %2051 = vmatprep.subr.mxu0 0.0
        %2052 = vmatpush1.msra.mxu0 0.0
        %2053 = vmatprep.subr.mxu0 0.0
        %2054 = vmatpush1.msra.mxu0 0.0
        %2055 = vmatprep.subr.mxu0 0.0
        %2056 = vmatpush1.msra.mxu0 0.0
        %2057 = vmatprep.subr.mxu0 0.0
        %2058 = vmatpush1.msra.mxu0 0.0
        %2059 = vmatprep.subr.mxu0 0.0
        %2060 = vmatpush1.msra.mxu0 0.0
        %2061 = vmatprep.subr.mxu0 0.0
        %2062 = vmatpush1.msra.mxu0 0.0
        %2063 = vmatprep.subr.mxu0 0.0
        %2064 = vmatpush1.msra.mxu0 0.0
        %2065 = vmatprep.subr.mxu0 0.0
        %2066 = vmatpush1.msra.mxu0 0.0
        %2067 = vmatprep.subr.mxu0 0.0
        %2068 = vmatpush1.msra.mxu0 0.0
        %2069 = vmatprep.subr.mxu0 0.0
        %2070 = vmatpush1.msra.mxu0 0.0
        %2071 = vmatprep.subr.mxu0 0.0
        %2072 = vmatpush1.msra.mxu0 0.0
        %2073 = vmatprep.subr.mxu0 0.0
        %2074 = vmatpush1.msra.mxu0 0.0
        %2075 = vmatprep.mubr.f32.mxu0 0.0
        %2076 = vmatmul.mubr.f32.gmra.mrb[0].mxu0 %v2009
        %v2077 = vpop.f32.mrb[0].mxu0
        %v2078 = vadd.f32 0.0, %v2077
        %v2079 = vpop.f32.mrb[0].mxu0
        %2080 = vdwg.mxu0
        %v2082 = vsel %vm1473, %v1144, 0
        %2084 = vmatprep.subr.mxu0 0.0
        %2085 = vmatpush1.msra.mxu0 %v1859
        %2086 = vmatprep.subr.mxu0 0.0
        %2087 = vmatpush1.msra.mxu0 0.0
        %2088 = vmatprep.subr.mxu0 0.0
        %2089 = vmatpush1.msra.mxu0 0.0
        %2090 = vmatprep.subr.mxu0 0.0
        %2091 = vmatpush1.msra.mxu0 0.0
        %2092 = vmatprep.subr.mxu0 0.0
        %2093 = vmatpush1.msra.mxu0 0.0
        %2094 = vmatprep.subr.mxu0 0.0
        %2095 = vmatpush1.msra.mxu0 0.0
        %2096 = vmatprep.subr.mxu0 0.0
        %2097 = vmatpush1.msra.mxu0 0.0
        %2098 = vmatprep.subr.mxu0 0.0
        %2099 = vmatpush1.msra.mxu0 0.0
        %2100 = vmatprep.subr.mxu0 0.0
        %2101 = vmatpush1.msra.mxu0 0.0
        %2102 = vmatprep.subr.mxu0 0.0
        %2103 = vmatpush1.msra.mxu0 0.0
        %2104 = vmatprep.subr.mxu0 0.0
        %2105 = vmatpush1.msra.mxu0 0.0
        %2106 = vmatprep.subr.mxu0 0.0
        %2107 = vmatpush1.msra.mxu0 0.0
        %2108 = vmatprep.subr.mxu0 0.0
        %2109 = vmatpush1.msra.mxu0 0.0
        %2110 = vmatprep.subr.mxu0 0.0
        %2111 = vmatpush1.msra.mxu0 0.0
        %2112 = vmatprep.subr.mxu0 0.0
        %2113 = vmatpush1.msra.mxu0 0.0
        %2114 = vmatprep.subr.mxu0 0.0
        %2115 = vmatpush1.msra.mxu0 0.0
        %2116 = vmatprep.subr.mxu0 0.0
        %2117 = vmatpush1.msra.mxu0 0.0
        %2118 = vmatprep.subr.mxu0 0.0
        %2119 = vmatpush1.msra.mxu0 0.0
        %2120 = vmatprep.subr.mxu0 0.0
        %2121 = vmatpush1.msra.mxu0 0.0
        %2122 = vmatprep.subr.mxu0 0.0
        %2123 = vmatpush1.msra.mxu0 0.0
        %2124 = vmatprep.subr.mxu0 0.0
        %2125 = vmatpush1.msra.mxu0 0.0
        %2126 = vmatprep.subr.mxu0 0.0
        %2127 = vmatpush1.msra.mxu0 0.0
        %2128 = vmatprep.subr.mxu0 0.0
        %2129 = vmatpush1.msra.mxu0 0.0
        %2130 = vmatprep.subr.mxu0 0.0
        %2131 = vmatpush1.msra.mxu0 0.0
        %2132 = vmatprep.subr.mxu0 0.0
        %2133 = vmatpush1.msra.mxu0 0.0
        %2134 = vmatprep.subr.mxu0 0.0
        %2135 = vmatpush1.msra.mxu0 0.0
        %2136 = vmatprep.subr.mxu0 0.0
        %2137 = vmatpush1.msra.mxu0 0.0
        %2138 = vmatprep.subr.mxu0 0.0
        %2139 = vmatpush1.msra.mxu0 0.0
        %2140 = vmatprep.subr.mxu0 0.0
        %2141 = vmatpush1.msra.mxu0 0.0
        %2142 = vmatprep.subr.mxu0 0.0
        %2143 = vmatpush1.msra.mxu0 0.0
        %2144 = vmatprep.subr.mxu0 0.0
        %2145 = vmatpush1.msra.mxu0 0.0
        %2146 = vmatprep.subr.mxu0 0.0
        %2147 = vmatpush1.msra.mxu0 0.0
        %2148 = vmatprep.mubr.f32.mxu0 0.0
        %2149 = vmatmul.mubr.f32.gmra.mrb[0].mxu0 %v2082
        %v2150 = vpop.f32.mrb[0].mxu0
        %v2151 = vadd.f32 0.0, %v2150
        %v2152 = vpop.f32.mrb[0].mxu0
        %2153 = vdwg.mxu0
        %v2154 = vcombine.low %v1932, %v2078
        %v2155 = vcombine.high %v1932, %v2078
        %v2157 = vunpack.c.l.s4 1983009808
        %v2158 = vunpack.c.0.s8 %v2157
        %v2159 = vlaneseq
        %v2160 = vshrl.u32 %v2159, 7
        %v2161 = vsub.s32 %v2158, %v2160
        %v2162 = vrot.slane %v2154, %v2161
        %v2164 = vunpack.c.l.s4 1983009808
        %v2165 = vunpack.c.0.s8 %v2164
        %v2166 = vlaneseq
        %v2167 = vshrl.u32 %v2166, 7
        %v2168 = vsub.s32 %v2165, %v2167
        %v2169 = vrot.slane %v2155, %v2168
        %v2170 = vcombine.low %v2005, %v2151
        %v2171 = vcombine.high %v2005, %v2151
        %v2173 = vunpack.c.l.s4 1983009808
        %v2174 = vunpack.c.0.s8 %v2173
        %v2175 = vlaneseq
        %v2176 = vshrl.u32 %v2175, 7
        %v2177 = vsub.s32 %v2174, %v2176
        %v2178 = vrot.slane %v2170, %v2177
        %v2180 = vunpack.c.l.s4 1983009808
        %v2181 = vunpack.c.0.s8 %v2180
        %v2182 = vlaneseq
        %v2183 = vshrl.u32 %v2182, 7
        %v2184 = vsub.s32 %v2181, %v2183
        %v2185 = vrot.slane %v2171, %v2184
        %v2186 = vcombine.low %v2162, %v2178
        %v2187 = vcombine.high %v2162, %v2178
        %v2189 = vunpack.c.l.s4 1934713408
        %v2190 = vunpack.c.0.s8 %v2189
        %v2191 = vlaneseq
        %v2192 = vshrl.u32 %v2191, 7
        %v2193 = vsub.s32 %v2190, %v2192
        %v2194 = vrot.slane %v2186, %v2193
        %v2196 = vunpack.c.l.s4 1934713408
        %v2197 = vunpack.c.0.s8 %v2196
        %v2198 = vlaneseq
        %v2199 = vshrl.u32 %v2198, 7
        %v2200 = vsub.s32 %v2197, %v2199
        %v2201 = vrot.slane %v2187, %v2200
        %v2202 = vcombine.low %v2169, %v2185
        %v2203 = vcombine.high %v2169, %v2185
        %v2205 = vunpack.c.l.s4 1934713408
        %v2206 = vunpack.c.0.s8 %v2205
        %v2207 = vlaneseq
        %v2208 = vshrl.u32 %v2207, 7
        %v2209 = vsub.s32 %v2206, %v2208
        %v2210 = vrot.slane %v2202, %v2209
        %v2212 = vunpack.c.l.s4 1934713408
        %v2213 = vunpack.c.0.s8 %v2212
        %v2214 = vlaneseq
        %v2215 = vshrl.u32 %v2214, 7
        %v2216 = vsub.s32 %v2213, %v2215
        %v2217 = vrot.slane %v2203, %v2216
        %v2218 = vcombine.high %v2194, 0.0
        %v2219 = vcombine.high %v2201, 0.0
        %v2220 = vcombine.high %v2210, 0.0
        %v2221 = vcombine.high %v2217, 0.0
        %v2222 = vcombine.low %v2194, %v2201
        %v2224 = vunpack.c.l.s4 1983009808
        %v2225 = vunpack.c.0.s8 %v2224
        %v2226 = vlaneseq
        %v2227 = vshrl.u32 %v2226, 7
        %v2228 = vsub.s32 %v2225, %v2227
        %v2229 = vrot.slane %v2222, %v2228
        %v2230 = vcombine.low %v2218, %v2219
        %v2232 = vunpack.c.l.s4 1983009808
        %v2233 = vunpack.c.0.s8 %v2232
        %v2234 = vlaneseq
        %v2235 = vshrl.u32 %v2234, 7
        %v2236 = vsub.s32 %v2233, %v2235
        %v2237 = vrot.slane %v2230, %v2236
        %v2238 = vcombine.low %v2210, %v2217
        %v2240 = vunpack.c.l.s4 1983009808
        %v2241 = vunpack.c.0.s8 %v2240
        %v2242 = vlaneseq
        %v2243 = vshrl.u32 %v2242, 7
        %v2244 = vsub.s32 %v2241, %v2243
        %v2245 = vrot.slane %v2238, %v2244
        %v2246 = vcombine.low %v2220, %v2221
        %v2248 = vunpack.c.l.s4 1983009808
        %v2249 = vunpack.c.0.s8 %v2248
        %v2250 = vlaneseq
        %v2251 = vshrl.u32 %v2250, 7
        %v2252 = vsub.s32 %v2249, %v2251
        %v2253 = vrot.slane %v2246, %v2252
        %v2254 = vcombine.low %v2229, %v2237
        %v2255 = vcombine.high %v2229, %v2237
        %v2257 = vunpack.c.l.s4 1934713408
        %v2258 = vunpack.c.0.s8 %v2257
        %v2259 = vlaneseq
        %v2260 = vshrl.u32 %v2259, 7
        %v2261 = vsub.s32 %v2258, %v2260
        %v2262 = vrot.slane %v2254, %v2261
        %v2264 = vunpack.c.l.s4 1934713408
        %v2265 = vunpack.c.0.s8 %v2264
        %v2266 = vlaneseq
        %v2267 = vshrl.u32 %v2266, 7
        %v2268 = vsub.s32 %v2265, %v2267
        %v2269 = vrot.slane %v2255, %v2268
        %v2270 = vcombine.low %v2245, %v2253
        %v2271 = vcombine.high %v2245, %v2253
        %v2273 = vunpack.c.l.s4 1934713408
        %v2274 = vunpack.c.0.s8 %v2273
        %v2275 = vlaneseq
        %v2276 = vshrl.u32 %v2275, 7
        %v2277 = vsub.s32 %v2274, %v2276
        %v2278 = vrot.slane %v2270, %v2277
        %v2280 = vunpack.c.l.s4 1934713408
        %v2281 = vunpack.c.0.s8 %v2280
        %v2282 = vlaneseq
        %v2283 = vshrl.u32 %v2282, 7
        %v2284 = vsub.s32 %v2281, %v2283
        %v2285 = vrot.slane %v2271, %v2284
        %v2286 = vcombine.low %v2262, %v2278
        %v2287 = vcombine.high %v2262, %v2278
        %v2288 = vcombine.low %v2269, %v2285
        %v2289 = vcombine.high %v2269, %v2285
        %2291 = vrot.lane.b32.xlu0 %v2287, 8
        %v2292 = vpop.permute.xlu0 %2291
        %2295 = vrot.lane.b32.xlu0 %v2288, 16
        %v2296 = vpop.permute.xlu0 %2295
        %2299 = vrot.lane.b32.xlu0 %v2289, 24
        %v2300 = vpop.permute.xlu0 %2299
        %v2302 = vsel %vm1473, %v2286, %v2292
        %vm2303 = vcmask 130048
        %v2304 = vsel %vm2303, %v2302, %v2296
        %vm2305 = vcmask 195584
        %v2306 = vsel %vm2305, %v2304, %v2300
        %2308 = vrot.lane.b32.xlu0 %v996, 120
        %v2309 = vpop.permute.xlu0 %2308
        %2311 = vrot.lane.b32.xlu0 %v996, 112
        %v2312 = vpop.permute.xlu0 %2311
        %2314 = vrot.lane.b32.xlu0 %v996, 104
        %v2315 = vpop.permute.xlu0 %2314
        %v2317 = vcombine.low %v996, %v2312
        %v2318 = vcombine.high %v996, %v2312
        %v2320 = vunpack.c.l.s4 1983009808
        %v2321 = vunpack.c.0.s8 %v2320
        %v2322 = vlaneseq
        %v2323 = vshrl.u32 %v2322, 7
        %v2324 = vsub.s32 %v2321, %v2323
        %v2325 = vrot.slane %v2317, %v2324
        %v2327 = vunpack.c.l.s4 1983009808
        %v2328 = vunpack.c.0.s8 %v2327
        %v2329 = vlaneseq
        %v2330 = vshrl.u32 %v2329, 7
        %v2331 = vsub.s32 %v2328, %v2330
        %v2332 = vrot.slane %v2318, %v2331
        %v2333 = vcombine.low %v2309, %v2315
        %v2334 = vcombine.high %v2309, %v2315
        %v2336 = vunpack.c.l.s4 1983009808
        %v2337 = vunpack.c.0.s8 %v2336
        %v2338 = vlaneseq
        %v2339 = vshrl.u32 %v2338, 7
        %v2340 = vsub.s32 %v2337, %v2339
        %v2341 = vrot.slane %v2333, %v2340
        %v2343 = vunpack.c.l.s4 1983009808
        %v2344 = vunpack.c.0.s8 %v2343
        %v2345 = vlaneseq
        %v2346 = vshrl.u32 %v2345, 7
        %v2347 = vsub.s32 %v2344, %v2346
        %v2348 = vrot.slane %v2334, %v2347
        %v2349 = vcombine.low %v2325, %v2341
        %v2350 = vcombine.high %v2325, %v2341
        %v2352 = vunpack.c.l.s4 1934713408
        %v2353 = vunpack.c.0.s8 %v2352
        %v2354 = vlaneseq
        %v2355 = vshrl.u32 %v2354, 7
        %v2356 = vsub.s32 %v2353, %v2355
        %v2357 = vrot.slane %v2349, %v2356
        %v2359 = vunpack.c.l.s4 1934713408
        %v2360 = vunpack.c.0.s8 %v2359
        %v2361 = vlaneseq
        %v2362 = vshrl.u32 %v2361, 7
        %v2363 = vsub.s32 %v2360, %v2362
        %v2364 = vrot.slane %v2350, %v2363
        %v2365 = vcombine.low %v2332, %v2348
        %v2366 = vcombine.high %v2332, %v2348
        %v2368 = vunpack.c.l.s4 1934713408
        %v2369 = vunpack.c.0.s8 %v2368
        %v2370 = vlaneseq
        %v2371 = vshrl.u32 %v2370, 7
        %v2372 = vsub.s32 %v2369, %v2371
        %v2373 = vrot.slane %v2365, %v2372
        %v2375 = vunpack.c.l.s4 1934713408
        %v2376 = vunpack.c.0.s8 %v2375
        %v2377 = vlaneseq
        %v2378 = vshrl.u32 %v2377, 7
        %v2379 = vsub.s32 %v2376, %v2378
        %v2380 = vrot.slane %v2366, %v2379
        %v2381 = vcombine.high %v2357, 0.0
        %v2382 = vcombine.high %v2364, 0.0
        %v2383 = vcombine.high %v2373, 0.0
        %v2384 = vcombine.high %v2380, 0.0
        %v2385 = vcombine.low %v2357, %v2364
        %v2387 = vunpack.c.l.s4 1983009808
        %v2388 = vunpack.c.0.s8 %v2387
        %v2389 = vlaneseq
        %v2390 = vshrl.u32 %v2389, 7
        %v2391 = vsub.s32 %v2388, %v2390
        %v2392 = vrot.slane %v2385, %v2391
        %v2393 = vcombine.low %v2381, %v2382
        %v2395 = vunpack.c.l.s4 1983009808
        %v2396 = vunpack.c.0.s8 %v2395
        %v2397 = vlaneseq
        %v2398 = vshrl.u32 %v2397, 7
        %v2399 = vsub.s32 %v2396, %v2398
        %v2400 = vrot.slane %v2393, %v2399
        %v2401 = vcombine.low %v2373, %v2380
        %v2403 = vunpack.c.l.s4 1983009808
        %v2404 = vunpack.c.0.s8 %v2403
        %v2405 = vlaneseq
        %v2406 = vshrl.u32 %v2405, 7
        %v2407 = vsub.s32 %v2404, %v2406
        %v2408 = vrot.slane %v2401, %v2407
        %v2409 = vcombine.low %v2383, %v2384
        %v2411 = vunpack.c.l.s4 1983009808
        %v2412 = vunpack.c.0.s8 %v2411
        %v2413 = vlaneseq
        %v2414 = vshrl.u32 %v2413, 7
        %v2415 = vsub.s32 %v2412, %v2414
        %v2416 = vrot.slane %v2409, %v2415
        %v2417 = vcombine.low %v2392, %v2400
        %v2418 = vcombine.high %v2392, %v2400
        %v2420 = vunpack.c.l.s4 1934713408
        %v2421 = vunpack.c.0.s8 %v2420
        %v2422 = vlaneseq
        %v2423 = vshrl.u32 %v2422, 7
        %v2424 = vsub.s32 %v2421, %v2423
        %v2425 = vrot.slane %v2417, %v2424
        %v2427 = vunpack.c.l.s4 1934713408
        %v2428 = vunpack.c.0.s8 %v2427
        %v2429 = vlaneseq
        %v2430 = vshrl.u32 %v2429, 7
        %v2431 = vsub.s32 %v2428, %v2430
        %v2432 = vrot.slane %v2418, %v2431
        %v2433 = vcombine.low %v2408, %v2416
        %v2434 = vcombine.high %v2408, %v2416
        %v2436 = vunpack.c.l.s4 1934713408
        %v2437 = vunpack.c.0.s8 %v2436
        %v2438 = vlaneseq
        %v2439 = vshrl.u32 %v2438, 7
        %v2440 = vsub.s32 %v2437, %v2439
        %v2441 = vrot.slane %v2433, %v2440
        %v2443 = vunpack.c.l.s4 1934713408
        %v2444 = vunpack.c.0.s8 %v2443
        %v2445 = vlaneseq
        %v2446 = vshrl.u32 %v2445, 7
        %v2447 = vsub.s32 %v2444, %v2446
        %v2448 = vrot.slane %v2434, %v2447
        %v2449 = vcombine.low %v2425, %v2441
        %v2450 = vcombine.high %v2425, %v2441
        %v2451 = vcombine.low %v2432, %v2448
        %v2452 = vcombine.high %v2432, %v2448
        %2453 = vrot.lane.b32.xlu0 %v996, 96
        %v2454 = vpop.permute.xlu0 %2453
        %2455 = vrot.lane.b32.xlu0 %v2309, 96
        %v2456 = vpop.permute.xlu0 %2455
        %2457 = vrot.lane.b32.xlu0 %v2312, 96
        %v2458 = vpop.permute.xlu0 %2457
        %2459 = vrot.lane.b32.xlu0 %v2315, 96
        %v2460 = vpop.permute.xlu0 %2459
        %v2465 = vcombine.low %v2454, %v2458
        %v2466 = vcombine.high %v2454, %v2458
        %v2468 = vunpack.c.l.s4 1983009808
        %v2469 = vunpack.c.0.s8 %v2468
        %v2470 = vlaneseq
        %v2471 = vshrl.u32 %v2470, 7
        %v2472 = vsub.s32 %v2469, %v2471
        %v2473 = vrot.slane %v2465, %v2472
        %v2475 = vunpack.c.l.s4 1983009808
        %v2476 = vunpack.c.0.s8 %v2475
        %v2477 = vlaneseq
        %v2478 = vshrl.u32 %v2477, 7
        %v2479 = vsub.s32 %v2476, %v2478
        %v2480 = vrot.slane %v2466, %v2479
        %v2481 = vcombine.low %v2456, %v2460
        %v2482 = vcombine.high %v2456, %v2460
        %v2484 = vunpack.c.l.s4 1983009808
        %v2485 = vunpack.c.0.s8 %v2484
        %v2486 = vlaneseq
        %v2487 = vshrl.u32 %v2486, 7
        %v2488 = vsub.s32 %v2485, %v2487
        %v2489 = vrot.slane %v2481, %v2488
        %v2491 = vunpack.c.l.s4 1983009808
        %v2492 = vunpack.c.0.s8 %v2491
        %v2493 = vlaneseq
        %v2494 = vshrl.u32 %v2493, 7
        %v2495 = vsub.s32 %v2492, %v2494
        %v2496 = vrot.slane %v2482, %v2495
        %v2497 = vcombine.low %v2473, %v2489
        %v2498 = vcombine.high %v2473, %v2489
        %v2500 = vunpack.c.l.s4 1934713408
        %v2501 = vunpack.c.0.s8 %v2500
        %v2502 = vlaneseq
        %v2503 = vshrl.u32 %v2502, 7
        %v2504 = vsub.s32 %v2501, %v2503
        %v2505 = vrot.slane %v2497, %v2504
        %v2507 = vunpack.c.l.s4 1934713408
        %v2508 = vunpack.c.0.s8 %v2507
        %v2509 = vlaneseq
        %v2510 = vshrl.u32 %v2509, 7
        %v2511 = vsub.s32 %v2508, %v2510
        %v2512 = vrot.slane %v2498, %v2511
        %v2513 = vcombine.low %v2480, %v2496
        %v2514 = vcombine.high %v2480, %v2496
        %v2516 = vunpack.c.l.s4 1934713408
        %v2517 = vunpack.c.0.s8 %v2516
        %v2518 = vlaneseq
        %v2519 = vshrl.u32 %v2518, 7
        %v2520 = vsub.s32 %v2517, %v2519
        %v2521 = vrot.slane %v2513, %v2520
        %v2523 = vunpack.c.l.s4 1934713408
        %v2524 = vunpack.c.0.s8 %v2523
        %v2525 = vlaneseq
        %v2526 = vshrl.u32 %v2525, 7
        %v2527 = vsub.s32 %v2524, %v2526
        %v2528 = vrot.slane %v2514, %v2527
        %v2529 = vcombine.high %v2505, 0.0
        %v2530 = vcombine.high %v2512, 0.0
        %v2531 = vcombine.high %v2521, 0.0
        %v2532 = vcombine.high %v2528, 0.0
        %v2533 = vcombine.low %v2505, %v2512
        %v2535 = vunpack.c.l.s4 1983009808
        %v2536 = vunpack.c.0.s8 %v2535
        %v2537 = vlaneseq
        %v2538 = vshrl.u32 %v2537, 7
        %v2539 = vsub.s32 %v2536, %v2538
        %v2540 = vrot.slane %v2533, %v2539
        %v2541 = vcombine.low %v2529, %v2530
        %v2543 = vunpack.c.l.s4 1983009808
        %v2544 = vunpack.c.0.s8 %v2543
        %v2545 = vlaneseq
        %v2546 = vshrl.u32 %v2545, 7
        %v2547 = vsub.s32 %v2544, %v2546
        %v2548 = vrot.slane %v2541, %v2547
        %v2549 = vcombine.low %v2521, %v2528
        %v2551 = vunpack.c.l.s4 1983009808
        %v2552 = vunpack.c.0.s8 %v2551
        %v2553 = vlaneseq
        %v2554 = vshrl.u32 %v2553, 7
        %v2555 = vsub.s32 %v2552, %v2554
        %v2556 = vrot.slane %v2549, %v2555
        %v2557 = vcombine.low %v2531, %v2532
        %v2559 = vunpack.c.l.s4 1983009808
        %v2560 = vunpack.c.0.s8 %v2559
        %v2561 = vlaneseq
        %v2562 = vshrl.u32 %v2561, 7
        %v2563 = vsub.s32 %v2560, %v2562
        %v2564 = vrot.slane %v2557, %v2563
        %v2565 = vcombine.low %v2540, %v2548
        %v2566 = vcombine.high %v2540, %v2548
        %v2568 = vunpack.c.l.s4 1934713408
        %v2569 = vunpack.c.0.s8 %v2568
        %v2570 = vlaneseq
        %v2571 = vshrl.u32 %v2570, 7
        %v2572 = vsub.s32 %v2569, %v2571
        %v2573 = vrot.slane %v2565, %v2572
        %v2575 = vunpack.c.l.s4 1934713408
        %v2576 = vunpack.c.0.s8 %v2575
        %v2577 = vlaneseq
        %v2578 = vshrl.u32 %v2577, 7
        %v2579 = vsub.s32 %v2576, %v2578
        %v2580 = vrot.slane %v2566, %v2579
        %v2581 = vcombine.low %v2556, %v2564
        %v2582 = vcombine.high %v2556, %v2564
        %v2584 = vunpack.c.l.s4 1934713408
        %v2585 = vunpack.c.0.s8 %v2584
        %v2586 = vlaneseq
        %v2587 = vshrl.u32 %v2586, 7
        %v2588 = vsub.s32 %v2585, %v2587
        %v2589 = vrot.slane %v2581, %v2588
        %v2591 = vunpack.c.l.s4 1934713408
        %v2592 = vunpack.c.0.s8 %v2591
        %v2593 = vlaneseq
        %v2594 = vshrl.u32 %v2593, 7
        %v2595 = vsub.s32 %v2592, %v2594
        %v2596 = vrot.slane %v2582, %v2595
        %v2597 = vcombine.low %v2573, %v2589
        %v2598 = vcombine.high %v2573, %v2589
        %v2599 = vcombine.low %v2580, %v2596
        %v2600 = vcombine.high %v2580, %v2596
        %2601 = vrot.lane.b32.xlu0 %v996, 64
        %v2602 = vpop.permute.xlu0 %2601
        %2603 = vrot.lane.b32.xlu0 %v2309, 64
        %v2604 = vpop.permute.xlu0 %2603
        %2605 = vrot.lane.b32.xlu0 %v2312, 64
        %v2606 = vpop.permute.xlu0 %2605
        %2607 = vrot.lane.b32.xlu0 %v2315, 64
        %v2608 = vpop.permute.xlu0 %2607
        %v2613 = vcombine.low %v2602, %v2606
        %v2614 = vcombine.high %v2602, %v2606
        %v2616 = vunpack.c.l.s4 1983009808
        %v2617 = vunpack.c.0.s8 %v2616
        %v2618 = vlaneseq
        %v2619 = vshrl.u32 %v2618, 7
        %v2620 = vsub.s32 %v2617, %v2619
        %v2621 = vrot.slane %v2613, %v2620
        %v2623 = vunpack.c.l.s4 1983009808
        %v2624 = vunpack.c.0.s8 %v2623
        %v2625 = vlaneseq
        %v2626 = vshrl.u32 %v2625, 7
        %v2627 = vsub.s32 %v2624, %v2626
        %v2628 = vrot.slane %v2614, %v2627
        %v2629 = vcombine.low %v2604, %v2608
        %v2630 = vcombine.high %v2604, %v2608
        %v2632 = vunpack.c.l.s4 1983009808
        %v2633 = vunpack.c.0.s8 %v2632
        %v2634 = vlaneseq
        %v2635 = vshrl.u32 %v2634, 7
        %v2636 = vsub.s32 %v2633, %v2635
        %v2637 = vrot.slane %v2629, %v2636
        %v2639 = vunpack.c.l.s4 1983009808
        %v2640 = vunpack.c.0.s8 %v2639
        %v2641 = vlaneseq
        %v2642 = vshrl.u32 %v2641, 7
        %v2643 = vsub.s32 %v2640, %v2642
        %v2644 = vrot.slane %v2630, %v2643
        %v2645 = vcombine.low %v2621, %v2637
        %v2646 = vcombine.high %v2621, %v2637
        %v2648 = vunpack.c.l.s4 1934713408
        %v2649 = vunpack.c.0.s8 %v2648
        %v2650 = vlaneseq
        %v2651 = vshrl.u32 %v2650, 7
        %v2652 = vsub.s32 %v2649, %v2651
        %v2653 = vrot.slane %v2645, %v2652
        %v2655 = vunpack.c.l.s4 1934713408
        %v2656 = vunpack.c.0.s8 %v2655
        %v2657 = vlaneseq
        %v2658 = vshrl.u32 %v2657, 7
        %v2659 = vsub.s32 %v2656, %v2658
        %v2660 = vrot.slane %v2646, %v2659
        %v2661 = vcombine.low %v2628, %v2644
        %v2662 = vcombine.high %v2628, %v2644
        %v2664 = vunpack.c.l.s4 1934713408
        %v2665 = vunpack.c.0.s8 %v2664
        %v2666 = vlaneseq
        %v2667 = vshrl.u32 %v2666, 7
        %v2668 = vsub.s32 %v2665, %v2667
        %v2669 = vrot.slane %v2661, %v2668
        %v2671 = vunpack.c.l.s4 1934713408
        %v2672 = vunpack.c.0.s8 %v2671
        %v2673 = vlaneseq
        %v2674 = vshrl.u32 %v2673, 7
        %v2675 = vsub.s32 %v2672, %v2674
        %v2676 = vrot.slane %v2662, %v2675
        %v2677 = vcombine.high %v2653, 0.0
        %v2678 = vcombine.high %v2660, 0.0
        %v2679 = vcombine.high %v2669, 0.0
        %v2680 = vcombine.high %v2676, 0.0
        %v2681 = vcombine.low %v2653, %v2660
        %v2683 = vunpack.c.l.s4 1983009808
        %v2684 = vunpack.c.0.s8 %v2683
        %v2685 = vlaneseq
        %v2686 = vshrl.u32 %v2685, 7
        %v2687 = vsub.s32 %v2684, %v2686
        %v2688 = vrot.slane %v2681, %v2687
        %v2689 = vcombine.low %v2677, %v2678
        %v2691 = vunpack.c.l.s4 1983009808
        %v2692 = vunpack.c.0.s8 %v2691
        %v2693 = vlaneseq
        %v2694 = vshrl.u32 %v2693, 7
        %v2695 = vsub.s32 %v2692, %v2694
        %v2696 = vrot.slane %v2689, %v2695
        %v2697 = vcombine.low %v2669, %v2676
        %v2699 = vunpack.c.l.s4 1983009808
        %v2700 = vunpack.c.0.s8 %v2699
        %v2701 = vlaneseq
        %v2702 = vshrl.u32 %v2701, 7
        %v2703 = vsub.s32 %v2700, %v2702
        %v2704 = vrot.slane %v2697, %v2703
        %v2705 = vcombine.low %v2679, %v2680
        %v2707 = vunpack.c.l.s4 1983009808
        %v2708 = vunpack.c.0.s8 %v2707
        %v2709 = vlaneseq
        %v2710 = vshrl.u32 %v2709, 7
        %v2711 = vsub.s32 %v2708, %v2710
        %v2712 = vrot.slane %v2705, %v2711
        %v2713 = vcombine.low %v2688, %v2696
        %v2714 = vcombine.high %v2688, %v2696
        %v2716 = vunpack.c.l.s4 1934713408
        %v2717 = vunpack.c.0.s8 %v2716
        %v2718 = vlaneseq
        %v2719 = vshrl.u32 %v2718, 7
        %v2720 = vsub.s32 %v2717, %v2719
        %v2721 = vrot.slane %v2713, %v2720
        %v2723 = vunpack.c.l.s4 1934713408
        %v2724 = vunpack.c.0.s8 %v2723
        %v2725 = vlaneseq
        %v2726 = vshrl.u32 %v2725, 7
        %v2727 = vsub.s32 %v2724, %v2726
        %v2728 = vrot.slane %v2714, %v2727
        %v2729 = vcombine.low %v2704, %v2712
        %v2730 = vcombine.high %v2704, %v2712
        %v2732 = vunpack.c.l.s4 1934713408
        %v2733 = vunpack.c.0.s8 %v2732
        %v2734 = vlaneseq
        %v2735 = vshrl.u32 %v2734, 7
        %v2736 = vsub.s32 %v2733, %v2735
        %v2737 = vrot.slane %v2729, %v2736
        %v2739 = vunpack.c.l.s4 1934713408
        %v2740 = vunpack.c.0.s8 %v2739
        %v2741 = vlaneseq
        %v2742 = vshrl.u32 %v2741, 7
        %v2743 = vsub.s32 %v2740, %v2742
        %v2744 = vrot.slane %v2730, %v2743
        %v2745 = vcombine.low %v2721, %v2737
        %v2746 = vcombine.high %v2721, %v2737
        %v2747 = vcombine.low %v2728, %v2744
        %v2748 = vcombine.high %v2728, %v2744
        %2749 = vxpose.xlu0.b32.start [1/16] %v2597, 128
        %2750 = vxpose.xlu0.b32.cont [2/16] 0.0, 128
        %2751 = vxpose.xlu0.b32.cont [3/16] 0.0, 128
        %2752 = vxpose.xlu0.b32.cont [4/16] 0.0, 128
        %2753 = vxpose.xlu0.b32.cont [5/16] 0.0, 128
        %2754 = vxpose.xlu0.b32.cont [6/16] 0.0, 128
        %2755 = vxpose.xlu0.b32.cont [7/16] 0.0, 128
        %2756 = vxpose.xlu0.b32.cont [8/16] 0.0, 128
        %2757 = vxpose.xlu0.b32.cont [9/16] 0.0, 128
        %2758 = vxpose.xlu0.b32.cont [10/16] 0.0, 128
        %2759 = vxpose.xlu0.b32.cont [11/16] 0.0, 128
        %2760 = vxpose.xlu0.b32.cont [12/16] 0.0, 128
        %2761 = vxpose.xlu0.b32.cont [13/16] 0.0, 128
        %2762 = vxpose.xlu0.b32.cont [14/16] 0.0, 128
        %2763 = vxpose.xlu0.b32.cont [15/16] 0.0, 128
        %2764 = vxpose.xlu0.b32.end [16/16] 0.0, 128
        %v2765 = vpop.trf.xlu0
        %v2766 = vpop.trf.xlu0
        %v2767 = vpop.trf.xlu0
        %v2768 = vpop.trf.xlu0
        %v2769 = vpop.trf.xlu0
        %v2770 = vpop.trf.xlu0
        %v2771 = vpop.trf.xlu0
        %v2772 = vpop.trf.xlu0
        %v2773 = vpop.trf.xlu0
        %v2774 = vpop.trf.xlu0
        %v2775 = vpop.trf.xlu0
        %v2776 = vpop.trf.xlu0
        %v2777 = vpop.trf.xlu0
        %v2778 = vpop.trf.xlu0
        %v2779 = vpop.trf.xlu0
        %v2780 = vpop.trf.xlu0
        %v2782 = vsel %vm1473, %v2765, 0
        %2784 = vmatprep.subr.mxu0 0.0
        %2785 = vmatpush1.msra.mxu0 %v2745
        %2786 = vmatprep.subr.mxu0 0.0
        %2787 = vmatpush1.msra.mxu0 0.0
        %2788 = vmatprep.subr.mxu0 0.0
        %2789 = vmatpush1.msra.mxu0 0.0
        %2790 = vmatprep.subr.mxu0 0.0
        %2791 = vmatpush1.msra.mxu0 0.0
        %2792 = vmatprep.subr.mxu0 0.0
        %2793 = vmatpush1.msra.mxu0 0.0
        %2794 = vmatprep.subr.mxu0 0.0
        %2795 = vmatpush1.msra.mxu0 0.0
        %2796 = vmatprep.subr.mxu0 0.0
        %2797 = vmatpush1.msra.mxu0 0.0
        %2798 = vmatprep.subr.mxu0 0.0
        %2799 = vmatpush1.msra.mxu0 0.0
        %2800 = vmatprep.subr.mxu0 0.0
        %2801 = vmatpush1.msra.mxu0 0.0
        %2802 = vmatprep.subr.mxu0 0.0
        %2803 = vmatpush1.msra.mxu0 0.0
        %2804 = vmatprep.subr.mxu0 0.0
        %2805 = vmatpush1.msra.mxu0 0.0
        %2806 = vmatprep.subr.mxu0 0.0
        %2807 = vmatpush1.msra.mxu0 0.0
        %2808 = vmatprep.subr.mxu0 0.0
        %2809 = vmatpush1.msra.mxu0 0.0
        %2810 = vmatprep.subr.mxu0 0.0
        %2811 = vmatpush1.msra.mxu0 0.0
        %2812 = vmatprep.subr.mxu0 0.0
        %2813 = vmatpush1.msra.mxu0 0.0
        %2814 = vmatprep.subr.mxu0 0.0
        %2815 = vmatpush1.msra.mxu0 0.0
        %2816 = vmatprep.subr.mxu0 0.0
        %2817 = vmatpush1.msra.mxu0 0.0
        %2818 = vmatprep.subr.mxu0 0.0
        %2819 = vmatpush1.msra.mxu0 0.0
        %2820 = vmatprep.subr.mxu0 0.0
        %2821 = vmatpush1.msra.mxu0 0.0
        %2822 = vmatprep.subr.mxu0 0.0
        %2823 = vmatpush1.msra.mxu0 0.0
        %2824 = vmatprep.subr.mxu0 0.0
        %2825 = vmatpush1.msra.mxu0 0.0
        %2826 = vmatprep.subr.mxu0 0.0
        %2827 = vmatpush1.msra.mxu0 0.0
        %2828 = vmatprep.subr.mxu0 0.0
        %2829 = vmatpush1.msra.mxu0 0.0
        %2830 = vmatprep.subr.mxu0 0.0
        %2831 = vmatpush1.msra.mxu0 0.0
        %2832 = vmatprep.subr.mxu0 0.0
        %2833 = vmatpush1.msra.mxu0 0.0
        %2834 = vmatprep.subr.mxu0 0.0
        %2835 = vmatpush1.msra.mxu0 0.0
        %2836 = vmatprep.subr.mxu0 0.0
        %2837 = vmatpush1.msra.mxu0 0.0
        %2838 = vmatprep.subr.mxu0 0.0
        %2839 = vmatpush1.msra.mxu0 0.0
        %2840 = vmatprep.subr.mxu0 0.0
        %2841 = vmatpush1.msra.mxu0 0.0
        %2842 = vmatprep.subr.mxu0 0.0
        %2843 = vmatpush1.msra.mxu0 0.0
        %2844 = vmatprep.subr.mxu0 0.0
        %2845 = vmatpush1.msra.mxu0 0.0
        %2846 = vmatprep.subr.mxu0 0.0
        %2847 = vmatpush1.msra.mxu0 0.0
        %2848 = vmatprep.mubr.f32.mxu0 0.0
        %2849 = vmatmul.mubr.f32.gmra.mrb[0].mxu0 %v2782
        %v2850 = vpop.f32.mrb[0].mxu0
        %v2851 = vadd.f32 0.0, %v2850
        %v2852 = vpop.f32.mrb[0].mxu0
        %2853 = vdwg.mxu0
        %2854 = vxpose.xlu0.b32.start [1/16] %v2598, 128
        %2855 = vxpose.xlu0.b32.cont [2/16] 0.0, 128
        %2856 = vxpose.xlu0.b32.cont [3/16] 0.0, 128
        %2857 = vxpose.xlu0.b32.cont [4/16] 0.0, 128
        %2858 = vxpose.xlu0.b32.cont [5/16] 0.0, 128
        %2859 = vxpose.xlu0.b32.cont [6/16] 0.0, 128
        %2860 = vxpose.xlu0.b32.cont [7/16] 0.0, 128
        %2861 = vxpose.xlu0.b32.cont [8/16] 0.0, 128
        %2862 = vxpose.xlu0.b32.cont [9/16] 0.0, 128
        %2863 = vxpose.xlu0.b32.cont [10/16] 0.0, 128
        %2864 = vxpose.xlu0.b32.cont [11/16] 0.0, 128
        %2865 = vxpose.xlu0.b32.cont [12/16] 0.0, 128
        %2866 = vxpose.xlu0.b32.cont [13/16] 0.0, 128
        %2867 = vxpose.xlu0.b32.cont [14/16] 0.0, 128
        %2868 = vxpose.xlu0.b32.cont [15/16] 0.0, 128
        %2869 = vxpose.xlu0.b32.end [16/16] 0.0, 128
        %v2870 = vpop.trf.xlu0
        %v2871 = vpop.trf.xlu0
        %v2872 = vpop.trf.xlu0
        %v2873 = vpop.trf.xlu0
        %v2874 = vpop.trf.xlu0
        %v2875 = vpop.trf.xlu0
        %v2876 = vpop.trf.xlu0
        %v2877 = vpop.trf.xlu0
        %v2878 = vpop.trf.xlu0
        %v2879 = vpop.trf.xlu0
        %v2880 = vpop.trf.xlu0
        %v2881 = vpop.trf.xlu0
        %v2882 = vpop.trf.xlu0
        %v2883 = vpop.trf.xlu0
        %v2884 = vpop.trf.xlu0
        %v2885 = vpop.trf.xlu0
        %v2887 = vsel %vm1473, %v2870, 0
        %2889 = vmatprep.subr.mxu0 0.0
        %2890 = vmatpush1.msra.mxu0 %v2746
        %2891 = vmatprep.subr.mxu0 0.0
        %2892 = vmatpush1.msra.mxu0 0.0
        %2893 = vmatprep.subr.mxu0 0.0
        %2894 = vmatpush1.msra.mxu0 0.0
        %2895 = vmatprep.subr.mxu0 0.0
        %2896 = vmatpush1.msra.mxu0 0.0
        %2897 = vmatprep.subr.mxu0 0.0
        %2898 = vmatpush1.msra.mxu0 0.0
        %2899 = vmatprep.subr.mxu0 0.0
        %2900 = vmatpush1.msra.mxu0 0.0
        %2901 = vmatprep.subr.mxu0 0.0
        %2902 = vmatpush1.msra.mxu0 0.0
        %2903 = vmatprep.subr.mxu0 0.0
        %2904 = vmatpush1.msra.mxu0 0.0
        %2905 = vmatprep.subr.mxu0 0.0
        %2906 = vmatpush1.msra.mxu0 0.0
        %2907 = vmatprep.subr.mxu0 0.0
        %2908 = vmatpush1.msra.mxu0 0.0
        %2909 = vmatprep.subr.mxu0 0.0
        %2910 = vmatpush1.msra.mxu0 0.0
        %2911 = vmatprep.subr.mxu0 0.0
        %2912 = vmatpush1.msra.mxu0 0.0
        %2913 = vmatprep.subr.mxu0 0.0
        %2914 = vmatpush1.msra.mxu0 0.0
        %2915 = vmatprep.subr.mxu0 0.0
        %2916 = vmatpush1.msra.mxu0 0.0
        %2917 = vmatprep.subr.mxu0 0.0
        %2918 = vmatpush1.msra.mxu0 0.0
        %2919 = vmatprep.subr.mxu0 0.0
        %2920 = vmatpush1.msra.mxu0 0.0
        %2921 = vmatprep.subr.mxu0 0.0
        %2922 = vmatpush1.msra.mxu0 0.0
        %2923 = vmatprep.subr.mxu0 0.0
        %2924 = vmatpush1.msra.mxu0 0.0
        %2925 = vmatprep.subr.mxu0 0.0
        %2926 = vmatpush1.msra.mxu0 0.0
        %2927 = vmatprep.subr.mxu0 0.0
        %2928 = vmatpush1.msra.mxu0 0.0
        %2929 = vmatprep.subr.mxu0 0.0
        %2930 = vmatpush1.msra.mxu0 0.0
        %2931 = vmatprep.subr.mxu0 0.0
        %2932 = vmatpush1.msra.mxu0 0.0
        %2933 = vmatprep.subr.mxu0 0.0
        %2934 = vmatpush1.msra.mxu0 0.0
        %2935 = vmatprep.subr.mxu0 0.0
        %2936 = vmatpush1.msra.mxu0 0.0
        %2937 = vmatprep.subr.mxu0 0.0
        %2938 = vmatpush1.msra.mxu0 0.0
        %2939 = vmatprep.subr.mxu0 0.0
        %2940 = vmatpush1.msra.mxu0 0.0
        %2941 = vmatprep.subr.mxu0 0.0
        %2942 = vmatpush1.msra.mxu0 0.0
        %2943 = vmatprep.subr.mxu0 0.0
        %2944 = vmatpush1.msra.mxu0 0.0
        %2945 = vmatprep.subr.mxu0 0.0
        %2946 = vmatpush1.msra.mxu0 0.0
        %2947 = vmatprep.subr.mxu0 0.0
        %2948 = vmatpush1.msra.mxu0 0.0
        %2949 = vmatprep.subr.mxu0 0.0
        %2950 = vmatpush1.msra.mxu0 0.0
        %2951 = vmatprep.subr.mxu0 0.0
        %2952 = vmatpush1.msra.mxu0 0.0
        %2953 = vmatprep.mubr.f32.mxu0 0.0
        %2954 = vmatmul.mubr.f32.gmra.mrb[0].mxu0 %v2887
        %v2955 = vpop.f32.mrb[0].mxu0
        %v2956 = vadd.f32 0.0, %v2955
        %v2957 = vpop.f32.mrb[0].mxu0
        %2958 = vdwg.mxu0
        %2959 = vxpose.xlu0.b32.start [1/16] %v2599, 128
        %2960 = vxpose.xlu0.b32.cont [2/16] 0.0, 128
        %2961 = vxpose.xlu0.b32.cont [3/16] 0.0, 128
        %2962 = vxpose.xlu0.b32.cont [4/16] 0.0, 128
        %2963 = vxpose.xlu0.b32.cont [5/16] 0.0, 128
        %2964 = vxpose.xlu0.b32.cont [6/16] 0.0, 128
        %2965 = vxpose.xlu0.b32.cont [7/16] 0.0, 128
        %2966 = vxpose.xlu0.b32.cont [8/16] 0.0, 128
        %2967 = vxpose.xlu0.b32.cont [9/16] 0.0, 128
        %2968 = vxpose.xlu0.b32.cont [10/16] 0.0, 128
        %2969 = vxpose.xlu0.b32.cont [11/16] 0.0, 128
        %2970 = vxpose.xlu0.b32.cont [12/16] 0.0, 128
        %2971 = vxpose.xlu0.b32.cont [13/16] 0.0, 128
        %2972 = vxpose.xlu0.b32.cont [14/16] 0.0, 128
        %2973 = vxpose.xlu0.b32.cont [15/16] 0.0, 128
        %2974 = vxpose.xlu0.b32.end [16/16] 0.0, 128
        %v2975 = vpop.trf.xlu0
        %v2976 = vpop.trf.xlu0
        %v2977 = vpop.trf.xlu0
        %v2978 = vpop.trf.xlu0
        %v2979 = vpop.trf.xlu0
        %v2980 = vpop.trf.xlu0
        %v2981 = vpop.trf.xlu0
        %v2982 = vpop.trf.xlu0
        %v2983 = vpop.trf.xlu0
        %v2984 = vpop.trf.xlu0
        %v2985 = vpop.trf.xlu0
        %v2986 = vpop.trf.xlu0
        %v2987 = vpop.trf.xlu0
        %v2988 = vpop.trf.xlu0
        %v2989 = vpop.trf.xlu0
        %v2990 = vpop.trf.xlu0
        %v2992 = vsel %vm1473, %v2975, 0
        %2994 = vmatprep.subr.mxu0 0.0
        %2995 = vmatpush1.msra.mxu0 %v2747
        %2996 = vmatprep.subr.mxu0 0.0
        %2997 = vmatpush1.msra.mxu0 0.0
        %2998 = vmatprep.subr.mxu0 0.0
        %2999 = vmatpush1.msra.mxu0 0.0
        %3000 = vmatprep.subr.mxu0 0.0
        %3001 = vmatpush1.msra.mxu0 0.0
        %3002 = vmatprep.subr.mxu0 0.0
        %3003 = vmatpush1.msra.mxu0 0.0
        %3004 = vmatprep.subr.mxu0 0.0
        %3005 = vmatpush1.msra.mxu0 0.0
        %3006 = vmatprep.subr.mxu0 0.0
        %3007 = vmatpush1.msra.mxu0 0.0
        %3008 = vmatprep.subr.mxu0 0.0
        %3009 = vmatpush1.msra.mxu0 0.0
        %3010 = vmatprep.subr.mxu0 0.0
        %3011 = vmatpush1.msra.mxu0 0.0
        %3012 = vmatprep.subr.mxu0 0.0
        %3013 = vmatpush1.msra.mxu0 0.0
        %3014 = vmatprep.subr.mxu0 0.0
        %3015 = vmatpush1.msra.mxu0 0.0
        %3016 = vmatprep.subr.mxu0 0.0
        %3017 = vmatpush1.msra.mxu0 0.0
        %3018 = vmatprep.subr.mxu0 0.0
        %3019 = vmatpush1.msra.mxu0 0.0
        %3020 = vmatprep.subr.mxu0 0.0
        %3021 = vmatpush1.msra.mxu0 0.0
        %3022 = vmatprep.subr.mxu0 0.0
        %3023 = vmatpush1.msra.mxu0 0.0
        %3024 = vmatprep.subr.mxu0 0.0
        %3025 = vmatpush1.msra.mxu0 0.0
        %3026 = vmatprep.subr.mxu0 0.0
        %3027 = vmatpush1.msra.mxu0 0.0
        %3028 = vmatprep.subr.mxu0 0.0
        %3029 = vmatpush1.msra.mxu0 0.0
        %3030 = vmatprep.subr.mxu0 0.0
        %3031 = vmatpush1.msra.mxu0 0.0
        %3032 = vmatprep.subr.mxu0 0.0
        %3033 = vmatpush1.msra.mxu0 0.0
        %3034 = vmatprep.subr.mxu0 0.0
        %3035 = vmatpush1.msra.mxu0 0.0
        %3036 = vmatprep.subr.mxu0 0.0
        %3037 = vmatpush1.msra.mxu0 0.0
        %3038 = vmatprep.subr.mxu0 0.0
        %3039 = vmatpush1.msra.mxu0 0.0
        %3040 = vmatprep.subr.mxu0 0.0
        %3041 = vmatpush1.msra.mxu0 0.0
        %3042 = vmatprep.subr.mxu0 0.0
        %3043 = vmatpush1.msra.mxu0 0.0
        %3044 = vmatprep.subr.mxu0 0.0
        %3045 = vmatpush1.msra.mxu0 0.0
        %3046 = vmatprep.subr.mxu0 0.0
        %3047 = vmatpush1.msra.mxu0 0.0
        %3048 = vmatprep.subr.mxu0 0.0
        %3049 = vmatpush1.msra.mxu0 0.0
        %3050 = vmatprep.subr.mxu0 0.0
        %3051 = vmatpush1.msra.mxu0 0.0
        %3052 = vmatprep.subr.mxu0 0.0
        %3053 = vmatpush1.msra.mxu0 0.0
        %3054 = vmatprep.subr.mxu0 0.0
        %3055 = vmatpush1.msra.mxu0 0.0
        %3056 = vmatprep.subr.mxu0 0.0
        %3057 = vmatpush1.msra.mxu0 0.0
        %3058 = vmatprep.mubr.f32.mxu0 0.0
        %3059 = vmatmul.mubr.f32.gmra.mrb[0].mxu0 %v2992
        %v3060 = vpop.f32.mrb[0].mxu0
        %v3061 = vadd.f32 0.0, %v3060
        %v3062 = vpop.f32.mrb[0].mxu0
        %3063 = vdwg.mxu0
        %3064 = vxpose.xlu0.b32.start [1/16] %v2600, 128
        %3065 = vxpose.xlu0.b32.cont [2/16] 0.0, 128
        %3066 = vxpose.xlu0.b32.cont [3/16] 0.0, 128
        %3067 = vxpose.xlu0.b32.cont [4/16] 0.0, 128
        %3068 = vxpose.xlu0.b32.cont [5/16] 0.0, 128
        %3069 = vxpose.xlu0.b32.cont [6/16] 0.0, 128
        %3070 = vxpose.xlu0.b32.cont [7/16] 0.0, 128
        %3071 = vxpose.xlu0.b32.cont [8/16] 0.0, 128
        %3072 = vxpose.xlu0.b32.cont [9/16] 0.0, 128
        %3073 = vxpose.xlu0.b32.cont [10/16] 0.0, 128
        %3074 = vxpose.xlu0.b32.cont [11/16] 0.0, 128
        %3075 = vxpose.xlu0.b32.cont [12/16] 0.0, 128
        %3076 = vxpose.xlu0.b32.cont [13/16] 0.0, 128
        %3077 = vxpose.xlu0.b32.cont [14/16] 0.0, 128
        %3078 = vxpose.xlu0.b32.cont [15/16] 0.0, 128
        %3079 = vxpose.xlu0.b32.end [16/16] 0.0, 128
        %v3080 = vpop.trf.xlu0
        %v3081 = vpop.trf.xlu0
        %v3082 = vpop.trf.xlu0
        %v3083 = vpop.trf.xlu0
        %v3084 = vpop.trf.xlu0
        %v3085 = vpop.trf.xlu0
        %v3086 = vpop.trf.xlu0
        %v3087 = vpop.trf.xlu0
        %v3088 = vpop.trf.xlu0
        %v3089 = vpop.trf.xlu0
        %v3090 = vpop.trf.xlu0
        %v3091 = vpop.trf.xlu0
        %v3092 = vpop.trf.xlu0
        %v3093 = vpop.trf.xlu0
        %v3094 = vpop.trf.xlu0
        %v3095 = vpop.trf.xlu0
        %v3097 = vsel %vm1473, %v3080, 0
        %3099 = vmatprep.subr.mxu0 0.0
        %3100 = vmatpush1.msra.mxu0 %v2748
        %3101 = vmatprep.subr.mxu0 0.0
        %3102 = vmatpush1.msra.mxu0 0.0
        %3103 = vmatprep.subr.mxu0 0.0
        %3104 = vmatpush1.msra.mxu0 0.0
        %3105 = vmatprep.subr.mxu0 0.0
        %3106 = vmatpush1.msra.mxu0 0.0
        %3107 = vmatprep.subr.mxu0 0.0
        %3108 = vmatpush1.msra.mxu0 0.0
        %3109 = vmatprep.subr.mxu0 0.0
        %3110 = vmatpush1.msra.mxu0 0.0
        %3111 = vmatprep.subr.mxu0 0.0
        %3112 = vmatpush1.msra.mxu0 0.0
        %3113 = vmatprep.subr.mxu0 0.0
        %3114 = vmatpush1.msra.mxu0 0.0
        %3115 = vmatprep.subr.mxu0 0.0
        %3116 = vmatpush1.msra.mxu0 0.0
        %3117 = vmatprep.subr.mxu0 0.0
        %3118 = vmatpush1.msra.mxu0 0.0
        %3119 = vmatprep.subr.mxu0 0.0
        %3120 = vmatpush1.msra.mxu0 0.0
        %3121 = vmatprep.subr.mxu0 0.0
        %3122 = vmatpush1.msra.mxu0 0.0
        %3123 = vmatprep.subr.mxu0 0.0
        %3124 = vmatpush1.msra.mxu0 0.0
        %3125 = vmatprep.subr.mxu0 0.0
        %3126 = vmatpush1.msra.mxu0 0.0
        %3127 = vmatprep.subr.mxu0 0.0
        %3128 = vmatpush1.msra.mxu0 0.0
        %3129 = vmatprep.subr.mxu0 0.0
        %3130 = vmatpush1.msra.mxu0 0.0
        %3131 = vmatprep.subr.mxu0 0.0
        %3132 = vmatpush1.msra.mxu0 0.0
        %3133 = vmatprep.subr.mxu0 0.0
        %3134 = vmatpush1.msra.mxu0 0.0
        %3135 = vmatprep.subr.mxu0 0.0
        %3136 = vmatpush1.msra.mxu0 0.0
        %3137 = vmatprep.subr.mxu0 0.0
        %3138 = vmatpush1.msra.mxu0 0.0
        %3139 = vmatprep.subr.mxu0 0.0
        %3140 = vmatpush1.msra.mxu0 0.0
        %3141 = vmatprep.subr.mxu0 0.0
        %3142 = vmatpush1.msra.mxu0 0.0
        %3143 = vmatprep.subr.mxu0 0.0
        %3144 = vmatpush1.msra.mxu0 0.0
        %3145 = vmatprep.subr.mxu0 0.0
        %3146 = vmatpush1.msra.mxu0 0.0
        %3147 = vmatprep.subr.mxu0 0.0
        %3148 = vmatpush1.msra.mxu0 0.0
        %3149 = vmatprep.subr.mxu0 0.0
        %3150 = vmatpush1.msra.mxu0 0.0
        %3151 = vmatprep.subr.mxu0 0.0
        %3152 = vmatpush1.msra.mxu0 0.0
        %3153 = vmatprep.subr.mxu0 0.0
        %3154 = vmatpush1.msra.mxu0 0.0
        %3155 = vmatprep.subr.mxu0 0.0
        %3156 = vmatpush1.msra.mxu0 0.0
        %3157 = vmatprep.subr.mxu0 0.0
        %3158 = vmatpush1.msra.mxu0 0.0
        %3159 = vmatprep.subr.mxu0 0.0
        %3160 = vmatpush1.msra.mxu0 0.0
        %3161 = vmatprep.subr.mxu0 0.0
        %3162 = vmatpush1.msra.mxu0 0.0
        %3163 = vmatprep.mubr.f32.mxu0 0.0
        %3164 = vmatmul.mubr.f32.gmra.mrb[0].mxu0 %v3097
        %v3165 = vpop.f32.mrb[0].mxu0
        %v3166 = vadd.f32 0.0, %v3165
        %v3167 = vpop.f32.mrb[0].mxu0
        %3168 = vdwg.mxu0
        %v3170 = vsel %vm1473, %v2449, 0
        %3172 = vmatprep.subr.mxu0 0.0
        %3173 = vmatpush1.msra.mxu0 %v2851
        %3174 = vmatprep.subr.mxu0 0.0
        %3175 = vmatpush1.msra.mxu0 0.0
        %3176 = vmatprep.subr.mxu0 0.0
        %3177 = vmatpush1.msra.mxu0 0.0
        %3178 = vmatprep.subr.mxu0 0.0
        %3179 = vmatpush1.msra.mxu0 0.0
        %3180 = vmatprep.subr.mxu0 0.0
        %3181 = vmatpush1.msra.mxu0 0.0
        %3182 = vmatprep.subr.mxu0 0.0
        %3183 = vmatpush1.msra.mxu0 0.0
        %3184 = vmatprep.subr.mxu0 0.0
        %3185 = vmatpush1.msra.mxu0 0.0
        %3186 = vmatprep.subr.mxu0 0.0
        %3187 = vmatpush1.msra.mxu0 0.0
        %3188 = vmatprep.subr.mxu0 0.0
        %3189 = vmatpush1.msra.mxu0 0.0
        %3190 = vmatprep.subr.mxu0 0.0
        %3191 = vmatpush1.msra.mxu0 0.0
        %3192 = vmatprep.subr.mxu0 0.0
        %3193 = vmatpush1.msra.mxu0 0.0
        %3194 = vmatprep.subr.mxu0 0.0
        %3195 = vmatpush1.msra.mxu0 0.0
        %3196 = vmatprep.subr.mxu0 0.0
        %3197 = vmatpush1.msra.mxu0 0.0
        %3198 = vmatprep.subr.mxu0 0.0
        %3199 = vmatpush1.msra.mxu0 0.0
        %3200 = vmatprep.subr.mxu0 0.0
        %3201 = vmatpush1.msra.mxu0 0.0
        %3202 = vmatprep.subr.mxu0 0.0
        %3203 = vmatpush1.msra.mxu0 0.0
        %3204 = vmatprep.subr.mxu0 0.0
        %3205 = vmatpush1.msra.mxu0 0.0
        %3206 = vmatprep.subr.mxu0 0.0
        %3207 = vmatpush1.msra.mxu0 0.0
        %3208 = vmatprep.subr.mxu0 0.0
        %3209 = vmatpush1.msra.mxu0 0.0
        %3210 = vmatprep.subr.mxu0 0.0
        %3211 = vmatpush1.msra.mxu0 0.0
        %3212 = vmatprep.subr.mxu0 0.0
        %3213 = vmatpush1.msra.mxu0 0.0
        %3214 = vmatprep.subr.mxu0 0.0
        %3215 = vmatpush1.msra.mxu0 0.0
        %3216 = vmatprep.subr.mxu0 0.0
        %3217 = vmatpush1.msra.mxu0 0.0
        %3218 = vmatprep.subr.mxu0 0.0
        %3219 = vmatpush1.msra.mxu0 0.0
        %3220 = vmatprep.subr.mxu0 0.0
        %3221 = vmatpush1.msra.mxu0 0.0
        %3222 = vmatprep.subr.mxu0 0.0
        %3223 = vmatpush1.msra.mxu0 0.0
        %3224 = vmatprep.subr.mxu0 0.0
        %3225 = vmatpush1.msra.mxu0 0.0
        %3226 = vmatprep.subr.mxu0 0.0
        %3227 = vmatpush1.msra.mxu0 0.0
        %3228 = vmatprep.subr.mxu0 0.0
        %3229 = vmatpush1.msra.mxu0 0.0
        %3230 = vmatprep.subr.mxu0 0.0
        %3231 = vmatpush1.msra.mxu0 0.0
        %3232 = vmatprep.subr.mxu0 0.0
        %3233 = vmatpush1.msra.mxu0 0.0
        %3234 = vmatprep.subr.mxu0 0.0
        %3235 = vmatpush1.msra.mxu0 0.0
        %3236 = vmatprep.mubr.f32.mxu0 0.0
        %3237 = vmatmul.mubr.f32.gmra.mrb[0].mxu0 %v3170
        %v3238 = vpop.f32.mrb[0].mxu0
        %v3239 = vadd.f32 0.0, %v3238
        %v3240 = vpop.f32.mrb[0].mxu0
        %3241 = vdwg.mxu0
        %v3243 = vsel %vm1473, %v2450, 0
        %3245 = vmatprep.subr.mxu0 0.0
        %3246 = vmatpush1.msra.mxu0 %v2956
        %3247 = vmatprep.subr.mxu0 0.0
        %3248 = vmatpush1.msra.mxu0 0.0
        %3249 = vmatprep.subr.mxu0 0.0
        %3250 = vmatpush1.msra.mxu0 0.0
        %3251 = vmatprep.subr.mxu0 0.0
        %3252 = vmatpush1.msra.mxu0 0.0
        %3253 = vmatprep.subr.mxu0 0.0
        %3254 = vmatpush1.msra.mxu0 0.0
        %3255 = vmatprep.subr.mxu0 0.0
        %3256 = vmatpush1.msra.mxu0 0.0
        %3257 = vmatprep.subr.mxu0 0.0
        %3258 = vmatpush1.msra.mxu0 0.0
        %3259 = vmatprep.subr.mxu0 0.0
        %3260 = vmatpush1.msra.mxu0 0.0
        %3261 = vmatprep.subr.mxu0 0.0
        %3262 = vmatpush1.msra.mxu0 0.0
        %3263 = vmatprep.subr.mxu0 0.0
        %3264 = vmatpush1.msra.mxu0 0.0
        %3265 = vmatprep.subr.mxu0 0.0
        %3266 = vmatpush1.msra.mxu0 0.0
        %3267 = vmatprep.subr.mxu0 0.0
        %3268 = vmatpush1.msra.mxu0 0.0
        %3269 = vmatprep.subr.mxu0 0.0
        %3270 = vmatpush1.msra.mxu0 0.0
        %3271 = vmatprep.subr.mxu0 0.0
        %3272 = vmatpush1.msra.mxu0 0.0
        %3273 = vmatprep.subr.mxu0 0.0
        %3274 = vmatpush1.msra.mxu0 0.0
        %3275 = vmatprep.subr.mxu0 0.0
        %3276 = vmatpush1.msra.mxu0 0.0
        %3277 = vmatprep.subr.mxu0 0.0
        %3278 = vmatpush1.msra.mxu0 0.0
        %3279 = vmatprep.subr.mxu0 0.0
        %3280 = vmatpush1.msra.mxu0 0.0
        %3281 = vmatprep.subr.mxu0 0.0
        %3282 = vmatpush1.msra.mxu0 0.0
        %3283 = vmatprep.subr.mxu0 0.0
        %3284 = vmatpush1.msra.mxu0 0.0
        %3285 = vmatprep.subr.mxu0 0.0
        %3286 = vmatpush1.msra.mxu0 0.0
        %3287 = vmatprep.subr.mxu0 0.0
        %3288 = vmatpush1.msra.mxu0 0.0
        %3289 = vmatprep.subr.mxu0 0.0
        %3290 = vmatpush1.msra.mxu0 0.0
        %3291 = vmatprep.subr.mxu0 0.0
        %3292 = vmatpush1.msra.mxu0 0.0
        %3293 = vmatprep.subr.mxu0 0.0
        %3294 = vmatpush1.msra.mxu0 0.0
        %3295 = vmatprep.subr.mxu0 0.0
        %3296 = vmatpush1.msra.mxu0 0.0
        %3297 = vmatprep.subr.mxu0 0.0
        %3298 = vmatpush1.msra.mxu0 0.0
        %3299 = vmatprep.subr.mxu0 0.0
        %3300 = vmatpush1.msra.mxu0 0.0
        %3301 = vmatprep.subr.mxu0 0.0
        %3302 = vmatpush1.msra.mxu0 0.0
        %3303 = vmatprep.subr.mxu0 0.0
        %3304 = vmatpush1.msra.mxu0 0.0
        %3305 = vmatprep.subr.mxu0 0.0
        %3306 = vmatpush1.msra.mxu0 0.0
        %3307 = vmatprep.subr.mxu0 0.0
        %3308 = vmatpush1.msra.mxu0 0.0
        %3309 = vmatprep.mubr.f32.mxu0 0.0
        %3310 = vmatmul.mubr.f32.gmra.mrb[0].mxu0 %v3243
        %v3311 = vpop.f32.mrb[0].mxu0
        %v3312 = vadd.f32 0.0, %v3311
        %v3313 = vpop.f32.mrb[0].mxu0
        %3314 = vdwg.mxu0
        %v3316 = vsel %vm1473, %v2451, 0
        %3318 = vmatprep.subr.mxu0 0.0
        %3319 = vmatpush1.msra.mxu0 %v3061
        %3320 = vmatprep.subr.mxu0 0.0
        %3321 = vmatpush1.msra.mxu0 0.0
        %3322 = vmatprep.subr.mxu0 0.0
        %3323 = vmatpush1.msra.mxu0 0.0
        %3324 = vmatprep.subr.mxu0 0.0
        %3325 = vmatpush1.msra.mxu0 0.0
        %3326 = vmatprep.subr.mxu0 0.0
        %3327 = vmatpush1.msra.mxu0 0.0
        %3328 = vmatprep.subr.mxu0 0.0
        %3329 = vmatpush1.msra.mxu0 0.0
        %3330 = vmatprep.subr.mxu0 0.0
        %3331 = vmatpush1.msra.mxu0 0.0
        %3332 = vmatprep.subr.mxu0 0.0
        %3333 = vmatpush1.msra.mxu0 0.0
        %3334 = vmatprep.subr.mxu0 0.0
        %3335 = vmatpush1.msra.mxu0 0.0
        %3336 = vmatprep.subr.mxu0 0.0
        %3337 = vmatpush1.msra.mxu0 0.0
        %3338 = vmatprep.subr.mxu0 0.0
        %3339 = vmatpush1.msra.mxu0 0.0
        %3340 = vmatprep.subr.mxu0 0.0
        %3341 = vmatpush1.msra.mxu0 0.0
        %3342 = vmatprep.subr.mxu0 0.0
        %3343 = vmatpush1.msra.mxu0 0.0
        %3344 = vmatprep.subr.mxu0 0.0
        %3345 = vmatpush1.msra.mxu0 0.0
        %3346 = vmatprep.subr.mxu0 0.0
        %3347 = vmatpush1.msra.mxu0 0.0
        %3348 = vmatprep.subr.mxu0 0.0
        %3349 = vmatpush1.msra.mxu0 0.0
        %3350 = vmatprep.subr.mxu0 0.0
        %3351 = vmatpush1.msra.mxu0 0.0
        %3352 = vmatprep.subr.mxu0 0.0
        %3353 = vmatpush1.msra.mxu0 0.0
        %3354 = vmatprep.subr.mxu0 0.0
        %3355 = vmatpush1.msra.mxu0 0.0
        %3356 = vmatprep.subr.mxu0 0.0
        %3357 = vmatpush1.msra.mxu0 0.0
        %3358 = vmatprep.subr.mxu0 0.0
        %3359 = vmatpush1.msra.mxu0 0.0
        %3360 = vmatprep.subr.mxu0 0.0
        %3361 = vmatpush1.msra.mxu0 0.0
        %3362 = vmatprep.subr.mxu0 0.0
        %3363 = vmatpush1.msra.mxu0 0.0
        %3364 = vmatprep.subr.mxu0 0.0
        %3365 = vmatpush1.msra.mxu0 0.0
        %3366 = vmatprep.subr.mxu0 0.0
        %3367 = vmatpush1.msra.mxu0 0.0
        %3368 = vmatprep.subr.mxu0 0.0
        %3369 = vmatpush1.msra.mxu0 0.0
        %3370 = vmatprep.subr.mxu0 0.0
        %3371 = vmatpush1.msra.mxu0 0.0
        %3372 = vmatprep.subr.mxu0 0.0
        %3373 = vmatpush1.msra.mxu0 0.0
        %3374 = vmatprep.subr.mxu0 0.0
        %3375 = vmatpush1.msra.mxu0 0.0
        %3376 = vmatprep.subr.mxu0 0.0
        %3377 = vmatpush1.msra.mxu0 0.0
        %3378 = vmatprep.subr.mxu0 0.0
        %3379 = vmatpush1.msra.mxu0 0.0
        %3380 = vmatprep.subr.mxu0 0.0
        %3381 = vmatpush1.msra.mxu0 0.0
        %3382 = vmatprep.mubr.f32.mxu0 0.0
        %3383 = vmatmul.mubr.f32.gmra.mrb[0].mxu0 %v3316
        %v3384 = vpop.f32.mrb[0].mxu0
        %v3385 = vadd.f32 0.0, %v3384
        %v3386 = vpop.f32.mrb[0].mxu0
        %3387 = vdwg.mxu0
        %v3389 = vsel %vm1473, %v2452, 0
        %3391 = vmatprep.subr.mxu0 0.0
        %3392 = vmatpush1.msra.mxu0 %v3166
        %3393 = vmatprep.subr.mxu0 0.0
        %3394 = vmatpush1.msra.mxu0 0.0
        %3395 = vmatprep.subr.mxu0 0.0
        %3396 = vmatpush1.msra.mxu0 0.0
        %3397 = vmatprep.subr.mxu0 0.0
        %3398 = vmatpush1.msra.mxu0 0.0
        %3399 = vmatprep.subr.mxu0 0.0
        %3400 = vmatpush1.msra.mxu0 0.0
        %3401 = vmatprep.subr.mxu0 0.0
        %3402 = vmatpush1.msra.mxu0 0.0
        %3403 = vmatprep.subr.mxu0 0.0
        %3404 = vmatpush1.msra.mxu0 0.0
        %3405 = vmatprep.subr.mxu0 0.0
        %3406 = vmatpush1.msra.mxu0 0.0
        %3407 = vmatprep.subr.mxu0 0.0
        %3408 = vmatpush1.msra.mxu0 0.0
        %3409 = vmatprep.subr.mxu0 0.0
        %3410 = vmatpush1.msra.mxu0 0.0
        %3411 = vmatprep.subr.mxu0 0.0
        %3412 = vmatpush1.msra.mxu0 0.0
        %3413 = vmatprep.subr.mxu0 0.0
        %3414 = vmatpush1.msra.mxu0 0.0
        %3415 = vmatprep.subr.mxu0 0.0
        %3416 = vmatpush1.msra.mxu0 0.0
        %3417 = vmatprep.subr.mxu0 0.0
        %3418 = vmatpush1.msra.mxu0 0.0
        %3419 = vmatprep.subr.mxu0 0.0
        %3420 = vmatpush1.msra.mxu0 0.0
        %3421 = vmatprep.subr.mxu0 0.0
        %3422 = vmatpush1.msra.mxu0 0.0
        %3423 = vmatprep.subr.mxu0 0.0
        %3424 = vmatpush1.msra.mxu0 0.0
        %3425 = vmatprep.subr.mxu0 0.0
        %3426 = vmatpush1.msra.mxu0 0.0
        %3427 = vmatprep.subr.mxu0 0.0
        %3428 = vmatpush1.msra.mxu0 0.0
        %3429 = vmatprep.subr.mxu0 0.0
        %3430 = vmatpush1.msra.mxu0 0.0
        %3431 = vmatprep.subr.mxu0 0.0
        %3432 = vmatpush1.msra.mxu0 0.0
        %3433 = vmatprep.subr.mxu0 0.0
        %3434 = vmatpush1.msra.mxu0 0.0
        %3435 = vmatprep.subr.mxu0 0.0
        %3436 = vmatpush1.msra.mxu0 0.0
        %3437 = vmatprep.subr.mxu0 0.0
        %3438 = vmatpush1.msra.mxu0 0.0
        %3439 = vmatprep.subr.mxu0 0.0
        %3440 = vmatpush1.msra.mxu0 0.0
        %3441 = vmatprep.subr.mxu0 0.0
        %3442 = vmatpush1.msra.mxu0 0.0
        %3443 = vmatprep.subr.mxu0 0.0
        %3444 = vmatpush1.msra.mxu0 0.0
        %3445 = vmatprep.subr.mxu0 0.0
        %3446 = vmatpush1.msra.mxu0 0.0
        %3447 = vmatprep.subr.mxu0 0.0
        %3448 = vmatpush1.msra.mxu0 0.0
        %3449 = vmatprep.subr.mxu0 0.0
        %3450 = vmatpush1.msra.mxu0 0.0
        %3451 = vmatprep.subr.mxu0 0.0
        %3452 = vmatpush1.msra.mxu0 0.0
        %3453 = vmatprep.subr.mxu0 0.0
        %3454 = vmatpush1.msra.mxu0 0.0
        %3455 = vmatprep.mubr.f32.mxu0 0.0
        %3456 = vmatmul.mubr.f32.gmra.mrb[0].mxu0 %v3389
        %v3457 = vpop.f32.mrb[0].mxu0
        %v3458 = vadd.f32 0.0, %v3457
        %v3459 = vpop.f32.mrb[0].mxu0
        %3460 = vdwg.mxu0
        %v3461 = vcombine.low %v3239, %v3385
        %v3462 = vcombine.high %v3239, %v3385
        %v3464 = vunpack.c.l.s4 1983009808
        %v3465 = vunpack.c.0.s8 %v3464
        %v3466 = vlaneseq
        %v3467 = vshrl.u32 %v3466, 7
        %v3468 = vsub.s32 %v3465, %v3467
        %v3469 = vrot.slane %v3461, %v3468
        %v3471 = vunpack.c.l.s4 1983009808
        %v3472 = vunpack.c.0.s8 %v3471
        %v3473 = vlaneseq
        %v3474 = vshrl.u32 %v3473, 7
        %v3475 = vsub.s32 %v3472, %v3474
        %v3476 = vrot.slane %v3462, %v3475
        %v3477 = vcombine.low %v3312, %v3458
        %v3478 = vcombine.high %v3312, %v3458
        %v3480 = vunpack.c.l.s4 1983009808
        %v3481 = vunpack.c.0.s8 %v3480
        %v3482 = vlaneseq
        %v3483 = vshrl.u32 %v3482, 7
        %v3484 = vsub.s32 %v3481, %v3483
        %v3485 = vrot.slane %v3477, %v3484
        %v3487 = vunpack.c.l.s4 1983009808
        %v3488 = vunpack.c.0.s8 %v3487
        %v3489 = vlaneseq
        %v3490 = vshrl.u32 %v3489, 7
        %v3491 = vsub.s32 %v3488, %v3490
        %v3492 = vrot.slane %v3478, %v3491
        %v3493 = vcombine.low %v3469, %v3485
        %v3494 = vcombine.high %v3469, %v3485
        %v3496 = vunpack.c.l.s4 1934713408
        %v3497 = vunpack.c.0.s8 %v3496
        %v3498 = vlaneseq
        %v3499 = vshrl.u32 %v3498, 7
        %v3500 = vsub.s32 %v3497, %v3499
        %v3501 = vrot.slane %v3493, %v3500
        %v3503 = vunpack.c.l.s4 1934713408
        %v3504 = vunpack.c.0.s8 %v3503
        %v3505 = vlaneseq
        %v3506 = vshrl.u32 %v3505, 7
        %v3507 = vsub.s32 %v3504, %v3506
        %v3508 = vrot.slane %v3494, %v3507
        %v3509 = vcombine.low %v3476, %v3492
        %v3510 = vcombine.high %v3476, %v3492
        %v3512 = vunpack.c.l.s4 1934713408
        %v3513 = vunpack.c.0.s8 %v3512
        %v3514 = vlaneseq
        %v3515 = vshrl.u32 %v3514, 7
        %v3516 = vsub.s32 %v3513, %v3515
        %v3517 = vrot.slane %v3509, %v3516
        %v3519 = vunpack.c.l.s4 1934713408
        %v3520 = vunpack.c.0.s8 %v3519
        %v3521 = vlaneseq
        %v3522 = vshrl.u32 %v3521, 7
        %v3523 = vsub.s32 %v3520, %v3522
        %v3524 = vrot.slane %v3510, %v3523
        %v3525 = vcombine.high %v3501, 0.0
        %v3526 = vcombine.high %v3508, 0.0
        %v3527 = vcombine.high %v3517, 0.0
        %v3528 = vcombine.high %v3524, 0.0
        %v3529 = vcombine.low %v3501, %v3508
        %v3531 = vunpack.c.l.s4 1983009808
        %v3532 = vunpack.c.0.s8 %v3531
        %v3533 = vlaneseq
        %v3534 = vshrl.u32 %v3533, 7
        %v3535 = vsub.s32 %v3532, %v3534
        %v3536 = vrot.slane %v3529, %v3535
        %v3537 = vcombine.low %v3525, %v3526
        %v3539 = vunpack.c.l.s4 1983009808
        %v3540 = vunpack.c.0.s8 %v3539
        %v3541 = vlaneseq
        %v3542 = vshrl.u32 %v3541, 7
        %v3543 = vsub.s32 %v3540, %v3542
        %v3544 = vrot.slane %v3537, %v3543
        %v3545 = vcombine.low %v3517, %v3524
        %v3547 = vunpack.c.l.s4 1983009808
        %v3548 = vunpack.c.0.s8 %v3547
        %v3549 = vlaneseq
        %v3550 = vshrl.u32 %v3549, 7
        %v3551 = vsub.s32 %v3548, %v3550
        %v3552 = vrot.slane %v3545, %v3551
        %v3553 = vcombine.low %v3527, %v3528
        %v3555 = vunpack.c.l.s4 1983009808
        %v3556 = vunpack.c.0.s8 %v3555
        %v3557 = vlaneseq
        %v3558 = vshrl.u32 %v3557, 7
        %v3559 = vsub.s32 %v3556, %v3558
        %v3560 = vrot.slane %v3553, %v3559
        %v3561 = vcombine.low %v3536, %v3544
        %v3562 = vcombine.high %v3536, %v3544
        %v3564 = vunpack.c.l.s4 1934713408
        %v3565 = vunpack.c.0.s8 %v3564
        %v3566 = vlaneseq
        %v3567 = vshrl.u32 %v3566, 7
        %v3568 = vsub.s32 %v3565, %v3567
        %v3569 = vrot.slane %v3561, %v3568
        %v3571 = vunpack.c.l.s4 1934713408
        %v3572 = vunpack.c.0.s8 %v3571
        %v3573 = vlaneseq
        %v3574 = vshrl.u32 %v3573, 7
        %v3575 = vsub.s32 %v3572, %v3574
        %v3576 = vrot.slane %v3562, %v3575
        %v3577 = vcombine.low %v3552, %v3560
        %v3578 = vcombine.high %v3552, %v3560
        %v3580 = vunpack.c.l.s4 1934713408
        %v3581 = vunpack.c.0.s8 %v3580
        %v3582 = vlaneseq
        %v3583 = vshrl.u32 %v3582, 7
        %v3584 = vsub.s32 %v3581, %v3583
        %v3585 = vrot.slane %v3577, %v3584
        %v3587 = vunpack.c.l.s4 1934713408
        %v3588 = vunpack.c.0.s8 %v3587
        %v3589 = vlaneseq
        %v3590 = vshrl.u32 %v3589, 7
        %v3591 = vsub.s32 %v3588, %v3590
        %v3592 = vrot.slane %v3578, %v3591
        %v3593 = vcombine.low %v3569, %v3585
        %v3594 = vcombine.high %v3569, %v3585
        %v3595 = vcombine.low %v3576, %v3592
        %v3596 = vcombine.high %v3576, %v3592
        %3598 = vrot.lane.b32.xlu0 %v3594, 8
        %v3599 = vpop.permute.xlu0 %3598
        %3602 = vrot.lane.b32.xlu0 %v3595, 16
        %v3603 = vpop.permute.xlu0 %3602
        %3606 = vrot.lane.b32.xlu0 %v3596, 24
        %v3607 = vpop.permute.xlu0 %3606
        %v3609 = vsel %vm1473, %v3593, %v3599
        %v3610 = vsel %vm2303, %v3609, %v3603
        %v3611 = vsel %vm2305, %v3610, %v3607
        %v3612 = vld [vmem:[%s703] sm:$0xff]
        %v3613 = vld [vmem:[%s703 + $0x8] sm:$0xff]
        %v3614 = vld [vmem:[%s703 + $0x10] sm:$0xff]
        %v3615 = vld [vmem:[%s703 + $0x18] sm:$0xff]
        %v3616 = vld [vmem:[%s834] sm:$0x1]
        %v3618 = vlaneseq
        %v3619 = vshrl.u32 %v3618, 7
        %v3620 = vsub.s32 0, %v3619
        %v3621 = vrot.slane %v3616, %v3620
        %v3624 = vsel %vm863, %v2306, 0
        %v3627 = vsel %vm863, %v3611, 0
        %3629 = vmatprep.subr.mxu0 0.0
        %3630 = vmatpush1.msra.mxu0 %v3612
        %3631 = vmatprep.subr.mxu0 0.0
        %3632 = vmatpush1.msra.mxu0 %v3613
        %3633 = vmatprep.subr.mxu0 0.0
        %3634 = vmatpush1.msra.mxu0 %v3614
        %3635 = vmatprep.subr.mxu0 0.0
        %3636 = vmatpush1.msra.mxu0 %v3615
        %3637 = vmatprep.subr.mxu0 0.0
        %3638 = vmatpush1.msra.mxu0 0.0
        %3639 = vmatprep.subr.mxu0 0.0
        %3640 = vmatpush1.msra.mxu0 0.0
        %3641 = vmatprep.subr.mxu0 0.0
        %3642 = vmatpush1.msra.mxu0 0.0
        %3643 = vmatprep.subr.mxu0 0.0
        %3644 = vmatpush1.msra.mxu0 0.0
        %3645 = vmatprep.subr.mxu0 0.0
        %3646 = vmatpush1.msra.mxu0 0.0
        %3647 = vmatprep.subr.mxu0 0.0
        %3648 = vmatpush1.msra.mxu0 0.0
        %3649 = vmatprep.subr.mxu0 0.0
        %3650 = vmatpush1.msra.mxu0 0.0
        %3651 = vmatprep.subr.mxu0 0.0
        %3652 = vmatpush1.msra.mxu0 0.0
        %3653 = vmatprep.subr.mxu0 0.0
        %3654 = vmatpush1.msra.mxu0 0.0
        %3655 = vmatprep.subr.mxu0 0.0
        %3656 = vmatpush1.msra.mxu0 0.0
        %3657 = vmatprep.subr.mxu0 0.0
        %3658 = vmatpush1.msra.mxu0 0.0
        %3659 = vmatprep.subr.mxu0 0.0
        %3660 = vmatpush1.msra.mxu0 0.0
        %3661 = vmatprep.subr.mxu0 0.0
        %3662 = vmatpush1.msra.mxu0 0.0
        %3663 = vmatprep.subr.mxu0 0.0
        %3664 = vmatpush1.msra.mxu0 0.0
        %3665 = vmatprep.subr.mxu0 0.0
        %3666 = vmatpush1.msra.mxu0 0.0
        %3667 = vmatprep.subr.mxu0 0.0
        %3668 = vmatpush1.msra.mxu0 0.0
        %3669 = vmatprep.subr.mxu0 0.0
        %3670 = vmatpush1.msra.mxu0 0.0
        %3671 = vmatprep.subr.mxu0 0.0
        %3672 = vmatpush1.msra.mxu0 0.0
        %3673 = vmatprep.subr.mxu0 0.0
        %3674 = vmatpush1.msra.mxu0 0.0
        %3675 = vmatprep.subr.mxu0 0.0
        %3676 = vmatpush1.msra.mxu0 0.0
        %3677 = vmatprep.subr.mxu0 0.0
        %3678 = vmatpush1.msra.mxu0 0.0
        %3679 = vmatprep.subr.mxu0 0.0
        %3680 = vmatpush1.msra.mxu0 0.0
        %3681 = vmatprep.subr.mxu0 0.0
        %3682 = vmatpush1.msra.mxu0 0.0
        %3683 = vmatprep.subr.mxu0 0.0
        %3684 = vmatpush1.msra.mxu0 0.0
        %3685 = vmatprep.subr.mxu0 0.0
        %3686 = vmatpush1.msra.mxu0 0.0
        %3687 = vmatprep.subr.mxu0 0.0
        %3688 = vmatpush1.msra.mxu0 0.0
        %3689 = vmatprep.subr.mxu0 0.0
        %3690 = vmatpush1.msra.mxu0 0.0
        %3691 = vmatprep.subr.mxu0 0.0
        %3692 = vmatpush1.msra.mxu0 0.0
        %3693 = vmatprep.mubr.f32.mxu0 0.0
        %3694 = vmatmul.mubr.f32.gmra.mrb[0].mxu0 %v3624
        %v3695 = vpop.f32.mrb[0].mxu0
        %v3696 = vadd.f32 %v3621, %v3695
        %v3697 = vpop.f32.mrb[0].mxu0
        %3698 = vmatprep.mubr.f32.mxu0 0.0
        %3699 = vmatmul.mubr.f32.gmra.mrb[0].mxu0 %v3627
        %v3700 = vpop.f32.mrb[0].mxu0
        %v3701 = vadd.f32 %v3621, %v3700
        %v3702 = vpop.f32.mrb[0].mxu0
        %3703 = vdwg.mxu0
        %v3704 = vld [vmem:[%s712] sm:$0xff]
        %v3705 = vld [vmem:[%s712 + $0x8] sm:$0xff]
        %v3706 = vld [vmem:[%s712 + $0x10] sm:$0xff]
        %v3707 = vld [vmem:[%s712 + $0x18] sm:$0xff]
        %v3708 = vld [vmem:[%s837] sm:$0x1]
        %v3710 = vlaneseq
        %v3711 = vshrl.u32 %v3710, 7
        %v3712 = vsub.s32 0, %v3711
        %v3713 = vrot.slane %v3708, %v3712
        %v3716 = vsel %vm863, %v3696, 0
        %v3719 = vsel %vm863, %v3701, 0
        %3721 = vmatprep.subr.mxu0 0.0
        %3722 = vmatpush1.msra.mxu0 %v3704
        %3723 = vmatprep.subr.mxu0 0.0
        %3724 = vmatpush1.msra.mxu0 %v3705
        %3725 = vmatprep.subr.mxu0 0.0
        %3726 = vmatpush1.msra.mxu0 %v3706
        %3727 = vmatprep.subr.mxu0 0.0
        %3728 = vmatpush1.msra.mxu0 %v3707
        %3729 = vmatprep.subr.mxu0 0.0
        %3730 = vmatpush1.msra.mxu0 0.0
        %3731 = vmatprep.subr.mxu0 0.0
        %3732 = vmatpush1.msra.mxu0 0.0
        %3733 = vmatprep.subr.mxu0 0.0
        %3734 = vmatpush1.msra.mxu0 0.0
        %3735 = vmatprep.subr.mxu0 0.0
        %3736 = vmatpush1.msra.mxu0 0.0
        %3737 = vmatprep.subr.mxu0 0.0
        %3738 = vmatpush1.msra.mxu0 0.0
        %3739 = vmatprep.subr.mxu0 0.0
        %3740 = vmatpush1.msra.mxu0 0.0
        %3741 = vmatprep.subr.mxu0 0.0
        %3742 = vmatpush1.msra.mxu0 0.0
        %3743 = vmatprep.subr.mxu0 0.0
        %3744 = vmatpush1.msra.mxu0 0.0
        %3745 = vmatprep.subr.mxu0 0.0
        %3746 = vmatpush1.msra.mxu0 0.0
        %3747 = vmatprep.subr.mxu0 0.0
        %3748 = vmatpush1.msra.mxu0 0.0
        %3749 = vmatprep.subr.mxu0 0.0
        %3750 = vmatpush1.msra.mxu0 0.0
        %3751 = vmatprep.subr.mxu0 0.0
        %3752 = vmatpush1.msra.mxu0 0.0
        %3753 = vmatprep.subr.mxu0 0.0
        %3754 = vmatpush1.msra.mxu0 0.0
        %3755 = vmatprep.subr.mxu0 0.0
        %3756 = vmatpush1.msra.mxu0 0.0
        %3757 = vmatprep.subr.mxu0 0.0
        %3758 = vmatpush1.msra.mxu0 0.0
        %3759 = vmatprep.subr.mxu0 0.0
        %3760 = vmatpush1.msra.mxu0 0.0
        %3761 = vmatprep.subr.mxu0 0.0
        %3762 = vmatpush1.msra.mxu0 0.0
        %3763 = vmatprep.subr.mxu0 0.0
        %3764 = vmatpush1.msra.mxu0 0.0
        %3765 = vmatprep.subr.mxu0 0.0
        %3766 = vmatpush1.msra.mxu0 0.0
        %3767 = vmatprep.subr.mxu0 0.0
        %3768 = vmatpush1.msra.mxu0 0.0
        %3769 = vmatprep.subr.mxu0 0.0
        %3770 = vmatpush1.msra.mxu0 0.0
        %3771 = vmatprep.subr.mxu0 0.0
        %3772 = vmatpush1.msra.mxu0 0.0
        %3773 = vmatprep.subr.mxu0 0.0
        %3774 = vmatpush1.msra.mxu0 0.0
        %3775 = vmatprep.subr.mxu0 0.0
        %3776 = vmatpush1.msra.mxu0 0.0
        %3777 = vmatprep.subr.mxu0 0.0
        %3778 = vmatpush1.msra.mxu0 0.0
        %3779 = vmatprep.subr.mxu0 0.0
        %3780 = vmatpush1.msra.mxu0 0.0
        %3781 = vmatprep.subr.mxu0 0.0
        %3782 = vmatpush1.msra.mxu0 0.0
        %3783 = vmatprep.subr.mxu0 0.0
        %3784 = vmatpush1.msra.mxu0 0.0
        %3785 = vmatprep.mubr.f32.mxu0 0.0
        %3786 = vmatmul.mubr.f32.gmra.mrb[0].mxu0 %v3716
        %v3787 = vpop.f32.mrb[0].mxu0
        %v3788 = vadd.f32 %v3713, %v3787
        %v3789 = vpop.f32.mrb[0].mxu0
        %3790 = vmatprep.mubr.f32.mxu0 0.0
        %3791 = vmatmul.mubr.f32.gmra.mrb[0].mxu0 %v3719
        %v3792 = vpop.f32.mrb[0].mxu0
        %v3793 = vadd.f32 %v3713, %v3792
        %v3794 = vpop.f32.mrb[0].mxu0
        %3795 = vdwg.mxu0
        %v3796 = vld [vmem:[%s721] sm:$0xff]
        %v3797 = vld [vmem:[%s721 + $0x8] sm:$0xff]
        %v3798 = vld [vmem:[%s721 + $0x10] sm:$0xff]
        %v3799 = vld [vmem:[%s721 + $0x18] sm:$0xff]
        %v3800 = vld [vmem:[%s840] sm:$0x1]
        %v3802 = vlaneseq
        %v3803 = vshrl.u32 %v3802, 7
        %v3804 = vsub.s32 0, %v3803
        %v3805 = vrot.slane %v3800, %v3804
        %3807 = vmatprep.subr.mxu0 0.0
        %3808 = vmatpush1.msra.mxu0 %v3796
        %3809 = vmatprep.subr.mxu0 0.0
        %3810 = vmatpush1.msra.mxu0 %v3797
        %3811 = vmatprep.subr.mxu0 0.0
        %3812 = vmatpush1.msra.mxu0 %v3798
        %3813 = vmatprep.subr.mxu0 0.0
        %3814 = vmatpush1.msra.mxu0 %v3799
        %3815 = vmatprep.subr.mxu0 0.0
        %3816 = vmatpush1.msra.mxu0 0.0
        %3817 = vmatprep.subr.mxu0 0.0
        %3818 = vmatpush1.msra.mxu0 0.0
        %3819 = vmatprep.subr.mxu0 0.0
        %3820 = vmatpush1.msra.mxu0 0.0
        %3821 = vmatprep.subr.mxu0 0.0
        %3822 = vmatpush1.msra.mxu0 0.0
        %3823 = vmatprep.subr.mxu0 0.0
        %3824 = vmatpush1.msra.mxu0 0.0
        %3825 = vmatprep.subr.mxu0 0.0
        %3826 = vmatpush1.msra.mxu0 0.0
        %3827 = vmatprep.subr.mxu0 0.0
        %3828 = vmatpush1.msra.mxu0 0.0
        %3829 = vmatprep.subr.mxu0 0.0
        %3830 = vmatpush1.msra.mxu0 0.0
        %3831 = vmatprep.subr.mxu0 0.0
        %3832 = vmatpush1.msra.mxu0 0.0
        %3833 = vmatprep.subr.mxu0 0.0
        %3834 = vmatpush1.msra.mxu0 0.0
        %3835 = vmatprep.subr.mxu0 0.0
        %3836 = vmatpush1.msra.mxu0 0.0
        %3837 = vmatprep.subr.mxu0 0.0
        %3838 = vmatpush1.msra.mxu0 0.0
        %3839 = vmatprep.subr.mxu0 0.0
        %3840 = vmatpush1.msra.mxu0 0.0
        %3841 = vmatprep.subr.mxu0 0.0
        %3842 = vmatpush1.msra.mxu0 0.0
        %3843 = vmatprep.subr.mxu0 0.0
        %3844 = vmatpush1.msra.mxu0 0.0
        %3845 = vmatprep.subr.mxu0 0.0
        %3846 = vmatpush1.msra.mxu0 0.0
        %3847 = vmatprep.subr.mxu0 0.0
        %3848 = vmatpush1.msra.mxu0 0.0
        %3849 = vmatprep.subr.mxu0 0.0
        %3850 = vmatpush1.msra.mxu0 0.0
        %3851 = vmatprep.subr.mxu0 0.0
        %3852 = vmatpush1.msra.mxu0 0.0
        %3853 = vmatprep.subr.mxu0 0.0
        %3854 = vmatpush1.msra.mxu0 0.0
        %3855 = vmatprep.subr.mxu0 0.0
        %3856 = vmatpush1.msra.mxu0 0.0
        %3857 = vmatprep.subr.mxu0 0.0
        %3858 = vmatpush1.msra.mxu0 0.0
        %3859 = vmatprep.subr.mxu0 0.0
        %3860 = vmatpush1.msra.mxu0 0.0
        %3861 = vmatprep.subr.mxu0 0.0
        %3862 = vmatpush1.msra.mxu0 0.0
        %3863 = vmatprep.subr.mxu0 0.0
        %3864 = vmatpush1.msra.mxu0 0.0
        %3865 = vmatprep.subr.mxu0 0.0
        %3866 = vmatpush1.msra.mxu0 0.0
        %3867 = vmatprep.subr.mxu0 0.0
        %3868 = vmatpush1.msra.mxu0 0.0
        %3869 = vmatprep.subr.mxu0 0.0
        %3870 = vmatpush1.msra.mxu0 0.0
        %3871 = vmatprep.mubr.f32.mxu0 0.0
        %3872 = vmatmul.mubr.f32.gmra.mrb[0].mxu0 %v3716
        %v3873 = vpop.f32.mrb[0].mxu0
        %v3874 = vadd.f32 %v3805, %v3873
        %v3875 = vpop.f32.mrb[0].mxu0
        %3876 = vmatprep.mubr.f32.mxu0 0.0
        %3877 = vmatmul.mubr.f32.gmra.mrb[0].mxu0 %v3719
        %v3878 = vpop.f32.mrb[0].mxu0
        %v3879 = vadd.f32 %v3805, %v3878
        %v3880 = vpop.f32.mrb[0].mxu0
        %3881 = vdwg.mxu0
        %v3882 = vld [vmem:[%s730] sm:$0xff]
        %v3883 = vld [vmem:[%s730 + $0x8] sm:$0xff]
        %v3884 = vld [vmem:[%s730 + $0x10] sm:$0xff]
        %v3885 = vld [vmem:[%s730 + $0x18] sm:$0xff]
        %v3886 = vld [vmem:[%s843] sm:$0x1]
        %v3888 = vlaneseq
        %v3889 = vshrl.u32 %v3888, 7
        %v3890 = vsub.s32 0, %v3889
        %v3891 = vrot.slane %v3886, %v3890
        %v3894 = vsel %vm863, %v3874, 0
        %v3897 = vsel %vm863, %v3879, 0
        %3899 = vmatprep.subr.mxu0 0.0
        %3900 = vmatpush1.msra.mxu0 %v3882
        %3901 = vmatprep.subr.mxu0 0.0
        %3902 = vmatpush1.msra.mxu0 %v3883
        %3903 = vmatprep.subr.mxu0 0.0
        %3904 = vmatpush1.msra.mxu0 %v3884
        %3905 = vmatprep.subr.mxu0 0.0
        %3906 = vmatpush1.msra.mxu0 %v3885
        %3907 = vmatprep.subr.mxu0 0.0
        %3908 = vmatpush1.msra.mxu0 0.0
        %3909 = vmatprep.subr.mxu0 0.0
        %3910 = vmatpush1.msra.mxu0 0.0
        %3911 = vmatprep.subr.mxu0 0.0
        %3912 = vmatpush1.msra.mxu0 0.0
        %3913 = vmatprep.subr.mxu0 0.0
        %3914 = vmatpush1.msra.mxu0 0.0
        %3915 = vmatprep.subr.mxu0 0.0
        %3916 = vmatpush1.msra.mxu0 0.0
        %3917 = vmatprep.subr.mxu0 0.0
        %3918 = vmatpush1.msra.mxu0 0.0
        %3919 = vmatprep.subr.mxu0 0.0
        %3920 = vmatpush1.msra.mxu0 0.0
        %3921 = vmatprep.subr.mxu0 0.0
        %3922 = vmatpush1.msra.mxu0 0.0
        %3923 = vmatprep.subr.mxu0 0.0
        %3924 = vmatpush1.msra.mxu0 0.0
        %3925 = vmatprep.subr.mxu0 0.0
        %3926 = vmatpush1.msra.mxu0 0.0
        %3927 = vmatprep.subr.mxu0 0.0
        %3928 = vmatpush1.msra.mxu0 0.0
        %3929 = vmatprep.subr.mxu0 0.0
        %3930 = vmatpush1.msra.mxu0 0.0
        %3931 = vmatprep.subr.mxu0 0.0
        %3932 = vmatpush1.msra.mxu0 0.0
        %3933 = vmatprep.subr.mxu0 0.0
        %3934 = vmatpush1.msra.mxu0 0.0
        %3935 = vmatprep.subr.mxu0 0.0
        %3936 = vmatpush1.msra.mxu0 0.0
        %3937 = vmatprep.subr.mxu0 0.0
        %3938 = vmatpush1.msra.mxu0 0.0
        %3939 = vmatprep.subr.mxu0 0.0
        %3940 = vmatpush1.msra.mxu0 0.0
        %3941 = vmatprep.subr.mxu0 0.0
        %3942 = vmatpush1.msra.mxu0 0.0
        %3943 = vmatprep.subr.mxu0 0.0
        %3944 = vmatpush1.msra.mxu0 0.0
        %3945 = vmatprep.subr.mxu0 0.0
        %3946 = vmatpush1.msra.mxu0 0.0
        %3947 = vmatprep.subr.mxu0 0.0
        %3948 = vmatpush1.msra.mxu0 0.0
        %3949 = vmatprep.subr.mxu0 0.0
        %3950 = vmatpush1.msra.mxu0 0.0
        %3951 = vmatprep.subr.mxu0 0.0
        %3952 = vmatpush1.msra.mxu0 0.0
        %3953 = vmatprep.subr.mxu0 0.0
        %3954 = vmatpush1.msra.mxu0 0.0
        %3955 = vmatprep.subr.mxu0 0.0
        %3956 = vmatpush1.msra.mxu0 0.0
        %3957 = vmatprep.subr.mxu0 0.0
        %3958 = vmatpush1.msra.mxu0 0.0
        %3959 = vmatprep.subr.mxu0 0.0
        %3960 = vmatpush1.msra.mxu0 0.0
        %3961 = vmatprep.subr.mxu0 0.0
        %3962 = vmatpush1.msra.mxu0 0.0
        %3963 = vmatprep.mubr.f32.mxu0 0.0
        %3964 = vmatmul.mubr.f32.gmra.mrb[0].mxu0 %v3894
        %v3965 = vpop.f32.mrb[0].mxu0
        %v3966 = vadd.f32 %v3891, %v3965
        %v3967 = vpop.f32.mrb[0].mxu0
        %3968 = vmatprep.mubr.f32.mxu0 0.0
        %3969 = vmatmul.mubr.f32.gmra.mrb[0].mxu0 %v3897
        %v3970 = vpop.f32.mrb[0].mxu0
        %v3971 = vadd.f32 %v3891, %v3970
        %v3972 = vpop.f32.mrb[0].mxu0
        %3973 = vdwg.mxu0
        %v3974 = vadd.f32 %v3788, %v3966
        %v3975 = vadd.f32 %v3793, %v3971
        %v3976 = vld [vmem:[%s846] sm:$0x1]
        %v3977 = vld [vmem:[%s849] sm:$0x1]
        %v3978 = vsel %vm863, %v3974, 0.0
        %3979 = vadd.xlane.f32.xlu0 %v3978
        %v3980 = vpop.xlane.xlu0 %3979
        %v3981 = vsel %vm863, %v3975, 0.0
        %3982 = vadd.xlane.f32.xlu0 %v3981
        %v3983 = vpop.xlane.xlu0 %3982
        %v3984 = vmul.f32 %v3980, %v870
        %v3985 = vmul.f32 %v3983, %v870
        %v3986 = vsub.f32 %v3974, %v3984
        %v3987 = vsub.f32 %v3975, %v3985
        %v3988 = vmul.f32 %v3986, %v3986
        %v3989 = vmul.f32 %v3987, %v3987
        %v3990 = vsel %vm863, %v3988, 0.0
        %3991 = vadd.xlane.f32.xlu0 %v3990
        %v3992 = vpop.xlane.xlu0 %3991
        %v3993 = vsel %vm863, %v3989, 0.0
        %3994 = vadd.xlane.f32.xlu0 %v3993
        %v3995 = vpop.xlane.xlu0 %3994
        %v3996 = vmul.f32 %v3992, %v870
        %v3997 = vmul.f32 %v3995, %v870
        %v3998 = vadd.f32 %v3996, 1e-05
        %v3999 = vadd.f32 %v3997, 1e-05
        %v4000 = vrsqrt.pop %v3998
        %v4001 = vrsqrt.pop %v3999
        %v4002 = vmul.f32 %v3986, %v4000
        %v4003 = vmul.f32 %v3987, %v4001
        %v4005 = vlaneseq
        %v4006 = vshrl.u32 %v4005, 7
        %v4007 = vsub.s32 0, %v4006
        %v4008 = vrot.slane %v3976, %v4007
        %v4010 = vmul.f32 %v4002, %v4008
        %v4011 = vmul.f32 %v4003, %v4008
        %v4013 = vlaneseq
        %v4014 = vshrl.u32 %v4013, 7
        %v4015 = vsub.s32 0, %v4014
        %v4016 = vrot.slane %v3977, %v4015
        %v4018 = vadd.f32 %v4010, %v4016
        %v4019 = vadd.f32 %v4011, %v4016
        %4020 = vst.msk [vmem:[#allocation2] sm:$0xff] %vm863, %v4018
        %4021 = vst.msk [vmem:[#allocation2 + $0x8] sm:$0xff] %vm863, %v4019
        %p4022 = scmp.eq.s32.totalorder %s39, 1
        // Predicated region
        $region117: #{tpu_custom_call.1} parent=87 // pred_check
          %p4023 = pneg %p4022
        $region118: #{tpu_custom_call.1} parent=87 // pred_check_branch
          %4025 = sbr.rel (%p4023) target = $region120
        $region119: #{tpu_custom_call.1} parent=87 // pred_region
          %v4026 = vld [vmem:[%s15] sm:$0xff]
          %v4027 = vld [vmem:[%s15 + $0x8] sm:$0xff]
          %v4028 = vld [vmem:[%s15 + $0x10] sm:$0xff]
          %v4029 = vld [vmem:[%s15 + $0x18] sm:$0xff]
          %v4030 = vld [vmem:[%s16] sm:$0x1]
          %v4032 = vlaneseq
          %v4033 = vshrl.u32 %v4032, 7
          %v4034 = vsub.s32 0, %v4033
          %v4035 = vrot.slane %v4030, %v4034
          %v4038 = vsel %vm863, %v4018, 0
          %v4041 = vsel %vm863, %v4019, 0
          %4043 = vmatprep.subr.mxu0 0.0
          %4044 = vmatpush1.msra.mxu0 %v4026
          %4045 = vmatprep.subr.mxu0 0.0
          %4046 = vmatpush1.msra.mxu0 %v4027
          %4047 = vmatprep.subr.mxu0 0.0
          %4048 = vmatpush1.msra.mxu0 %v4028
          %4049 = vmatprep.subr.mxu0 0.0
          %4050 = vmatpush1.msra.mxu0 %v4029
          %4051 = vmatprep.subr.mxu0 0.0
          %4052 = vmatpush1.msra.mxu0 0.0
          %4053 = vmatprep.subr.mxu0 0.0
          %4054 = vmatpush1.msra.mxu0 0.0
          %4055 = vmatprep.subr.mxu0 0.0
          %4056 = vmatpush1.msra.mxu0 0.0
          %4057 = vmatprep.subr.mxu0 0.0
          %4058 = vmatpush1.msra.mxu0 0.0
          %4059 = vmatprep.subr.mxu0 0.0
          %4060 = vmatpush1.msra.mxu0 0.0
          %4061 = vmatprep.subr.mxu0 0.0
          %4062 = vmatpush1.msra.mxu0 0.0
          %4063 = vmatprep.subr.mxu0 0.0
          %4064 = vmatpush1.msra.mxu0 0.0
          %4065 = vmatprep.subr.mxu0 0.0
          %4066 = vmatpush1.msra.mxu0 0.0
          %4067 = vmatprep.subr.mxu0 0.0
          %4068 = vmatpush1.msra.mxu0 0.0
          %4069 = vmatprep.subr.mxu0 0.0
          %4070 = vmatpush1.msra.mxu0 0.0
          %4071 = vmatprep.subr.mxu0 0.0
          %4072 = vmatpush1.msra.mxu0 0.0
          %4073 = vmatprep.subr.mxu0 0.0
          %4074 = vmatpush1.msra.mxu0 0.0
          %4075 = vmatprep.subr.mxu0 0.0
          %4076 = vmatpush1.msra.mxu0 0.0
          %4077 = vmatprep.subr.mxu0 0.0
          %4078 = vmatpush1.msra.mxu0 0.0
          %4079 = vmatprep.subr.mxu0 0.0
          %4080 = vmatpush1.msra.mxu0 0.0
          %4081 = vmatprep.subr.mxu0 0.0
          %4082 = vmatpush1.msra.mxu0 0.0
          %4083 = vmatprep.subr.mxu0 0.0
          %4084 = vmatpush1.msra.mxu0 0.0
          %4085 = vmatprep.subr.mxu0 0.0
          %4086 = vmatpush1.msra.mxu0 0.0
          %4087 = vmatprep.subr.mxu0 0.0
          %4088 = vmatpush1.msra.mxu0 0.0
          %4089 = vmatprep.subr.mxu0 0.0
          %4090 = vmatpush1.msra.mxu0 0.0
          %4091 = vmatprep.subr.mxu0 0.0
          %4092 = vmatpush1.msra.mxu0 0.0
          %4093 = vmatprep.subr.mxu0 0.0
          %4094 = vmatpush1.msra.mxu0 0.0
          %4095 = vmatprep.subr.mxu0 0.0
          %4096 = vmatpush1.msra.mxu0 0.0
          %4097 = vmatprep.subr.mxu0 0.0
          %4098 = vmatpush1.msra.mxu0 0.0
          %4099 = vmatprep.subr.mxu0 0.0
          %4100 = vmatpush1.msra.mxu0 0.0
          %4101 = vmatprep.subr.mxu0 0.0
          %4102 = vmatpush1.msra.mxu0 0.0
          %4103 = vmatprep.subr.mxu0 0.0
          %4104 = vmatpush1.msra.mxu0 0.0
          %4105 = vmatprep.subr.mxu0 0.0
          %4106 = vmatpush1.msra.mxu0 0.0
          %4107 = vmatprep.mubr.f32.mxu0 0.0
          %4108 = vmatmul.mubr.f32.gmra.mrb[0].mxu0 %v4038
          %v4109 = vpop.f32.mrb[0].mxu0
          %v4110 = vadd.f32 %v4035, %v4109
          %v4111 = vpop.f32.mrb[0].mxu0
          %4112 = vmatprep.mubr.f32.mxu0 0.0
          %4113 = vmatmul.mubr.f32.gmra.mrb[0].mxu0 %v4041
          %v4114 = vpop.f32.mrb[0].mxu0
          %v4115 = vadd.f32 %v4035, %v4114
          %v4116 = vpop.f32.mrb[0].mxu0
          %4117 = vdwg.mxu0
          %4118 = vst [vmem:[#allocation14] sm:$0xff] %v4110
          %4119 = vst [vmem:[#allocation14 + $0x8] sm:$0xff] %v4115
        $region120: #{tpu_custom_call.1} parent=87 // pred_fallthru
          _
        // Predicated region
        $region121: #{tpu_custom_call.1} parent=87 // pred_check
          %p4120 = pneg %p479
        $region122: #{tpu_custom_call.1} parent=87 // pred_check_branch
          %4122 = sbr.rel (%p4120) target = $region124
        $region123: #{tpu_custom_call.1} parent=87 // pred_region
          %s4124 = ssub.s32 256, 256
          %4125 = vsyncadd [#allocation5], %s4124
          %s4126 = sshll.u32 [#allocation14], 4
          %s4127 = int_to_ptr.vmem [resolvable:$true] %s4126
          %4132 = dma.vmem_to_hbm [thread:$0]  %s4127, 256, %s17, [#allocation5], 128, 128, 8
        $region124: #{tpu_custom_call.1} parent=87 // pred_fallthru
          _
        // Predicated region
        $region125: #{tpu_custom_call.1} parent=87 // pred_check
          %p4133 = pneg %p479
        $region126: #{tpu_custom_call.1} parent=87 // pred_check_branch
          %4135 = sbr.rel (%p4133) target = $region128
        $region127: #{tpu_custom_call.1} parent=87 // pred_region
          %4136 = dma.done [#allocation5], 256
        $region128: #{tpu_custom_call.1} parent=87 // pred_fallthru
          _
      $region88: #{tpu_custom_call.1} parent=5 // pred_fallthru
        _
      %p4137 = scmp.le.s32.totalorder 2, %s34
      // Predicated region
      $region129: #{tpu_custom_call.1} parent=5 // pred_check
        %p4138 = pneg %p4137
      $region130: #{tpu_custom_call.1} parent=5 // pred_check_branch
        %4140 = sbr.rel (%p4138) target = $region132
      $region131: #{tpu_custom_call.1} parent=5 // pred_region
        %s4141 = ssub.s32 %s34, 2
      $region132: #{tpu_custom_call.1} parent=5 // pred_fallthru
        _
    $region6: #{tpu_custom_call.1} parent=1 // loop_footer
      %s38 = sadd.s32 1, %s34
    $region7: #{tpu_custom_call.1} parent=1 // loop_footer_branch
      %33 = sbr.rel target = $region3
    $region8: #{tpu_custom_call.1} parent=1 // loop_exit
      _
    %4142 = vsyncpa [#allocation4], 1
    %s4143 = scalar_lea.sflag [#allocation4], 1
    %4144 = vsyncpa %s4143, 1
    %4145 = vsyncpa [#allocation7], 1
    %s4146 = scalar_lea.sflag [#allocation7], 1
    %4147 = vsyncpa %s4146, 1
    %4148 = vsyncpa [#allocation10], 1
    %s4149 = scalar_lea.sflag [#allocation10], 1
    %4150 = vsyncpa %s4149, 1
    %4151 = vsyncpa [#allocation13], 1
    %s4152 = scalar_lea.sflag [#allocation13], 1
    %4153 = vsyncpa %s4152, 1
    %4154 = vsyncpa [#allocation5], 1
    %s4155 = scalar_lea.sflag [#allocation5], 1
    %4156 = vsyncpa %s4155, 1

</llo_original>
